<compile_context>
chip_gen: v5e
topology: v5e:2x2
jax: 0.10.0
libtpu: 0.0.40
codegen_flags: <defaults>
</compile_context>

<pallas_src>
import functools
import math

import jax
import jax.numpy as jnp
from jax.experimental import pallas as pl
from jax.experimental.pallas import tpu as pltpu

# ---------------- small config (consistent with the module, scaled down) ----------------
BATCH = 2
INPUT_DIM = 4              # img channels (input_dim)
IMG_SIZE = 32              # H = W (img_size; small for demo)
POOL_K = 16                # nn.AvgPool2d(16, stride=16)
LATENT = 32                # emb_dim == query_emb_dim == predictor latent_dim
NUM_HEADS = 4              # Transformer_Predictor default
HEAD_DIM = LATENT // NUM_HEADS
FF_SIZE = 64               # ff_size (reduced from default 1024 for the small demo)
NUM_LAYERS = 2             # num_layers (reduced from default 8 for the small demo)
SEQ = 8                    # query sequence length (nframes)
QUERY_KEYS = ("uv", "kp")
QUERY_DIMS = (2, 3)
LN_EPS = 1e-5              # nn.TransformerEncoderLayer default layer_norm_eps


# ============================  the single fused forward kernel  ============================
def _fused_forward_kernel(
        img_ref, pool_ref, projw_ref, projb_ref,
        qcat_ref, qembw_ref, qembb_ref,
        tsin_ref, tw_ref, tb_ref, pe_ref,
        wqkv_ref, bqkv_ref, wo_ref, bo_ref, g1_ref, bn1_ref,
        wf1_ref, bf1_ref, wf2_ref, bf2_ref, g2_ref, bn2_ref,
        hw1_ref, hb1_ref, hw2_ref, hb2_ref, hw3_ref, hb3_ref,
        out_ref, *, num_layers, num_heads, head_dim, seq):
    hd = num_heads * head_dim
    scale = 1.0 / math.sqrt(head_dim)

    # ---- stage 1: enc∘dec stand-in (1x1 projection) + GELU + AvgPool2d(16,16) ----
    # img_ref[0] is the NCHW-native (Cin, H*W) slab; channel-major matmul keeps the
    # activation lane-dense ((D, H*W) = full 128-lane vregs) and removes the wrapper
    # NCHW->NHWC transpose entirely.
    yT = jnp.dot(projw_ref[...], img_ref[0],
                 preferred_element_type=jnp.float32) + projb_ref[...]      # (D, H*W)
    # NOTE: tanh-approx GELU (PyTorch F.gelu default is exact erf GELU).
    yT = jax.nn.gelu(yT, approximate=True)
    # AvgPool2d(16,16) == constant averaging matmul (transposed-RHS, MXU-native form).
    img_tok = jnp.einsum('ps,ds->pd', pool_ref[...], yT,
                         preferred_element_type=jnp.float32)               # (Simg, D)

    # ---- stage 2: query embedding + timestep embedding (stand-ins, see init TODOs) ----
    qemb = jnp.dot(qcat_ref[0], qembw_ref[...],
                   preferred_element_type=jnp.float32) + qembb_ref[...]    # (S, D)
    temb = jax.nn.gelu(jnp.dot(tsin_ref[0], tw_ref[...],
                               preferred_element_type=jnp.float32) + tb_ref[...],
                       approximate=True)                                   # (1, D)

    # ---- sequence assembly + positional encodings (PE restarts at 0 for image tokens,
    #      matching the reference; img_guidance_rate=1.0 -> image tokens always appended) ----
    x = jnp.concatenate([qemb, temb, img_tok], axis=0) + pe_ref[...]       # (T, D)

    # ---- Transformer encoder stack (post-norm nn.TransformerEncoderLayer) ----
    # Static unroll over layers; stacked weights indexed with a static leading index.
    # TODO(synk): at production num_layers use a grid axis over layers (pl.Buffered(2))
    # or lax.fori_loop with dynamic wqkv_ref[l] indexing instead of full unroll.
    for l in range(num_layers):
        # Single QKV projection: one MXU push with N = 3*H*Dh.
        qkv = jnp.dot(x, wqkv_ref[l], preferred_element_type=jnp.float32) + bqkv_ref[l]
        ctx_heads = []
        for h in range(num_heads):
            o = h * head_dim
            qh = qkv[:, o:o + head_dim]
            kh = qkv[:, hd + o:hd + o + head_dim]
            vh = qkv[:, 2 * hd + o:2 * hd + o + head_dim]
            s = jnp.einsum('td,sd->ts', qh, kh,
                           preferred_element_type=jnp.float32) * scale
            s = s - jnp.max(s, axis=-1, keepdims=True)
            p = jnp.exp(s)
            # approx reciprocal uses the EUP slot (free next to the exp).
            p = p * pl.reciprocal(jnp.sum(p, axis=-1, keepdims=True), approx=True)
            ctx_heads.append(jnp.dot(p, vh, preferred_element_type=jnp.float32))
        # concat-heads + single out-projection matmul (no per-head weight sum).
        attn = jnp.dot(jnp.concatenate(ctx_heads, axis=-1), wo_ref[l],
                       preferred_element_type=jnp.float32) + bo_ref[l]     # (T, D)

        # Residual + LayerNorm1.
        h1 = x + attn
        mu = jnp.mean(h1, axis=-1, keepdims=True)
        var = jnp.mean(jnp.square(h1 - mu), axis=-1, keepdims=True)
        h1 = (h1 - mu) * jax.lax.rsqrt(var + LN_EPS) * g1_ref[l] + bn1_ref[l]

        # Feed-forward (GELU) + residual + LayerNorm2.
        f = jnp.dot(h1, wf1_ref[l], preferred_element_type=jnp.float32) + bf1_ref[l]
        f = jax.nn.gelu(f, approximate=True)
        f = jnp.dot(f, wf2_ref[l], preferred_element_type=jnp.float32) + bf2_ref[l]
        h2 = h1 + f
        mu2 = jnp.mean(h2, axis=-1, keepdims=True)
        var2 = jnp.mean(jnp.square(h2 - mu2), axis=-1, keepdims=True)
        x = (h2 - mu2) * jax.lax.rsqrt(var2 + LN_EPS) * g2_ref[l] + bn2_ref[l]

    # ---- fused output-head MLPs (block-diagonal == two independent per-key MLPs) ----
    # TODO(synk): LinearBlock definition not provided; modeled as Linear + activation.
    m = x[:seq]                                                            # (S, D)
    hh = jax.nn.gelu(jnp.dot(m, hw1_ref[...], preferred_element_type=jnp.float32)
                     + hb1_ref[...], approximate=True)
    hh = jax.nn.gelu(jnp.dot(hh, hw2_ref[...], preferred_element_type=jnp.float32)
                     + hb2_ref[...], approximate=True)
    pred = jnp.dot(hh, hw3_ref[...], preferred_element_type=jnp.float32) + hb3_ref[...]
    out_ref[0] = qcat_ref[0] + pred                                        # (S, duv+dkp)


# ----------------------------------- JAX glue helpers -----------------------------------
def positional_encoding_table(max_len, d):
    pos = jnp.arange(max_len, dtype=jnp.float32)[:, None]
    div = jnp.exp(jnp.arange(0, d, 2, dtype=jnp.float32) * (-math.log(10000.0) / d))
    pe = jnp.zeros((max_len, d), jnp.float32)
    pe = pe.at[:, 0::2].set(jnp.sin(pos * div))
    pe = pe.at[:, 1::2].set(jnp.cos(pos * div))
    return pe


def timestep_sinusoid(t, d):
    half = d // 2
    freqs = jnp.exp(-math.log(10000.0) * jnp.arange(half, dtype=jnp.float32) / half)
    ang = t.astype(jnp.float32)[:, None] * freqs[None, :]
    return jnp.concatenate([jnp.sin(ang), jnp.cos(ang)], axis=-1)   # (B, d)


# ----------------------------------- forward pass -----------------------------------
def avgpool_continuous_diffusion_forward(img, query, time_step, params):
    """AvgPool_Continuous_Diffusion.forward (with_feature=False path).  img: NCHW."""
    B, Cin, H, W = img.shape
    D, k = LATENT, POOL_K
    Ho, Wo = H // k, W // k
    Simg = Ho * Wo
    uv, kp = query["uv"], query["kp"]
    S = uv.shape[1]
    T = S + 1 + Simg
    duv, dkp = uv.shape[-1], kp.shape[-1]
    DQ = duv + dkp
    Lyr, F, HD, half = NUM_LAYERS, FF_SIZE, NUM_HEADS * HEAD_DIM, LATENT // 2

    # NCHW kept native; collapsing contiguous minor dims is a free reshape (no transpose).
    img_flat = img.reshape(B, Cin, H * W)
    qcat = jnp.concatenate([uv, kp], axis=-1)                       # (B, S, DQ)
    tsin = timestep_sinusoid(time_step, D).reshape(B, 1, D)
    pe = params["pe"]
    pe_full = jnp.concatenate([pe[:S + 1], pe[:Simg]], axis=0)      # (T, D)

    # Constant AvgPool2d(16,16) averaging matrix (constant-folded under jit).
    sidx = jnp.arange(H * W, dtype=jnp.int32)
    win = (sidx // W // k) * Wo + (sidx % W) // k
    pool_mat = (win[None, :] == jnp.arange(Simg, dtype=jnp.int32)[:, None])
    pool_mat = pool_mat.astype(jnp.float32) * (1.0 / float(k * k))

    def rep(shape):
        nd = len(shape)
        return pl.BlockSpec(shape, lambda b, _nd=nd: (0,) * _nd)

    in_specs = [
        pl.BlockSpec((1, Cin, H * W), lambda b: (b, 0, 0)),   # img (per batch)
        rep((Simg, H * W)),                                   # pool matrix
        rep((D, Cin)), rep((D, 1)),                           # projection w / b
        pl.BlockSpec((1, S, DQ), lambda b: (b, 0, 0)),        # concatenated query
        rep((DQ, D)), rep((1, D)),                            # query-emb w / b
        pl.BlockSpec((1, 1, D), lambda b: (b, 0, 0)),         # timestep sinusoid
        rep((D, D)), rep((1, D)),                             # step-emb w / b
        rep((T, D)),                                          # positional encodings
        rep((Lyr, D, 3 * HD)), rep((Lyr, 1, 3 * HD)),         # wqkv / bqkv
        rep((Lyr, HD, D)), rep((Lyr, 1, D)),                  # wo / bo
        rep((Lyr, 1, D)), rep((Lyr, 1, D)),                   # ln1 gamma / beta
        rep((Lyr, D, F)), rep((Lyr, 1, F)),                   # ff1 w / b
        rep((Lyr, F, D)), rep((Lyr, 1, D)),                   # ff2 w / b
        rep((Lyr, 1, D)), rep((Lyr, 1, D)),                   # ln2 gamma / beta
        rep((D, 2 * half)), rep((1, 2 * half)),               # head w1 / b1 (fused)
        rep((2 * half, 2 * half)), rep((1, 2 * half)),        # head w2 / b2 (block-diag)
        rep((2 * half, DQ)), rep((1, DQ)),                    # head w3 / b3 (block-diag)
    ]

    kernel = functools.partial(_fused_forward_kernel,
                               num_layers=Lyr, num_heads=NUM_HEADS,
                               head_dim=HEAD_DIM, seq=S)
    out = pl.pallas_call(
        kernel,
        out_shape=jax.ShapeDtypeStruct((B, S, DQ), jnp.float32),
        grid=(B,),
        in_specs=in_specs,
        out_specs=pl.BlockSpec((1, S, DQ), lambda b: (b, 0, 0)),
        compiler_params=pltpu.CompilerParams(dimension_semantics=("parallel",)),
    )(img_flat, pool_mat, params["proj_w"], params["proj_b"],
      qcat, params["qemb_w"], params["qemb_b"],
      tsin, params["t_w"], params["t_b"], pe_full,
      params["wqkv"], params["bqkv"], params["wo"], params["bo"],
      params["g1"], params["b1"],
      params["wf1"], params["bf1"], params["wf2"], params["bf2"],
      params["g2"], params["b2"],
      params["hw1"], params["hb1"], params["hw2"], params["hb2"],
      params["hw3"], params["hb3"])

    return {"uv": out[..., :duv], "kp": out[..., duv:]}


# ----------------------------------- parameters -----------------------------------
def _block_diag(mats):
    rows = sum(m.shape[0] for m in mats)
    cols = sum(m.shape[1] for m in mats)
    out = jnp.zeros((rows, cols), jnp.float32)
    r = c = 0
    for m in mats:
        out = out.at[r:r + m.shape[0], c:c + m.shape[1]].set(m)
        r += m.shape[0]
        c += m.shape[1]
    return out


def init_params(key):
    keys = iter(jax.random.split(key, 64))

    def nrm(shape, scale=0.02):
        return scale * jax.random.normal(next(keys), shape, jnp.float32)

    def zeros(shape):
        return jnp.zeros(shape, jnp.float32)

    D, HD, F, L = LATENT, NUM_HEADS * HEAD_DIM, FF_SIZE, NUM_LAYERS
    half = D // 2
    params = {
        # TODO(synk): Resnet_Like_Encoder / Resnet_Like_Decoder definitions not provided;
        # enc∘dec is approximated by a pointwise (1x1-conv) projection input_dim -> emb_dim,
        # stored as (D, Cin) so the kernel contracts directly against the NCHW image.
        "proj_w": nrm((D, INPUT_DIM)), "proj_b": zeros((D, 1)),
        # TODO(synk): Query_emb_model definition not provided; per-key Linear summed,
        # fused by stacking: sum_k(q_k @ W_k + b_k) == concat(q) @ vstack(W_k) + sum(b_k).
        "qemb_w": nrm((sum(QUERY_DIMS), D)), "qemb_b": zeros((1, D)),
        # TODO(synk): StepEncoding definition not provided; sinusoid + Linear + GELU.
        "t_w": nrm((D, D)), "t_b": zeros((1, D)),
        "pe": positional_encoding_table(512, D),
        # Encoder-layer weights stacked on a leading L axis; QKV concatenated into one
        # (D, 3*H*Dh) matrix (head-major columns) so the kernel does a single QKV matmul.
        "wqkv": nrm((L, D, 3 * HD)), "bqkv": zeros((L, 1, 3 * HD)),
        "wo": nrm((L, HD, D)), "bo": zeros((L, 1, D)),
        "g1": jnp.ones((L, 1, D), jnp.float32), "b1": zeros((L, 1, D)),
        "wf1": nrm((L, D, F)), "bf1": zeros((L, 1, F)),
        "wf2": nrm((L, F, D)), "bf2": zeros((L, 1, D)),
        "g2": jnp.ones((L, 1, D), jnp.float32), "b2": zeros((L, 1, D)),
    }
    # Output heads: two independent per-key MLPs packed onto one lane axis
    # (shared-input concat for layer 1; block-diagonal for layers 2 & 3) so the kernel
    # writes a single lane-merged (S, duv+dkp) output block.
    w1s = [nrm((D, half)) for _ in QUERY_DIMS]
    w2s = [nrm((half, half)) for _ in QUERY_DIMS]
    w3s = [nrm((half, d)) for d in QUERY_DIMS]
    params["hw1"] = jnp.concatenate(w1s, axis=1)
    params["hb1"] = zeros((1, len(QUERY_DIMS) * half))
    params["hw2"] = _block_diag(w2s)
    params["hb2"] = zeros((1, len(QUERY_DIMS) * half))
    params["hw3"] = _block_diag(w3s)
    params["hb3"] = zeros((1, sum(QUERY_DIMS)))
    return params


# ----------------------------------- main -----------------------------------
if __name__ == "__main__":
    key = jax.random.PRNGKey(0)
    k_img, k_uv, k_kp, k_params = jax.random.split(key, 4)

    img = jax.random.normal(k_img, (BATCH, INPUT_DIM, IMG_SIZE, IMG_SIZE), jnp.float32)
    query = {
        "uv": jax.random.normal(k_uv, (BATCH, SEQ, QUERY_DIMS[0]), jnp.float32),
        "kp": jax.random.normal(k_kp, (BATCH, SEQ, QUERY_DIMS[1]), jnp.float32),
    }
    time_step = jnp.array([10, 500], dtype=jnp.int32)
    params = init_params(k_params)

    fwd = jax.jit(avgpool_continuous_diffusion_forward)
    out = jax.block_until_ready(fwd(img, query, time_step, params))

    assert out["uv"].shape == (BATCH, SEQ, QUERY_DIMS[0])
    assert out["kp"].shape == (BATCH, SEQ, QUERY_DIMS[1])
    assert all(bool(jnp.all(jnp.isfinite(v))) for v in out.values())
    print("KERNEL_OK")
</pallas_src>

<mosaic_0001>
module attributes {stable_mosaic.version = 11 : i64} {
  func.func @_fused_forward_kernel(%arg0: i32, %arg1: memref<1x4x1024xf32, #tpu.memory_space<vmem>>, %arg2: memref<4x1024xf32, #tpu.memory_space<vmem>>, %arg3: memref<32x4xf32, #tpu.memory_space<vmem>>, %arg4: memref<32x1xf32, #tpu.memory_space<vmem>>, %arg5: memref<1x8x5xf32, #tpu.memory_space<vmem>>, %arg6: memref<5x32xf32, #tpu.memory_space<vmem>>, %arg7: memref<1x32xf32, #tpu.memory_space<vmem>>, %arg8: memref<1x1x32xf32, #tpu.memory_space<vmem>>, %arg9: memref<32x32xf32, #tpu.memory_space<vmem>>, %arg10: memref<1x32xf32, #tpu.memory_space<vmem>>, %arg11: memref<13x32xf32, #tpu.memory_space<vmem>>, %arg12: memref<2x32x96xf32, #tpu.memory_space<vmem>>, %arg13: memref<2x1x96xf32, #tpu.memory_space<vmem>>, %arg14: memref<2x32x32xf32, #tpu.memory_space<vmem>>, %arg15: memref<2x1x32xf32, #tpu.memory_space<vmem>>, %arg16: memref<2x1x32xf32, #tpu.memory_space<vmem>>, %arg17: memref<2x1x32xf32, #tpu.memory_space<vmem>>, %arg18: memref<2x32x64xf32, #tpu.memory_space<vmem>>, %arg19: memref<2x1x64xf32, #tpu.memory_space<vmem>>, %arg20: memref<2x64x32xf32, #tpu.memory_space<vmem>>, %arg21: memref<2x1x32xf32, #tpu.memory_space<vmem>>, %arg22: memref<2x1x32xf32, #tpu.memory_space<vmem>>, %arg23: memref<2x1x32xf32, #tpu.memory_space<vmem>>, %arg24: memref<32x32xf32, #tpu.memory_space<vmem>>, %arg25: memref<1x32xf32, #tpu.memory_space<vmem>>, %arg26: memref<32x32xf32, #tpu.memory_space<vmem>>, %arg27: memref<1x32xf32, #tpu.memory_space<vmem>>, %arg28: memref<32x5xf32, #tpu.memory_space<vmem>>, %arg29: memref<1x5xf32, #tpu.memory_space<vmem>>, %arg30: memref<1x8x5xf32, #tpu.memory_space<vmem>>) attributes {dimension_semantics = [#tpu.dimension_semantics<parallel>], iteration_bounds = array<i64: 2>, scalar_prefetch = 0 : i64, scratch_operands = 0 : i64, tpu.core_type = #tpu.core_type<tc>, window_params = [{transform_indices = @transform_0, window_bounds = array<i64: 1, 4, 1024>}, {pipeline_mode = #tpu.pipeline_mode<synchronous>, transform_indices = @transform_1, window_bounds = array<i64: 4, 1024>}, {pipeline_mode = #tpu.pipeline_mode<synchronous>, transform_indices = @transform_2, window_bounds = array<i64: 32, 4>}, {pipeline_mode = #tpu.pipeline_mode<synchronous>, transform_indices = @transform_3, window_bounds = array<i64: 32, 1>}, {transform_indices = @transform_4, window_bounds = array<i64: 1, 8, 5>}, {pipeline_mode = #tpu.pipeline_mode<synchronous>, transform_indices = @transform_5, window_bounds = array<i64: 5, 32>}, {pipeline_mode = #tpu.pipeline_mode<synchronous>, transform_indices = @transform_6, window_bounds = array<i64: 1, 32>}, {transform_indices = @transform_7, window_bounds = array<i64: 1, 1, 32>}, {pipeline_mode = #tpu.pipeline_mode<synchronous>, transform_indices = @transform_8, window_bounds = array<i64: 32, 32>}, {pipeline_mode = #tpu.pipeline_mode<synchronous>, transform_indices = @transform_9, window_bounds = array<i64: 1, 32>}, {pipeline_mode = #tpu.pipeline_mode<synchronous>, transform_indices = @transform_10, window_bounds = array<i64: 13, 32>}, {pipeline_mode = #tpu.pipeline_mode<synchronous>, transform_indices = @transform_11, window_bounds = array<i64: 2, 32, 96>}, {pipeline_mode = #tpu.pipeline_mode<synchronous>, transform_indices = @transform_12, window_bounds = array<i64: 2, 1, 96>}, {pipeline_mode = #tpu.pipeline_mode<synchronous>, transform_indices = @transform_13, window_bounds = array<i64: 2, 32, 32>}, {pipeline_mode = #tpu.pipeline_mode<synchronous>, transform_indices = @transform_14, window_bounds = array<i64: 2, 1, 32>}, {pipeline_mode = #tpu.pipeline_mode<synchronous>, transform_indices = @transform_15, window_bounds = array<i64: 2, 1, 32>}, {pipeline_mode = #tpu.pipeline_mode<synchronous>, transform_indices = @transform_16, window_bounds = array<i64: 2, 1, 32>}, {pipeline_mode = #tpu.pipeline_mode<synchronous>, transform_indices = @transform_17, window_bounds = array<i64: 2, 32, 64>}, {pipeline_mode = #tpu.pipeline_mode<synchronous>, transform_indices = @transform_18, window_bounds = array<i64: 2, 1, 64>}, {pipeline_mode = #tpu.pipeline_mode<synchronous>, transform_indices = @transform_19, window_bounds = array<i64: 2, 64, 32>}, {pipeline_mode = #tpu.pipeline_mode<synchronous>, transform_indices = @transform_20, window_bounds = array<i64: 2, 1, 32>}, {pipeline_mode = #tpu.pipeline_mode<synchronous>, transform_indices = @transform_21, window_bounds = array<i64: 2, 1, 32>}, {pipeline_mode = #tpu.pipeline_mode<synchronous>, transform_indices = @transform_22, window_bounds = array<i64: 2, 1, 32>}, {pipeline_mode = #tpu.pipeline_mode<synchronous>, transform_indices = @transform_23, window_bounds = array<i64: 32, 32>}, {pipeline_mode = #tpu.pipeline_mode<synchronous>, transform_indices = @transform_24, window_bounds = array<i64: 1, 32>}, {pipeline_mode = #tpu.pipeline_mode<synchronous>, transform_indices = @transform_25, window_bounds = array<i64: 32, 32>}, {pipeline_mode = #tpu.pipeline_mode<synchronous>, transform_indices = @transform_26, window_bounds = array<i64: 1, 32>}, {pipeline_mode = #tpu.pipeline_mode<synchronous>, transform_indices = @transform_27, window_bounds = array<i64: 32, 5>}, {pipeline_mode = #tpu.pipeline_mode<synchronous>, transform_indices = @transform_28, window_bounds = array<i64: 1, 5>}, {transform_indices = @transform_29, window_bounds = array<i64: 1, 8, 5>}]} {
    %c0 = arith.constant 0 : index
    %c0_0 = arith.constant 0 : index
    %0 = vector.load %arg3[%c0, %c0_0] : memref<32x4xf32, #tpu.memory_space<vmem>>, vector<32x4xf32>
    %c0_1 = arith.constant 0 : index
    %c0_2 = arith.constant 0 : index
    %c0_3 = arith.constant 0 : index
    %1 = vector.load %arg1[%c0_1, %c0_2, %c0_3] : memref<1x4x1024xf32, #tpu.memory_space<vmem>>, vector<1x4x1024xf32>
    %2 = vector.shape_cast %1 : vector<1x4x1024xf32> to vector<4x1024xf32>
    %cst = arith.constant dense<0.000000e+00> : vector<32x1024xf32>
    %3 = tpu.matmul %0, %2, %cst {dimension_numbers = #tpu.dot_dimension_numbers<[1], [0], [0], [1], [0, 0, 1, 1], [], []>} : vector<32x4xf32>, vector<4x1024xf32>, vector<32x1024xf32> -> vector<32x1024xf32>
    %c0_4 = arith.constant 0 : index
    %c0_5 = arith.constant 0 : index
    %4 = vector.load %arg4[%c0_4, %c0_5] : memref<32x1xf32, #tpu.memory_space<vmem>>, vector<32x1xf32>
    %5 = vector.broadcast %4 : vector<32x1xf32> to vector<32x1024xf32>
    %6 = arith.addf %3, %5 : vector<32x1024xf32>
    %7 = arith.mulf %6, %6 : vector<32x1024xf32>
    %8 = arith.mulf %6, %7 : vector<32x1024xf32>
    %cst_6 = arith.constant 4.471500e-02 : f32
    %9 = vector.broadcast %cst_6 : f32 to vector<32x1024xf32>
    %10 = arith.mulf %9, %8 : vector<32x1024xf32>
    %11 = arith.addf %6, %10 : vector<32x1024xf32>
    %cst_7 = arith.constant 0.797884583 : f32
    %12 = vector.broadcast %cst_7 : f32 to vector<32x1024xf32>
    %13 = arith.mulf %12, %11 : vector<32x1024xf32>
    %14 = math.tanh %13 : vector<32x1024xf32>
    %cst_8 = arith.constant 1.000000e+00 : f32
    %15 = vector.broadcast %cst_8 : f32 to vector<32x1024xf32>
    %16 = arith.addf %15, %14 : vector<32x1024xf32>
    %cst_9 = arith.constant 5.000000e-01 : f32
    %17 = vector.broadcast %cst_9 : f32 to vector<32x1024xf32>
    %18 = arith.mulf %17, %16 : vector<32x1024xf32>
    %19 = arith.mulf %6, %18 : vector<32x1024xf32>
    %c0_10 = arith.constant 0 : index
    %c0_11 = arith.constant 0 : index
    %20 = vector.load %arg2[%c0_10, %c0_11] : memref<4x1024xf32, #tpu.memory_space<vmem>>, vector<4x1024xf32>
    "tpu.trace_start"() <{level = 10 : i32, message = "ps,ds->pd"}> : () -> ()
    %cst_12 = arith.constant dense<0.000000e+00> : vector<4x32xf32>
    %21 = tpu.matmul %20, %19, %cst_12 {dimension_numbers = #tpu.dot_dimension_numbers<[1], [1], [0], [0], [0, 0, 1, 0], [], []>} : vector<4x1024xf32>, vector<32x1024xf32>, vector<4x32xf32> -> vector<4x32xf32>
    "tpu.trace_stop"() : () -> ()
    %c0_13 = arith.constant 0 : index
    %c0_14 = arith.constant 0 : index
    %c0_15 = arith.constant 0 : index
    %22 = vector.load %arg5[%c0_13, %c0_14, %c0_15] : memref<1x8x5xf32, #tpu.memory_space<vmem>>, vector<1x8x5xf32>
    %23 = vector.shape_cast %22 : vector<1x8x5xf32> to vector<8x5xf32>
    %c0_16 = arith.constant 0 : index
    %c0_17 = arith.constant 0 : index
    %24 = vector.load %arg6[%c0_16, %c0_17] : memref<5x32xf32, #tpu.memory_space<vmem>>, vector<5x32xf32>
    %cst_18 = arith.constant dense<0.000000e+00> : vector<8x32xf32>
    %25 = tpu.matmul %23, %24, %cst_18 {dimension_numbers = #tpu.dot_dimension_numbers<[1], [0], [0], [1], [0, 0, 1, 1], [], []>} : vector<8x5xf32>, vector<5x32xf32>, vector<8x32xf32> -> vector<8x32xf32>
    %c0_19 = arith.constant 0 : index
    %c0_20 = arith.constant 0 : index
    %26 = vector.load %arg7[%c0_19, %c0_20] : memref<1x32xf32, #tpu.memory_space<vmem>>, vector<1x32xf32>
    %27 = vector.broadcast %26 : vector<1x32xf32> to vector<8x32xf32>
    %28 = arith.addf %25, %27 : vector<8x32xf32>
    %c0_21 = arith.constant 0 : index
    %c0_22 = arith.constant 0 : index
    %c0_23 = arith.constant 0 : index
    %29 = vector.load %arg8[%c0_21, %c0_22, %c0_23] : memref<1x1x32xf32, #tpu.memory_space<vmem>>, vector<1x1x32xf32>
    %30 = vector.shape_cast %29 : vector<1x1x32xf32> to vector<1x32xf32>
    %c0_24 = arith.constant 0 : index
    %c0_25 = arith.constant 0 : index
    %31 = vector.load %arg9[%c0_24, %c0_25] : memref<32x32xf32, #tpu.memory_space<vmem>>, vector<32x32xf32>
    %cst_26 = arith.constant dense<0.000000e+00> : vector<1x32xf32>
    %32 = tpu.matmul %30, %31, %cst_26 {dimension_numbers = #tpu.dot_dimension_numbers<[1], [0], [0], [1], [0, 0, 1, 1], [], []>} : vector<1x32xf32>, vector<32x32xf32>, vector<1x32xf32> -> vector<1x32xf32>
    %c0_27 = arith.constant 0 : index
    %c0_28 = arith.constant 0 : index
    %33 = vector.load %arg10[%c0_27, %c0_28] : memref<1x32xf32, #tpu.memory_space<vmem>>, vector<1x32xf32>
    %34 = arith.addf %32, %33 : vector<1x32xf32>
    %35 = arith.mulf %34, %34 : vector<1x32xf32>
    %36 = arith.mulf %34, %35 : vector<1x32xf32>
    %cst_29 = arith.constant 4.471500e-02 : f32
    %37 = vector.broadcast %cst_29 : f32 to vector<1x32xf32>
    %38 = arith.mulf %37, %36 : vector<1x32xf32>
    %39 = arith.addf %34, %38 : vector<1x32xf32>
    %cst_30 = arith.constant 0.797884583 : f32
    %40 = vector.broadcast %cst_30 : f32 to vector<1x32xf32>
    %41 = arith.mulf %40, %39 : vector<1x32xf32>
    %42 = math.tanh %41 : vector<1x32xf32>
    %cst_31 = arith.constant 1.000000e+00 : f32
    %43 = vector.broadcast %cst_31 : f32 to vector<1x32xf32>
    %44 = arith.addf %43, %42 : vector<1x32xf32>
    %cst_32 = arith.constant 5.000000e-01 : f32
    %45 = vector.broadcast %cst_32 : f32 to vector<1x32xf32>
    %46 = arith.mulf %45, %44 : vector<1x32xf32>
    %47 = arith.mulf %34, %46 : vector<1x32xf32>
    %48 = tpu.concatenate %28, %47, %21 in 0 : vector<8x32xf32>, vector<1x32xf32>, vector<4x32xf32> -> vector<13x32xf32>
    %c0_33 = arith.constant 0 : index
    %c0_34 = arith.constant 0 : index
    %49 = vector.load %arg11[%c0_33, %c0_34] : memref<13x32xf32, #tpu.memory_space<vmem>>, vector<13x32xf32>
    %50 = arith.addf %48, %49 : vector<13x32xf32>
    %c0_35 = arith.constant 0 : index
    %c0_36 = arith.constant 0 : index
    %c0_37 = arith.constant 0 : index
    %51 = vector.load %arg12[%c0_35, %c0_36, %c0_37] : memref<2x32x96xf32, #tpu.memory_space<vmem>>, vector<1x32x96xf32>
    %52 = vector.shape_cast %51 : vector<1x32x96xf32> to vector<32x96xf32>
    %cst_38 = arith.constant dense<0.000000e+00> : vector<13x96xf32>
    %53 = tpu.matmul %50, %52, %cst_38 {dimension_numbers = #tpu.dot_dimension_numbers<[1], [0], [0], [1], [0, 0, 1, 1], [], []>} : vector<13x32xf32>, vector<32x96xf32>, vector<13x96xf32> -> vector<13x96xf32>
    %c0_39 = arith.constant 0 : index
    %c0_40 = arith.constant 0 : index
    %c0_41 = arith.constant 0 : index
    %54 = vector.load %arg13[%c0_39, %c0_40, %c0_41] : memref<2x1x96xf32, #tpu.memory_space<vmem>>, vector<1x1x96xf32>
    %55 = vector.shape_cast %54 : vector<1x1x96xf32> to vector<1x96xf32>
    %56 = vector.broadcast %55 : vector<1x96xf32> to vector<13x96xf32>
    %57 = arith.addf %53, %56 : vector<13x96xf32>
    %58 = vector.extract_strided_slice %57 {offsets = [0, 0], sizes = [13, 8], strides = [1, 1]} : vector<13x96xf32> to vector<13x8xf32>
    %59 = vector.extract_strided_slice %57 {offsets = [0, 32], sizes = [13, 8], strides = [1, 1]} : vector<13x96xf32> to vector<13x8xf32>
    %60 = vector.extract_strided_slice %57 {offsets = [0, 64], sizes = [13, 8], strides = [1, 1]} : vector<13x96xf32> to vector<13x8xf32>
    "tpu.trace_start"() <{level = 10 : i32, message = "td,sd->ts"}> : () -> ()
    %cst_42 = arith.constant dense<0.000000e+00> : vector<13x13xf32>
    %61 = tpu.matmul %58, %59, %cst_42 {dimension_numbers = #tpu.dot_dimension_numbers<[1], [1], [0], [0], [0, 0, 1, 0], [], []>} : vector<13x8xf32>, vector<13x8xf32>, vector<13x13xf32> -> vector<13x13xf32>
    "tpu.trace_stop"() : () -> ()
    %cst_43 = arith.constant 0.353553385 : f32
    %62 = vector.broadcast %cst_43 : f32 to vector<13x13xf32>
    %63 = arith.mulf %61, %62 : vector<13x13xf32>
    %cst_44 = arith.constant dense<0xFF800000> : vector<13xf32>
    %64 = vector.multi_reduction <maximumf>, %63, %cst_44 [1] : vector<13x13xf32> to vector<13xf32>
    %65 = vector.shape_cast %64 : vector<13xf32> to vector<13x1xf32>
    %66 = vector.broadcast %65 : vector<13x1xf32> to vector<13x13xf32>
    %67 = arith.subf %63, %66 : vector<13x13xf32>
    %68 = math.exp %67 : vector<13x13xf32>
    %cst_45 = arith.constant dense<0.000000e+00> : vector<13xf32>
    %69 = vector.multi_reduction <add>, %68, %cst_45 [1] : vector<13x13xf32> to vector<13xf32>
    %70 = vector.shape_cast %69 : vector<13xf32> to vector<13x1xf32>
    %71 = tpu.reciprocal %70 {approx = true} : vector<13x1xf32> -> vector<13x1xf32>
    %72 = vector.broadcast %71 : vector<13x1xf32> to vector<13x13xf32>
    %73 = arith.mulf %68, %72 : vector<13x13xf32>
    %cst_46 = arith.constant dense<0.000000e+00> : vector<13x8xf32>
    %74 = tpu.matmul %73, %60, %cst_46 {dimension_numbers = #tpu.dot_dimension_numbers<[1], [0], [0], [1], [0, 0, 1, 1], [], []>} : vector<13x13xf32>, vector<13x8xf32>, vector<13x8xf32> -> vector<13x8xf32>
    %75 = vector.extract_strided_slice %57 {offsets = [0, 8], sizes = [13, 8], strides = [1, 1]} : vector<13x96xf32> to vector<13x8xf32>
    %76 = vector.extract_strided_slice %57 {offsets = [0, 40], sizes = [13, 8], strides = [1, 1]} : vector<13x96xf32> to vector<13x8xf32>
    %77 = vector.extract_strided_slice %57 {offsets = [0, 72], sizes = [13, 8], strides = [1, 1]} : vector<13x96xf32> to vector<13x8xf32>
    "tpu.trace_start"() <{level = 10 : i32, message = "td,sd->ts"}> : () -> ()
    %cst_47 = arith.constant dense<0.000000e+00> : vector<13x13xf32>
    %78 = tpu.matmul %75, %76, %cst_47 {dimension_numbers = #tpu.dot_dimension_numbers<[1], [1], [0], [0], [0, 0, 1, 0], [], []>} : vector<13x8xf32>, vector<13x8xf32>, vector<13x13xf32> -> vector<13x13xf32>
    "tpu.trace_stop"() : () -> ()
    %cst_48 = arith.constant 0.353553385 : f32
    %79 = vector.broadcast %cst_48 : f32 to vector<13x13xf32>
    %80 = arith.mulf %78, %79 : vector<13x13xf32>
    %cst_49 = arith.constant dense<0xFF800000> : vector<13xf32>
    %81 = vector.multi_reduction <maximumf>, %80, %cst_49 [1] : vector<13x13xf32> to vector<13xf32>
    %82 = vector.shape_cast %81 : vector<13xf32> to vector<13x1xf32>
    %83 = vector.broadcast %82 : vector<13x1xf32> to vector<13x13xf32>
    %84 = arith.subf %80, %83 : vector<13x13xf32>
    %85 = math.exp %84 : vector<13x13xf32>
    %cst_50 = arith.constant dense<0.000000e+00> : vector<13xf32>
    %86 = vector.multi_reduction <add>, %85, %cst_50 [1] : vector<13x13xf32> to vector<13xf32>
    %87 = vector.shape_cast %86 : vector<13xf32> to vector<13x1xf32>
    %88 = tpu.reciprocal %87 {approx = true} : vector<13x1xf32> -> vector<13x1xf32>
    %89 = vector.broadcast %88 : vector<13x1xf32> to vector<13x13xf32>
    %90 = arith.mulf %85, %89 : vector<13x13xf32>
    %cst_51 = arith.constant dense<0.000000e+00> : vector<13x8xf32>
    %91 = tpu.matmul %90, %77, %cst_51 {dimension_numbers = #tpu.dot_dimension_numbers<[1], [0], [0], [1], [0, 0, 1, 1], [], []>} : vector<13x13xf32>, vector<13x8xf32>, vector<13x8xf32> -> vector<13x8xf32>
    %92 = vector.extract_strided_slice %57 {offsets = [0, 16], sizes = [13, 8], strides = [1, 1]} : vector<13x96xf32> to vector<13x8xf32>
    %93 = vector.extract_strided_slice %57 {offsets = [0, 48], sizes = [13, 8], strides = [1, 1]} : vector<13x96xf32> to vector<13x8xf32>
    %94 = vector.extract_strided_slice %57 {offsets = [0, 80], sizes = [13, 8], strides = [1, 1]} : vector<13x96xf32> to vector<13x8xf32>
    "tpu.trace_start"() <{level = 10 : i32, message = "td,sd->ts"}> : () -> ()
    %cst_52 = arith.constant dense<0.000000e+00> : vector<13x13xf32>
    %95 = tpu.matmul %92, %93, %cst_52 {dimension_numbers = #tpu.dot_dimension_numbers<[1], [1], [0], [0], [0, 0, 1, 0], [], []>} : vector<13x8xf32>, vector<13x8xf32>, vector<13x13xf32> -> vector<13x13xf32>
    "tpu.trace_stop"() : () -> ()
    %cst_53 = arith.constant 0.353553385 : f32
    %96 = vector.broadcast %cst_53 : f32 to vector<13x13xf32>
    %97 = arith.mulf %95, %96 : vector<13x13xf32>
    %cst_54 = arith.constant dense<0xFF800000> : vector<13xf32>
    %98 = vector.multi_reduction <maximumf>, %97, %cst_54 [1] : vector<13x13xf32> to vector<13xf32>
    %99 = vector.shape_cast %98 : vector<13xf32> to vector<13x1xf32>
    %100 = vector.broadcast %99 : vector<13x1xf32> to vector<13x13xf32>
    %101 = arith.subf %97, %100 : vector<13x13xf32>
    %102 = math.exp %101 : vector<13x13xf32>
    %cst_55 = arith.constant dense<0.000000e+00> : vector<13xf32>
    %103 = vector.multi_reduction <add>, %102, %cst_55 [1] : vector<13x13xf32> to vector<13xf32>
    %104 = vector.shape_cast %103 : vector<13xf32> to vector<13x1xf32>
    %105 = tpu.reciprocal %104 {approx = true} : vector<13x1xf32> -> vector<13x1xf32>
    %106 = vector.broadcast %105 : vector<13x1xf32> to vector<13x13xf32>
    %107 = arith.mulf %102, %106 : vector<13x13xf32>
    %cst_56 = arith.constant dense<0.000000e+00> : vector<13x8xf32>
    %108 = tpu.matmul %107, %94, %cst_56 {dimension_numbers = #tpu.dot_dimension_numbers<[1], [0], [0], [1], [0, 0, 1, 1], [], []>} : vector<13x13xf32>, vector<13x8xf32>, vector<13x8xf32> -> vector<13x8xf32>
    %109 = vector.extract_strided_slice %57 {offsets = [0, 24], sizes = [13, 8], strides = [1, 1]} : vector<13x96xf32> to vector<13x8xf32>
    %110 = vector.extract_strided_slice %57 {offsets = [0, 56], sizes = [13, 8], strides = [1, 1]} : vector<13x96xf32> to vector<13x8xf32>
    %111 = vector.extract_strided_slice %57 {offsets = [0, 88], sizes = [13, 8], strides = [1, 1]} : vector<13x96xf32> to vector<13x8xf32>
    "tpu.trace_start"() <{level = 10 : i32, message = "td,sd->ts"}> : () -> ()
    %cst_57 = arith.constant dense<0.000000e+00> : vector<13x13xf32>
    %112 = tpu.matmul %109, %110, %cst_57 {dimension_numbers = #tpu.dot_dimension_numbers<[1], [1], [0], [0], [0, 0, 1, 0], [], []>} : vector<13x8xf32>, vector<13x8xf32>, vector<13x13xf32> -> vector<13x13xf32>
    "tpu.trace_stop"() : () -> ()
    %cst_58 = arith.constant 0.353553385 : f32
    %113 = vector.broadcast %cst_58 : f32 to vector<13x13xf32>
    %114 = arith.mulf %112, %113 : vector<13x13xf32>
    %cst_59 = arith.constant dense<0xFF800000> : vector<13xf32>
    %115 = vector.multi_reduction <maximumf>, %114, %cst_59 [1] : vector<13x13xf32> to vector<13xf32>
    %116 = vector.shape_cast %115 : vector<13xf32> to vector<13x1xf32>
    %117 = vector.broadcast %116 : vector<13x1xf32> to vector<13x13xf32>
    %118 = arith.subf %114, %117 : vector<13x13xf32>
    %119 = math.exp %118 : vector<13x13xf32>
    %cst_60 = arith.constant dense<0.000000e+00> : vector<13xf32>
    %120 = vector.multi_reduction <add>, %119, %cst_60 [1] : vector<13x13xf32> to vector<13xf32>
    %121 = vector.shape_cast %120 : vector<13xf32> to vector<13x1xf32>
    %122 = tpu.reciprocal %121 {approx = true} : vector<13x1xf32> -> vector<13x1xf32>
    %123 = vector.broadcast %122 : vector<13x1xf32> to vector<13x13xf32>
    %124 = arith.mulf %119, %123 : vector<13x13xf32>
    %cst_61 = arith.constant dense<0.000000e+00> : vector<13x8xf32>
    %125 = tpu.matmul %124, %111, %cst_61 {dimension_numbers = #tpu.dot_dimension_numbers<[1], [0], [0], [1], [0, 0, 1, 1], [], []>} : vector<13x13xf32>, vector<13x8xf32>, vector<13x8xf32> -> vector<13x8xf32>
    %126 = tpu.concatenate %74, %91, %108, %125 in 1 : vector<13x8xf32>, vector<13x8xf32>, vector<13x8xf32>, vector<13x8xf32> -> vector<13x32xf32>
    %c0_62 = arith.constant 0 : index
    %c0_63 = arith.constant 0 : index
    %c0_64 = arith.constant 0 : index
    %127 = vector.load %arg14[%c0_62, %c0_63, %c0_64] : memref<2x32x32xf32, #tpu.memory_space<vmem>>, vector<1x32x32xf32>
    %128 = vector.shape_cast %127 : vector<1x32x32xf32> to vector<32x32xf32>
    %cst_65 = arith.constant dense<0.000000e+00> : vector<13x32xf32>
    %129 = tpu.matmul %126, %128, %cst_65 {dimension_numbers = #tpu.dot_dimension_numbers<[1], [0], [0], [1], [0, 0, 1, 1], [], []>} : vector<13x32xf32>, vector<32x32xf32>, vector<13x32xf32> -> vector<13x32xf32>
    %c0_66 = arith.constant 0 : index
    %c0_67 = arith.constant 0 : index
    %c0_68 = arith.constant 0 : index
    %130 = vector.load %arg15[%c0_66, %c0_67, %c0_68] : memref<2x1x32xf32, #tpu.memory_space<vmem>>, vector<1x1x32xf32>
    %131 = vector.shape_cast %130 : vector<1x1x32xf32> to vector<1x32xf32>
    %132 = vector.broadcast %131 : vector<1x32xf32> to vector<13x32xf32>
    %133 = arith.addf %129, %132 : vector<13x32xf32>
    %134 = arith.addf %50, %133 : vector<13x32xf32>
    %cst_69 = arith.constant dense<0.000000e+00> : vector<13xf32>
    %135 = vector.multi_reduction <add>, %134, %cst_69 [1] : vector<13x32xf32> to vector<13xf32>
    %136 = vector.shape_cast %135 : vector<13xf32> to vector<13x1xf32>
    %cst_70 = arith.constant 3.200000e+01 : f32
    %137 = vector.broadcast %cst_70 : f32 to vector<13x1xf32>
    %138 = arith.divf %136, %137 : vector<13x1xf32>
    %139 = vector.broadcast %138 : vector<13x1xf32> to vector<13x32xf32>
    %140 = arith.subf %134, %139 : vector<13x32xf32>
    %141 = arith.mulf %140, %140 : vector<13x32xf32>
    %cst_71 = arith.constant dense<0.000000e+00> : vector<13xf32>
    %142 = vector.multi_reduction <add>, %141, %cst_71 [1] : vector<13x32xf32> to vector<13xf32>
    %143 = vector.shape_cast %142 : vector<13xf32> to vector<13x1xf32>
    %cst_72 = arith.constant 3.200000e+01 : f32
    %144 = vector.broadcast %cst_72 : f32 to vector<13x1xf32>
    %145 = arith.divf %143, %144 : vector<13x1xf32>
    %146 = vector.broadcast %138 : vector<13x1xf32> to vector<13x32xf32>
    %147 = arith.subf %134, %146 : vector<13x32xf32>
    %cst_73 = arith.constant 9.99999974E-6 : f32
    %148 = vector.broadcast %cst_73 : f32 to vector<13x1xf32>
    %149 = arith.addf %145, %148 : vector<13x1xf32>
    %150 = math.rsqrt %149 : vector<13x1xf32>
    %151 = vector.broadcast %150 : vector<13x1xf32> to vector<13x32xf32>
    %152 = arith.mulf %147, %151 : vector<13x32xf32>
    %c0_74 = arith.constant 0 : index
    %c0_75 = arith.constant 0 : index
    %c0_76 = arith.constant 0 : index
    %153 = vector.load %arg16[%c0_74, %c0_75, %c0_76] : memref<2x1x32xf32, #tpu.memory_space<vmem>>, vector<1x1x32xf32>
    %154 = vector.shape_cast %153 : vector<1x1x32xf32> to vector<1x32xf32>
    %155 = vector.broadcast %154 : vector<1x32xf32> to vector<13x32xf32>
    %156 = arith.mulf %152, %155 : vector<13x32xf32>
    %c0_77 = arith.constant 0 : index
    %c0_78 = arith.constant 0 : index
    %c0_79 = arith.constant 0 : index
    %157 = vector.load %arg17[%c0_77, %c0_78, %c0_79] : memref<2x1x32xf32, #tpu.memory_space<vmem>>, vector<1x1x32xf32>
    %158 = vector.shape_cast %157 : vector<1x1x32xf32> to vector<1x32xf32>
    %159 = vector.broadcast %158 : vector<1x32xf32> to vector<13x32xf32>
    %160 = arith.addf %156, %159 : vector<13x32xf32>
    %c0_80 = arith.constant 0 : index
    %c0_81 = arith.constant 0 : index
    %c0_82 = arith.constant 0 : index
    %161 = vector.load %arg18[%c0_80, %c0_81, %c0_82] : memref<2x32x64xf32, #tpu.memory_space<vmem>>, vector<1x32x64xf32>
    %162 = vector.shape_cast %161 : vector<1x32x64xf32> to vector<32x64xf32>
    %cst_83 = arith.constant dense<0.000000e+00> : vector<13x64xf32>
    %163 = tpu.matmul %160, %162, %cst_83 {dimension_numbers = #tpu.dot_dimension_numbers<[1], [0], [0], [1], [0, 0, 1, 1], [], []>} : vector<13x32xf32>, vector<32x64xf32>, vector<13x64xf32> -> vector<13x64xf32>
    %c0_84 = arith.constant 0 : index
    %c0_85 = arith.constant 0 : index
    %c0_86 = arith.constant 0 : index
    %164 = vector.load %arg19[%c0_84, %c0_85, %c0_86] : memref<2x1x64xf32, #tpu.memory_space<vmem>>, vector<1x1x64xf32>
    %165 = vector.shape_cast %164 : vector<1x1x64xf32> to vector<1x64xf32>
    %166 = vector.broadcast %165 : vector<1x64xf32> to vector<13x64xf32>
    %167 = arith.addf %163, %166 : vector<13x64xf32>
    %168 = arith.mulf %167, %167 : vector<13x64xf32>
    %169 = arith.mulf %167, %168 : vector<13x64xf32>
    %cst_87 = arith.constant 4.471500e-02 : f32
    %170 = vector.broadcast %cst_87 : f32 to vector<13x64xf32>
    %171 = arith.mulf %170, %169 : vector<13x64xf32>
    %172 = arith.addf %167, %171 : vector<13x64xf32>
    %cst_88 = arith.constant 0.797884583 : f32
    %173 = vector.broadcast %cst_88 : f32 to vector<13x64xf32>
    %174 = arith.mulf %173, %172 : vector<13x64xf32>
    %175 = math.tanh %174 : vector<13x64xf32>
    %cst_89 = arith.constant 1.000000e+00 : f32
    %176 = vector.broadcast %cst_89 : f32 to vector<13x64xf32>
    %177 = arith.addf %176, %175 : vector<13x64xf32>
    %cst_90 = arith.constant 5.000000e-01 : f32
    %178 = vector.broadcast %cst_90 : f32 to vector<13x64xf32>
    %179 = arith.mulf %178, %177 : vector<13x64xf32>
    %180 = arith.mulf %167, %179 : vector<13x64xf32>
    %c0_91 = arith.constant 0 : index
    %c0_92 = arith.constant 0 : index
    %c0_93 = arith.constant 0 : index
    %181 = vector.load %arg20[%c0_91, %c0_92, %c0_93] : memref<2x64x32xf32, #tpu.memory_space<vmem>>, vector<1x64x32xf32>
    %182 = vector.shape_cast %181 : vector<1x64x32xf32> to vector<64x32xf32>
    %cst_94 = arith.constant dense<0.000000e+00> : vector<13x32xf32>
    %183 = tpu.matmul %180, %182, %cst_94 {dimension_numbers = #tpu.dot_dimension_numbers<[1], [0], [0], [1], [0, 0, 1, 1], [], []>} : vector<13x64xf32>, vector<64x32xf32>, vector<13x32xf32> -> vector<13x32xf32>
    %c0_95 = arith.constant 0 : index
    %c0_96 = arith.constant 0 : index
    %c0_97 = arith.constant 0 : index
    %184 = vector.load %arg21[%c0_95, %c0_96, %c0_97] : memref<2x1x32xf32, #tpu.memory_space<vmem>>, vector<1x1x32xf32>
    %185 = vector.shape_cast %184 : vector<1x1x32xf32> to vector<1x32xf32>
    %186 = vector.broadcast %185 : vector<1x32xf32> to vector<13x32xf32>
    %187 = arith.addf %183, %186 : vector<13x32xf32>
    %188 = arith.addf %160, %187 : vector<13x32xf32>
    %cst_98 = arith.constant dense<0.000000e+00> : vector<13xf32>
    %189 = vector.multi_reduction <add>, %188, %cst_98 [1] : vector<13x32xf32> to vector<13xf32>
    %190 = vector.shape_cast %189 : vector<13xf32> to vector<13x1xf32>
    %cst_99 = arith.constant 3.200000e+01 : f32
    %191 = vector.broadcast %cst_99 : f32 to vector<13x1xf32>
    %192 = arith.divf %190, %191 : vector<13x1xf32>
    %193 = vector.broadcast %192 : vector<13x1xf32> to vector<13x32xf32>
    %194 = arith.subf %188, %193 : vector<13x32xf32>
    %195 = arith.mulf %194, %194 : vector<13x32xf32>
    %cst_100 = arith.constant dense<0.000000e+00> : vector<13xf32>
    %196 = vector.multi_reduction <add>, %195, %cst_100 [1] : vector<13x32xf32> to vector<13xf32>
    %197 = vector.shape_cast %196 : vector<13xf32> to vector<13x1xf32>
    %cst_101 = arith.constant 3.200000e+01 : f32
    %198 = vector.broadcast %cst_101 : f32 to vector<13x1xf32>
    %199 = arith.divf %197, %198 : vector<13x1xf32>
    %200 = vector.broadcast %192 : vector<13x1xf32> to vector<13x32xf32>
    %201 = arith.subf %188, %200 : vector<13x32xf32>
    %cst_102 = arith.constant 9.99999974E-6 : f32
    %202 = vector.broadcast %cst_102 : f32 to vector<13x1xf32>
    %203 = arith.addf %199, %202 : vector<13x1xf32>
    %204 = math.rsqrt %203 : vector<13x1xf32>
    %205 = vector.broadcast %204 : vector<13x1xf32> to vector<13x32xf32>
    %206 = arith.mulf %201, %205 : vector<13x32xf32>
    %c0_103 = arith.constant 0 : index
    %c0_104 = arith.constant 0 : index
    %c0_105 = arith.constant 0 : index
    %207 = vector.load %arg22[%c0_103, %c0_104, %c0_105] : memref<2x1x32xf32, #tpu.memory_space<vmem>>, vector<1x1x32xf32>
    %208 = vector.shape_cast %207 : vector<1x1x32xf32> to vector<1x32xf32>
    %209 = vector.broadcast %208 : vector<1x32xf32> to vector<13x32xf32>
    %210 = arith.mulf %206, %209 : vector<13x32xf32>
    %c0_106 = arith.constant 0 : index
    %c0_107 = arith.constant 0 : index
    %c0_108 = arith.constant 0 : index
    %211 = vector.load %arg23[%c0_106, %c0_107, %c0_108] : memref<2x1x32xf32, #tpu.memory_space<vmem>>, vector<1x1x32xf32>
    %212 = vector.shape_cast %211 : vector<1x1x32xf32> to vector<1x32xf32>
    %213 = vector.broadcast %212 : vector<1x32xf32> to vector<13x32xf32>
    %214 = arith.addf %210, %213 : vector<13x32xf32>
    %c1 = arith.constant 1 : index
    %c0_109 = arith.constant 0 : index
    %c0_110 = arith.constant 0 : index
    %215 = vector.load %arg12[%c1, %c0_109, %c0_110] : memref<2x32x96xf32, #tpu.memory_space<vmem>>, vector<1x32x96xf32>
    %216 = vector.shape_cast %215 : vector<1x32x96xf32> to vector<32x96xf32>
    %cst_111 = arith.constant dense<0.000000e+00> : vector<13x96xf32>
    %217 = tpu.matmul %214, %216, %cst_111 {dimension_numbers = #tpu.dot_dimension_numbers<[1], [0], [0], [1], [0, 0, 1, 1], [], []>} : vector<13x32xf32>, vector<32x96xf32>, vector<13x96xf32> -> vector<13x96xf32>
    %c1_112 = arith.constant 1 : index
    %c0_113 = arith.constant 0 : index
    %c0_114 = arith.constant 0 : index
    %218 = vector.load %arg13[%c1_112, %c0_113, %c0_114] : memref<2x1x96xf32, #tpu.memory_space<vmem>>, vector<1x1x96xf32>
    %219 = vector.shape_cast %218 : vector<1x1x96xf32> to vector<1x96xf32>
    %220 = vector.broadcast %219 : vector<1x96xf32> to vector<13x96xf32>
    %221 = arith.addf %217, %220 : vector<13x96xf32>
    %222 = vector.extract_strided_slice %221 {offsets = [0, 0], sizes = [13, 8], strides = [1, 1]} : vector<13x96xf32> to vector<13x8xf32>
    %223 = vector.extract_strided_slice %221 {offsets = [0, 32], sizes = [13, 8], strides = [1, 1]} : vector<13x96xf32> to vector<13x8xf32>
    %224 = vector.extract_strided_slice %221 {offsets = [0, 64], sizes = [13, 8], strides = [1, 1]} : vector<13x96xf32> to vector<13x8xf32>
    "tpu.trace_start"() <{level = 10 : i32, message = "td,sd->ts"}> : () -> ()
    %cst_115 = arith.constant dense<0.000000e+00> : vector<13x13xf32>
    %225 = tpu.matmul %222, %223, %cst_115 {dimension_numbers = #tpu.dot_dimension_numbers<[1], [1], [0], [0], [0, 0, 1, 0], [], []>} : vector<13x8xf32>, vector<13x8xf32>, vector<13x13xf32> -> vector<13x13xf32>
    "tpu.trace_stop"() : () -> ()
    %cst_116 = arith.constant 0.353553385 : f32
    %226 = vector.broadcast %cst_116 : f32 to vector<13x13xf32>
    %227 = arith.mulf %225, %226 : vector<13x13xf32>
    %cst_117 = arith.constant dense<0xFF800000> : vector<13xf32>
    %228 = vector.multi_reduction <maximumf>, %227, %cst_117 [1] : vector<13x13xf32> to vector<13xf32>
    %229 = vector.shape_cast %228 : vector<13xf32> to vector<13x1xf32>
    %230 = vector.broadcast %229 : vector<13x1xf32> to vector<13x13xf32>
    %231 = arith.subf %227, %230 : vector<13x13xf32>
    %232 = math.exp %231 : vector<13x13xf32>
    %cst_118 = arith.constant dense<0.000000e+00> : vector<13xf32>
    %233 = vector.multi_reduction <add>, %232, %cst_118 [1] : vector<13x13xf32> to vector<13xf32>
    %234 = vector.shape_cast %233 : vector<13xf32> to vector<13x1xf32>
    %235 = tpu.reciprocal %234 {approx = true} : vector<13x1xf32> -> vector<13x1xf32>
    %236 = vector.broadcast %235 : vector<13x1xf32> to vector<13x13xf32>
    %237 = arith.mulf %232, %236 : vector<13x13xf32>
    %cst_119 = arith.constant dense<0.000000e+00> : vector<13x8xf32>
    %238 = tpu.matmul %237, %224, %cst_119 {dimension_numbers = #tpu.dot_dimension_numbers<[1], [0], [0], [1], [0, 0, 1, 1], [], []>} : vector<13x13xf32>, vector<13x8xf32>, vector<13x8xf32> -> vector<13x8xf32>
    %239 = vector.extract_strided_slice %221 {offsets = [0, 8], sizes = [13, 8], strides = [1, 1]} : vector<13x96xf32> to vector<13x8xf32>
    %240 = vector.extract_strided_slice %221 {offsets = [0, 40], sizes = [13, 8], strides = [1, 1]} : vector<13x96xf32> to vector<13x8xf32>
    %241 = vector.extract_strided_slice %221 {offsets = [0, 72], sizes = [13, 8], strides = [1, 1]} : vector<13x96xf32> to vector<13x8xf32>
    "tpu.trace_start"() <{level = 10 : i32, message = "td,sd->ts"}> : () -> ()
    %cst_120 = arith.constant dense<0.000000e+00> : vector<13x13xf32>
    %242 = tpu.matmul %239, %240, %cst_120 {dimension_numbers = #tpu.dot_dimension_numbers<[1], [1], [0], [0], [0, 0, 1, 0], [], []>} : vector<13x8xf32>, vector<13x8xf32>, vector<13x13xf32> -> vector<13x13xf32>
    "tpu.trace_stop"() : () -> ()
    %cst_121 = arith.constant 0.353553385 : f32
    %243 = vector.broadcast %cst_121 : f32 to vector<13x13xf32>
    %244 = arith.mulf %242, %243 : vector<13x13xf32>
    %cst_122 = arith.constant dense<0xFF800000> : vector<13xf32>
    %245 = vector.multi_reduction <maximumf>, %244, %cst_122 [1] : vector<13x13xf32> to vector<13xf32>
    %246 = vector.shape_cast %245 : vector<13xf32> to vector<13x1xf32>
    %247 = vector.broadcast %246 : vector<13x1xf32> to vector<13x13xf32>
    %248 = arith.subf %244, %247 : vector<13x13xf32>
    %249 = math.exp %248 : vector<13x13xf32>
    %cst_123 = arith.constant dense<0.000000e+00> : vector<13xf32>
    %250 = vector.multi_reduction <add>, %249, %cst_123 [1] : vector<13x13xf32> to vector<13xf32>
    %251 = vector.shape_cast %250 : vector<13xf32> to vector<13x1xf32>
    %252 = tpu.reciprocal %251 {approx = true} : vector<13x1xf32> -> vector<13x1xf32>
    %253 = vector.broadcast %252 : vector<13x1xf32> to vector<13x13xf32>
    %254 = arith.mulf %249, %253 : vector<13x13xf32>
    %cst_124 = arith.constant dense<0.000000e+00> : vector<13x8xf32>
    %255 = tpu.matmul %254, %241, %cst_124 {dimension_numbers = #tpu.dot_dimension_numbers<[1], [0], [0], [1], [0, 0, 1, 1], [], []>} : vector<13x13xf32>, vector<13x8xf32>, vector<13x8xf32> -> vector<13x8xf32>
    %256 = vector.extract_strided_slice %221 {offsets = [0, 16], sizes = [13, 8], strides = [1, 1]} : vector<13x96xf32> to vector<13x8xf32>
    %257 = vector.extract_strided_slice %221 {offsets = [0, 48], sizes = [13, 8], strides = [1, 1]} : vector<13x96xf32> to vector<13x8xf32>
    %258 = vector.extract_strided_slice %221 {offsets = [0, 80], sizes = [13, 8], strides = [1, 1]} : vector<13x96xf32> to vector<13x8xf32>
    "tpu.trace_start"() <{level = 10 : i32, message = "td,sd->ts"}> : () -> ()
    %cst_125 = arith.constant dense<0.000000e+00> : vector<13x13xf32>
    %259 = tpu.matmul %256, %257, %cst_125 {dimension_numbers = #tpu.dot_dimension_numbers<[1], [1], [0], [0], [0, 0, 1, 0], [], []>} : vector<13x8xf32>, vector<13x8xf32>, vector<13x13xf32> -> vector<13x13xf32>
    "tpu.trace_stop"() : () -> ()
    %cst_126 = arith.constant 0.353553385 : f32
    %260 = vector.broadcast %cst_126 : f32 to vector<13x13xf32>
    %261 = arith.mulf %259, %260 : vector<13x13xf32>
    %cst_127 = arith.constant dense<0xFF800000> : vector<13xf32>
    %262 = vector.multi_reduction <maximumf>, %261, %cst_127 [1] : vector<13x13xf32> to vector<13xf32>
    %263 = vector.shape_cast %262 : vector<13xf32> to vector<13x1xf32>
    %264 = vector.broadcast %263 : vector<13x1xf32> to vector<13x13xf32>
    %265 = arith.subf %261, %264 : vector<13x13xf32>
    %266 = math.exp %265 : vector<13x13xf32>
    %cst_128 = arith.constant dense<0.000000e+00> : vector<13xf32>
    %267 = vector.multi_reduction <add>, %266, %cst_128 [1] : vector<13x13xf32> to vector<13xf32>
    %268 = vector.shape_cast %267 : vector<13xf32> to vector<13x1xf32>
    %269 = tpu.reciprocal %268 {approx = true} : vector<13x1xf32> -> vector<13x1xf32>
    %270 = vector.broadcast %269 : vector<13x1xf32> to vector<13x13xf32>
    %271 = arith.mulf %266, %270 : vector<13x13xf32>
    %cst_129 = arith.constant dense<0.000000e+00> : vector<13x8xf32>
    %272 = tpu.matmul %271, %258, %cst_129 {dimension_numbers = #tpu.dot_dimension_numbers<[1], [0], [0], [1], [0, 0, 1, 1], [], []>} : vector<13x13xf32>, vector<13x8xf32>, vector<13x8xf32> -> vector<13x8xf32>
    %273 = vector.extract_strided_slice %221 {offsets = [0, 24], sizes = [13, 8], strides = [1, 1]} : vector<13x96xf32> to vector<13x8xf32>
    %274 = vector.extract_strided_slice %221 {offsets = [0, 56], sizes = [13, 8], strides = [1, 1]} : vector<13x96xf32> to vector<13x8xf32>
    %275 = vector.extract_strided_slice %221 {offsets = [0, 88], sizes = [13, 8], strides = [1, 1]} : vector<13x96xf32> to vector<13x8xf32>
    "tpu.trace_start"() <{level = 10 : i32, message = "td,sd->ts"}> : () -> ()
    %cst_130 = arith.constant dense<0.000000e+00> : vector<13x13xf32>
    %276 = tpu.matmul %273, %274, %cst_130 {dimension_numbers = #tpu.dot_dimension_numbers<[1], [1], [0], [0], [0, 0, 1, 0], [], []>} : vector<13x8xf32>, vector<13x8xf32>, vector<13x13xf32> -> vector<13x13xf32>
    "tpu.trace_stop"() : () -> ()
    %cst_131 = arith.constant 0.353553385 : f32
    %277 = vector.broadcast %cst_131 : f32 to vector<13x13xf32>
    %278 = arith.mulf %276, %277 : vector<13x13xf32>
    %cst_132 = arith.constant dense<0xFF800000> : vector<13xf32>
    %279 = vector.multi_reduction <maximumf>, %278, %cst_132 [1] : vector<13x13xf32> to vector<13xf32>
    %280 = vector.shape_cast %279 : vector<13xf32> to vector<13x1xf32>
    %281 = vector.broadcast %280 : vector<13x1xf32> to vector<13x13xf32>
    %282 = arith.subf %278, %281 : vector<13x13xf32>
    %283 = math.exp %282 : vector<13x13xf32>
    %cst_133 = arith.constant dense<0.000000e+00> : vector<13xf32>
    %284 = vector.multi_reduction <add>, %283, %cst_133 [1] : vector<13x13xf32> to vector<13xf32>
    %285 = vector.shape_cast %284 : vector<13xf32> to vector<13x1xf32>
    %286 = tpu.reciprocal %285 {approx = true} : vector<13x1xf32> -> vector<13x1xf32>
    %287 = vector.broadcast %286 : vector<13x1xf32> to vector<13x13xf32>
    %288 = arith.mulf %283, %287 : vector<13x13xf32>
    %cst_134 = arith.constant dense<0.000000e+00> : vector<13x8xf32>
    %289 = tpu.matmul %288, %275, %cst_134 {dimension_numbers = #tpu.dot_dimension_numbers<[1], [0], [0], [1], [0, 0, 1, 1], [], []>} : vector<13x13xf32>, vector<13x8xf32>, vector<13x8xf32> -> vector<13x8xf32>
    %290 = tpu.concatenate %238, %255, %272, %289 in 1 : vector<13x8xf32>, vector<13x8xf32>, vector<13x8xf32>, vector<13x8xf32> -> vector<13x32xf32>
    %c1_135 = arith.constant 1 : index
    %c0_136 = arith.constant 0 : index
    %c0_137 = arith.constant 0 : index
    %291 = vector.load %arg14[%c1_135, %c0_136, %c0_137] : memref<2x32x32xf32, #tpu.memory_space<vmem>>, vector<1x32x32xf32>
    %292 = vector.shape_cast %291 : vector<1x32x32xf32> to vector<32x32xf32>
    %cst_138 = arith.constant dense<0.000000e+00> : vector<13x32xf32>
    %293 = tpu.matmul %290, %292, %cst_138 {dimension_numbers = #tpu.dot_dimension_numbers<[1], [0], [0], [1], [0, 0, 1, 1], [], []>} : vector<13x32xf32>, vector<32x32xf32>, vector<13x32xf32> -> vector<13x32xf32>
    %c1_139 = arith.constant 1 : index
    %c0_140 = arith.constant 0 : index
    %c0_141 = arith.constant 0 : index
    %294 = vector.load %arg15[%c1_139, %c0_140, %c0_141] : memref<2x1x32xf32, #tpu.memory_space<vmem>>, vector<1x1x32xf32>
    %295 = vector.shape_cast %294 : vector<1x1x32xf32> to vector<1x32xf32>
    %296 = vector.broadcast %295 : vector<1x32xf32> to vector<13x32xf32>
    %297 = arith.addf %293, %296 : vector<13x32xf32>
    %298 = arith.addf %214, %297 : vector<13x32xf32>
    %cst_142 = arith.constant dense<0.000000e+00> : vector<13xf32>
    %299 = vector.multi_reduction <add>, %298, %cst_142 [1] : vector<13x32xf32> to vector<13xf32>
    %300 = vector.shape_cast %299 : vector<13xf32> to vector<13x1xf32>
    %cst_143 = arith.constant 3.200000e+01 : f32
    %301 = vector.broadcast %cst_143 : f32 to vector<13x1xf32>
    %302 = arith.divf %300, %301 : vector<13x1xf32>
    %303 = vector.broadcast %302 : vector<13x1xf32> to vector<13x32xf32>
    %304 = arith.subf %298, %303 : vector<13x32xf32>
    %305 = arith.mulf %304, %304 : vector<13x32xf32>
    %cst_144 = arith.constant dense<0.000000e+00> : vector<13xf32>
    %306 = vector.multi_reduction <add>, %305, %cst_144 [1] : vector<13x32xf32> to vector<13xf32>
    %307 = vector.shape_cast %306 : vector<13xf32> to vector<13x1xf32>
    %cst_145 = arith.constant 3.200000e+01 : f32
    %308 = vector.broadcast %cst_145 : f32 to vector<13x1xf32>
    %309 = arith.divf %307, %308 : vector<13x1xf32>
    %310 = vector.broadcast %302 : vector<13x1xf32> to vector<13x32xf32>
    %311 = arith.subf %298, %310 : vector<13x32xf32>
    %cst_146 = arith.constant 9.99999974E-6 : f32
    %312 = vector.broadcast %cst_146 : f32 to vector<13x1xf32>
    %313 = arith.addf %309, %312 : vector<13x1xf32>
    %314 = math.rsqrt %313 : vector<13x1xf32>
    %315 = vector.broadcast %314 : vector<13x1xf32> to vector<13x32xf32>
    %316 = arith.mulf %311, %315 : vector<13x32xf32>
    %c1_147 = arith.constant 1 : index
    %c0_148 = arith.constant 0 : index
    %c0_149 = arith.constant 0 : index
    %317 = vector.load %arg16[%c1_147, %c0_148, %c0_149] : memref<2x1x32xf32, #tpu.memory_space<vmem>>, vector<1x1x32xf32>
    %318 = vector.shape_cast %317 : vector<1x1x32xf32> to vector<1x32xf32>
    %319 = vector.broadcast %318 : vector<1x32xf32> to vector<13x32xf32>
    %320 = arith.mulf %316, %319 : vector<13x32xf32>
    %c1_150 = arith.constant 1 : index
    %c0_151 = arith.constant 0 : index
    %c0_152 = arith.constant 0 : index
    %321 = vector.load %arg17[%c1_150, %c0_151, %c0_152] : memref<2x1x32xf32, #tpu.memory_space<vmem>>, vector<1x1x32xf32>
    %322 = vector.shape_cast %321 : vector<1x1x32xf32> to vector<1x32xf32>
    %323 = vector.broadcast %322 : vector<1x32xf32> to vector<13x32xf32>
    %324 = arith.addf %320, %323 : vector<13x32xf32>
    %c1_153 = arith.constant 1 : index
    %c0_154 = arith.constant 0 : index
    %c0_155 = arith.constant 0 : index
    %325 = vector.load %arg18[%c1_153, %c0_154, %c0_155] : memref<2x32x64xf32, #tpu.memory_space<vmem>>, vector<1x32x64xf32>
    %326 = vector.shape_cast %325 : vector<1x32x64xf32> to vector<32x64xf32>
    %cst_156 = arith.constant dense<0.000000e+00> : vector<13x64xf32>
    %327 = tpu.matmul %324, %326, %cst_156 {dimension_numbers = #tpu.dot_dimension_numbers<[1], [0], [0], [1], [0, 0, 1, 1], [], []>} : vector<13x32xf32>, vector<32x64xf32>, vector<13x64xf32> -> vector<13x64xf32>
    %c1_157 = arith.constant 1 : index
    %c0_158 = arith.constant 0 : index
    %c0_159 = arith.constant 0 : index
    %328 = vector.load %arg19[%c1_157, %c0_158, %c0_159] : memref<2x1x64xf32, #tpu.memory_space<vmem>>, vector<1x1x64xf32>
    %329 = vector.shape_cast %328 : vector<1x1x64xf32> to vector<1x64xf32>
    %330 = vector.broadcast %329 : vector<1x64xf32> to vector<13x64xf32>
    %331 = arith.addf %327, %330 : vector<13x64xf32>
    %332 = arith.mulf %331, %331 : vector<13x64xf32>
    %333 = arith.mulf %331, %332 : vector<13x64xf32>
    %cst_160 = arith.constant 4.471500e-02 : f32
    %334 = vector.broadcast %cst_160 : f32 to vector<13x64xf32>
    %335 = arith.mulf %334, %333 : vector<13x64xf32>
    %336 = arith.addf %331, %335 : vector<13x64xf32>
    %cst_161 = arith.constant 0.797884583 : f32
    %337 = vector.broadcast %cst_161 : f32 to vector<13x64xf32>
    %338 = arith.mulf %337, %336 : vector<13x64xf32>
    %339 = math.tanh %338 : vector<13x64xf32>
    %cst_162 = arith.constant 1.000000e+00 : f32
    %340 = vector.broadcast %cst_162 : f32 to vector<13x64xf32>
    %341 = arith.addf %340, %339 : vector<13x64xf32>
    %cst_163 = arith.constant 5.000000e-01 : f32
    %342 = vector.broadcast %cst_163 : f32 to vector<13x64xf32>
    %343 = arith.mulf %342, %341 : vector<13x64xf32>
    %344 = arith.mulf %331, %343 : vector<13x64xf32>
    %c1_164 = arith.constant 1 : index
    %c0_165 = arith.constant 0 : index
    %c0_166 = arith.constant 0 : index
    %345 = vector.load %arg20[%c1_164, %c0_165, %c0_166] : memref<2x64x32xf32, #tpu.memory_space<vmem>>, vector<1x64x32xf32>
    %346 = vector.shape_cast %345 : vector<1x64x32xf32> to vector<64x32xf32>
    %cst_167 = arith.constant dense<0.000000e+00> : vector<13x32xf32>
    %347 = tpu.matmul %344, %346, %cst_167 {dimension_numbers = #tpu.dot_dimension_numbers<[1], [0], [0], [1], [0, 0, 1, 1], [], []>} : vector<13x64xf32>, vector<64x32xf32>, vector<13x32xf32> -> vector<13x32xf32>
    %c1_168 = arith.constant 1 : index
    %c0_169 = arith.constant 0 : index
    %c0_170 = arith.constant 0 : index
    %348 = vector.load %arg21[%c1_168, %c0_169, %c0_170] : memref<2x1x32xf32, #tpu.memory_space<vmem>>, vector<1x1x32xf32>
    %349 = vector.shape_cast %348 : vector<1x1x32xf32> to vector<1x32xf32>
    %350 = vector.broadcast %349 : vector<1x32xf32> to vector<13x32xf32>
    %351 = arith.addf %347, %350 : vector<13x32xf32>
    %352 = arith.addf %324, %351 : vector<13x32xf32>
    %cst_171 = arith.constant dense<0.000000e+00> : vector<13xf32>
    %353 = vector.multi_reduction <add>, %352, %cst_171 [1] : vector<13x32xf32> to vector<13xf32>
    %354 = vector.shape_cast %353 : vector<13xf32> to vector<13x1xf32>
    %cst_172 = arith.constant 3.200000e+01 : f32
    %355 = vector.broadcast %cst_172 : f32 to vector<13x1xf32>
    %356 = arith.divf %354, %355 : vector<13x1xf32>
    %357 = vector.broadcast %356 : vector<13x1xf32> to vector<13x32xf32>
    %358 = arith.subf %352, %357 : vector<13x32xf32>
    %359 = arith.mulf %358, %358 : vector<13x32xf32>
    %cst_173 = arith.constant dense<0.000000e+00> : vector<13xf32>
    %360 = vector.multi_reduction <add>, %359, %cst_173 [1] : vector<13x32xf32> to vector<13xf32>
    %361 = vector.shape_cast %360 : vector<13xf32> to vector<13x1xf32>
    %cst_174 = arith.constant 3.200000e+01 : f32
    %362 = vector.broadcast %cst_174 : f32 to vector<13x1xf32>
    %363 = arith.divf %361, %362 : vector<13x1xf32>
    %364 = vector.broadcast %356 : vector<13x1xf32> to vector<13x32xf32>
    %365 = arith.subf %352, %364 : vector<13x32xf32>
    %cst_175 = arith.constant 9.99999974E-6 : f32
    %366 = vector.broadcast %cst_175 : f32 to vector<13x1xf32>
    %367 = arith.addf %363, %366 : vector<13x1xf32>
    %368 = math.rsqrt %367 : vector<13x1xf32>
    %369 = vector.broadcast %368 : vector<13x1xf32> to vector<13x32xf32>
    %370 = arith.mulf %365, %369 : vector<13x32xf32>
    %c1_176 = arith.constant 1 : index
    %c0_177 = arith.constant 0 : index
    %c0_178 = arith.constant 0 : index
    %371 = vector.load %arg22[%c1_176, %c0_177, %c0_178] : memref<2x1x32xf32, #tpu.memory_space<vmem>>, vector<1x1x32xf32>
    %372 = vector.shape_cast %371 : vector<1x1x32xf32> to vector<1x32xf32>
    %373 = vector.broadcast %372 : vector<1x32xf32> to vector<13x32xf32>
    %374 = arith.mulf %370, %373 : vector<13x32xf32>
    %c1_179 = arith.constant 1 : index
    %c0_180 = arith.constant 0 : index
    %c0_181 = arith.constant 0 : index
    %375 = vector.load %arg23[%c1_179, %c0_180, %c0_181] : memref<2x1x32xf32, #tpu.memory_space<vmem>>, vector<1x1x32xf32>
    %376 = vector.shape_cast %375 : vector<1x1x32xf32> to vector<1x32xf32>
    %377 = vector.broadcast %376 : vector<1x32xf32> to vector<13x32xf32>
    %378 = arith.addf %374, %377 : vector<13x32xf32>
    %379 = vector.extract_strided_slice %378 {offsets = [0, 0], sizes = [8, 32], strides = [1, 1]} : vector<13x32xf32> to vector<8x32xf32>
    %c0_182 = arith.constant 0 : index
    %c0_183 = arith.constant 0 : index
    %380 = vector.load %arg24[%c0_182, %c0_183] : memref<32x32xf32, #tpu.memory_space<vmem>>, vector<32x32xf32>
    %cst_184 = arith.constant dense<0.000000e+00> : vector<8x32xf32>
    %381 = tpu.matmul %379, %380, %cst_184 {dimension_numbers = #tpu.dot_dimension_numbers<[1], [0], [0], [1], [0, 0, 1, 1], [], []>} : vector<8x32xf32>, vector<32x32xf32>, vector<8x32xf32> -> vector<8x32xf32>
    %c0_185 = arith.constant 0 : index
    %c0_186 = arith.constant 0 : index
    %382 = vector.load %arg25[%c0_185, %c0_186] : memref<1x32xf32, #tpu.memory_space<vmem>>, vector<1x32xf32>
    %383 = vector.broadcast %382 : vector<1x32xf32> to vector<8x32xf32>
    %384 = arith.addf %381, %383 : vector<8x32xf32>
    %385 = arith.mulf %384, %384 : vector<8x32xf32>
    %386 = arith.mulf %384, %385 : vector<8x32xf32>
    %cst_187 = arith.constant 4.471500e-02 : f32
    %387 = vector.broadcast %cst_187 : f32 to vector<8x32xf32>
    %388 = arith.mulf %387, %386 : vector<8x32xf32>
    %389 = arith.addf %384, %388 : vector<8x32xf32>
    %cst_188 = arith.constant 0.797884583 : f32
    %390 = vector.broadcast %cst_188 : f32 to vector<8x32xf32>
    %391 = arith.mulf %390, %389 : vector<8x32xf32>
    %392 = math.tanh %391 : vector<8x32xf32>
    %cst_189 = arith.constant 1.000000e+00 : f32
    %393 = vector.broadcast %cst_189 : f32 to vector<8x32xf32>
    %394 = arith.addf %393, %392 : vector<8x32xf32>
    %cst_190 = arith.constant 5.000000e-01 : f32
    %395 = vector.broadcast %cst_190 : f32 to vector<8x32xf32>
    %396 = arith.mulf %395, %394 : vector<8x32xf32>
    %397 = arith.mulf %384, %396 : vector<8x32xf32>
    %c0_191 = arith.constant 0 : index
    %c0_192 = arith.constant 0 : index
    %398 = vector.load %arg26[%c0_191, %c0_192] : memref<32x32xf32, #tpu.memory_space<vmem>>, vector<32x32xf32>
    %cst_193 = arith.constant dense<0.000000e+00> : vector<8x32xf32>
    %399 = tpu.matmul %397, %398, %cst_193 {dimension_numbers = #tpu.dot_dimension_numbers<[1], [0], [0], [1], [0, 0, 1, 1], [], []>} : vector<8x32xf32>, vector<32x32xf32>, vector<8x32xf32> -> vector<8x32xf32>
    %c0_194 = arith.constant 0 : index
    %c0_195 = arith.constant 0 : index
    %400 = vector.load %arg27[%c0_194, %c0_195] : memref<1x32xf32, #tpu.memory_space<vmem>>, vector<1x32xf32>
    %401 = vector.broadcast %400 : vector<1x32xf32> to vector<8x32xf32>
    %402 = arith.addf %399, %401 : vector<8x32xf32>
    %403 = arith.mulf %402, %402 : vector<8x32xf32>
    %404 = arith.mulf %402, %403 : vector<8x32xf32>
    %cst_196 = arith.constant 4.471500e-02 : f32
    %405 = vector.broadcast %cst_196 : f32 to vector<8x32xf32>
    %406 = arith.mulf %405, %404 : vector<8x32xf32>
    %407 = arith.addf %402, %406 : vector<8x32xf32>
    %cst_197 = arith.constant 0.797884583 : f32
    %408 = vector.broadcast %cst_197 : f32 to vector<8x32xf32>
    %409 = arith.mulf %408, %407 : vector<8x32xf32>
    %410 = math.tanh %409 : vector<8x32xf32>
    %cst_198 = arith.constant 1.000000e+00 : f32
    %411 = vector.broadcast %cst_198 : f32 to vector<8x32xf32>
    %412 = arith.addf %411, %410 : vector<8x32xf32>
    %cst_199 = arith.constant 5.000000e-01 : f32
    %413 = vector.broadcast %cst_199 : f32 to vector<8x32xf32>
    %414 = arith.mulf %413, %412 : vector<8x32xf32>
    %415 = arith.mulf %402, %414 : vector<8x32xf32>
    %c0_200 = arith.constant 0 : index
    %c0_201 = arith.constant 0 : index
    %416 = vector.load %arg28[%c0_200, %c0_201] : memref<32x5xf32, #tpu.memory_space<vmem>>, vector<32x5xf32>
    %cst_202 = arith.constant dense<0.000000e+00> : vector<8x5xf32>
    %417 = tpu.matmul %415, %416, %cst_202 {dimension_numbers = #tpu.dot_dimension_numbers<[1], [0], [0], [1], [0, 0, 1, 1], [], []>} : vector<8x32xf32>, vector<32x5xf32>, vector<8x5xf32> -> vector<8x5xf32>
    %c0_203 = arith.constant 0 : index
    %c0_204 = arith.constant 0 : index
    %418 = vector.load %arg29[%c0_203, %c0_204] : memref<1x5xf32, #tpu.memory_space<vmem>>, vector<1x5xf32>
    %419 = vector.broadcast %418 : vector<1x5xf32> to vector<8x5xf32>
    %420 = arith.addf %417, %419 : vector<8x5xf32>
    %c0_205 = arith.constant 0 : index
    %c0_206 = arith.constant 0 : index
    %c0_207 = arith.constant 0 : index
    %421 = vector.load %arg5[%c0_205, %c0_206, %c0_207] : memref<1x8x5xf32, #tpu.memory_space<vmem>>, vector<1x8x5xf32>
    %422 = vector.shape_cast %421 : vector<1x8x5xf32> to vector<8x5xf32>
    %423 = arith.addf %422, %420 : vector<8x5xf32>
    %c0_208 = arith.constant 0 : index
    %c0_209 = arith.constant 0 : index
    %c0_210 = arith.constant 0 : index
    %424 = vector.load %arg30[%c0_208, %c0_209, %c0_210] : memref<1x8x5xf32, #tpu.memory_space<vmem>>, vector<1x8x5xf32>
    %425 = vector.shape_cast %424 : vector<1x8x5xf32> to vector<8x5xf32>
    %426 = vector.shape_cast %423 : vector<8x5xf32> to vector<1x8x5xf32>
    tpu.vector_store %arg30[%c0_208, %c0_209, %c0_210], %426 {strides = array<i32>} : memref<1x8x5xf32, #tpu.memory_space<vmem>>, vector<1x8x5xf32>,
    return
  }
  func.func @transform_0(%arg0: i32) -> (i32, i32, i32) {
    %c0_i32 = arith.constant 0 : i32
    %c0_i32_0 = arith.constant 0 : i32
    %c0_i32_1 = arith.constant 0 : i32
    return %arg0, %c0_i32, %c0_i32_0 : i32, i32, i32
  }
  func.func @transform_1(%arg0: i32) -> (i32, i32) {
    %c0_i32 = arith.constant 0 : i32
    %c0_i32_0 = arith.constant 0 : i32
    %c0_i32_1 = arith.constant 0 : i32
    return %c0_i32, %c0_i32_0 : i32, i32
  }
  func.func @transform_2(%arg0: i32) -> (i32, i32) {
    %c0_i32 = arith.constant 0 : i32
    %c0_i32_0 = arith.constant 0 : i32
    %c0_i32_1 = arith.constant 0 : i32
    return %c0_i32, %c0_i32_0 : i32, i32
  }
  func.func @transform_3(%arg0: i32) -> (i32, i32) {
    %c0_i32 = arith.constant 0 : i32
    %c0_i32_0 = arith.constant 0 : i32
    %c0_i32_1 = arith.constant 0 : i32
    return %c0_i32, %c0_i32_0 : i32, i32
  }
  func.func @transform_4(%arg0: i32) -> (i32, i32, i32) {
    %c0_i32 = arith.constant 0 : i32
    %c0_i32_0 = arith.constant 0 : i32
    %c0_i32_1 = arith.constant 0 : i32
    return %arg0, %c0_i32, %c0_i32_0 : i32, i32, i32
  }
  func.func @transform_5(%arg0: i32) -> (i32, i32) {
    %c0_i32 = arith.constant 0 : i32
    %c0_i32_0 = arith.constant 0 : i32
    %c0_i32_1 = arith.constant 0 : i32
    return %c0_i32, %c0_i32_0 : i32, i32
  }
  func.func @transform_6(%arg0: i32) -> (i32, i32) {
    %c0_i32 = arith.constant 0 : i32
    %c0_i32_0 = arith.constant 0 : i32
    %c0_i32_1 = arith.constant 0 : i32
    return %c0_i32, %c0_i32_0 : i32, i32
  }
  func.func @transform_7(%arg0: i32) -> (i32, i32, i32) {
    %c0_i32 = arith.constant 0 : i32
    %c0_i32_0 = arith.constant 0 : i32
    %c0_i32_1 = arith.constant 0 : i32
    return %arg0, %c0_i32, %c0_i32_0 : i32, i32, i32
  }
  func.func @transform_8(%arg0: i32) -> (i32, i32) {
    %c0_i32 = arith.constant 0 : i32
    %c0_i32_0 = arith.constant 0 : i32
    %c0_i32_1 = arith.constant 0 : i32
    return %c0_i32, %c0_i32_0 : i32, i32
  }
  func.func @transform_9(%arg0: i32) -> (i32, i32) {
    %c0_i32 = arith.constant 0 : i32
    %c0_i32_0 = arith.constant 0 : i32
    %c0_i32_1 = arith.constant 0 : i32
    return %c0_i32, %c0_i32_0 : i32, i32
  }
  func.func @transform_10(%arg0: i32) -> (i32, i32) {
    %c0_i32 = arith.constant 0 : i32
    %c0_i32_0 = arith.constant 0 : i32
    %c0_i32_1 = arith.constant 0 : i32
    return %c0_i32, %c0_i32_0 : i32, i32
  }
  func.func @transform_11(%arg0: i32) -> (i32, i32, i32) {
    %c0_i32 = arith.constant 0 : i32
    %c0_i32_0 = arith.constant 0 : i32
    %c0_i32_1 = arith.constant 0 : i32
    %c0_i32_2 = arith.constant 0 : i32
    return %c0_i32, %c0_i32_0, %c0_i32_1 : i32, i32, i32
  }
  func.func @transform_12(%arg0: i32) -> (i32, i32, i32) {
    %c0_i32 = arith.constant 0 : i32
    %c0_i32_0 = arith.constant 0 : i32
    %c0_i32_1 = arith.constant 0 : i32
    %c0_i32_2 = arith.constant 0 : i32
    return %c0_i32, %c0_i32_0, %c0_i32_1 : i32, i32, i32
  }
  func.func @transform_13(%arg0: i32) -> (i32, i32, i32) {
    %c0_i32 = arith.constant 0 : i32
    %c0_i32_0 = arith.constant 0 : i32
    %c0_i32_1 = arith.constant 0 : i32
    %c0_i32_2 = arith.constant 0 : i32
    return %c0_i32, %c0_i32_0, %c0_i32_1 : i32, i32, i32
  }
  func.func @transform_14(%arg0: i32) -> (i32, i32, i32) {
    %c0_i32 = arith.constant 0 : i32
    %c0_i32_0 = arith.constant 0 : i32
    %c0_i32_1 = arith.constant 0 : i32
    %c0_i32_2 = arith.constant 0 : i32
    return %c0_i32, %c0_i32_0, %c0_i32_1 : i32, i32, i32
  }
  func.func @transform_15(%arg0: i32) -> (i32, i32, i32) {
    %c0_i32 = arith.constant 0 : i32
    %c0_i32_0 = arith.constant 0 : i32
    %c0_i32_1 = arith.constant 0 : i32
    %c0_i32_2 = arith.constant 0 : i32
    return %c0_i32, %c0_i32_0, %c0_i32_1 : i32, i32, i32
  }
  func.func @transform_16(%arg0: i32) -> (i32, i32, i32) {
    %c0_i32 = arith.constant 0 : i32
    %c0_i32_0 = arith.constant 0 : i32
    %c0_i32_1 = arith.constant 0 : i32
    %c0_i32_2 = arith.constant 0 : i32
    return %c0_i32, %c0_i32_0, %c0_i32_1 : i32, i32, i32
  }
  func.func @transform_17(%arg0: i32) -> (i32, i32, i32) {
    %c0_i32 = arith.constant 0 : i32
    %c0_i32_0 = arith.constant 0 : i32
    %c0_i32_1 = arith.constant 0 : i32
    %c0_i32_2 = arith.constant 0 : i32
    return %c0_i32, %c0_i32_0, %c0_i32_1 : i32, i32, i32
  }
  func.func @transform_18(%arg0: i32) -> (i32, i32, i32) {
    %c0_i32 = arith.constant 0 : i32
    %c0_i32_0 = arith.constant 0 : i32
    %c0_i32_1 = arith.constant 0 : i32
    %c0_i32_2 = arith.constant 0 : i32
    return %c0_i32, %c0_i32_0, %c0_i32_1 : i32, i32, i32
  }
  func.func @transform_19(%arg0: i32) -> (i32, i32, i32) {
    %c0_i32 = arith.constant 0 : i32
    %c0_i32_0 = arith.constant 0 : i32
    %c0_i32_1 = arith.constant 0 : i32
    %c0_i32_2 = arith.constant 0 : i32
    return %c0_i32, %c0_i32_0, %c0_i32_1 : i32, i32, i32
  }
  func.func @transform_20(%arg0: i32) -> (i32, i32, i32) {
    %c0_i32 = arith.constant 0 : i32
    %c0_i32_0 = arith.constant 0 : i32
    %c0_i32_1 = arith.constant 0 : i32
    %c0_i32_2 = arith.constant 0 : i32
    return %c0_i32, %c0_i32_0, %c0_i32_1 : i32, i32, i32
  }
  func.func @transform_21(%arg0: i32) -> (i32, i32, i32) {
    %c0_i32 = arith.constant 0 : i32
    %c0_i32_0 = arith.constant 0 : i32
    %c0_i32_1 = arith.constant 0 : i32
    %c0_i32_2 = arith.constant 0 : i32
    return %c0_i32, %c0_i32_0, %c0_i32_1 : i32, i32, i32
  }
  func.func @transform_22(%arg0: i32) -> (i32, i32, i32) {
    %c0_i32 = arith.constant 0 : i32
    %c0_i32_0 = arith.constant 0 : i32
    %c0_i32_1 = arith.constant 0 : i32
    %c0_i32_2 = arith.constant 0 : i32
    return %c0_i32, %c0_i32_0, %c0_i32_1 : i32, i32, i32
  }
  func.func @transform_23(%arg0: i32) -> (i32, i32) {
    %c0_i32 = arith.constant 0 : i32
    %c0_i32_0 = arith.constant 0 : i32
    %c0_i32_1 = arith.constant 0 : i32
    return %c0_i32, %c0_i32_0 : i32, i32
  }
  func.func @transform_24(%arg0: i32) -> (i32, i32) {
    %c0_i32 = arith.constant 0 : i32
    %c0_i32_0 = arith.constant 0 : i32
    %c0_i32_1 = arith.constant 0 : i32
    return %c0_i32, %c0_i32_0 : i32, i32
  }
  func.func @transform_25(%arg0: i32) -> (i32, i32) {
    %c0_i32 = arith.constant 0 : i32
    %c0_i32_0 = arith.constant 0 : i32
    %c0_i32_1 = arith.constant 0 : i32
    return %c0_i32, %c0_i32_0 : i32, i32
  }
  func.func @transform_26(%arg0: i32) -> (i32, i32) {
    %c0_i32 = arith.constant 0 : i32
    %c0_i32_0 = arith.constant 0 : i32
    %c0_i32_1 = arith.constant 0 : i32
    return %c0_i32, %c0_i32_0 : i32, i32
  }
  func.func @transform_27(%arg0: i32) -> (i32, i32) {
    %c0_i32 = arith.constant 0 : i32
    %c0_i32_0 = arith.constant 0 : i32
    %c0_i32_1 = arith.constant 0 : i32
    return %c0_i32, %c0_i32_0 : i32, i32
  }
  func.func @transform_28(%arg0: i32) -> (i32, i32) {
    %c0_i32 = arith.constant 0 : i32
    %c0_i32_0 = arith.constant 0 : i32
    %c0_i32_1 = arith.constant 0 : i32
    return %c0_i32, %c0_i32_0 : i32, i32
  }
  func.func @transform_29(%arg0: i32) -> (i32, i32, i32) {
    %c0_i32 = arith.constant 0 : i32
    %c0_i32_0 = arith.constant 0 : i32
    %c0_i32_1 = arith.constant 0 : i32
    return %arg0, %c0_i32, %c0_i32_0 : i32, i32, i32
  }
}

</mosaic_0001>

<llo_original>
// kernel: avgpool_continuous_diffusion_forward.1
$region0: #{avgpool_continuous_diffusion_forward.1}
  #allocation0 [shape = 'u32[]', space=smem, size = 0x4, offset = 0x4, fixed_abs, tag = 'smem constant byte address 0x4 - core index']
  #allocation1 [shape = 'u32[72,128]{1,0:T(1,128)}', space=vmem, size = 0x9000, scoped, tag = 'internal scratch']
  %s0 = inlined_call_operand.smem [shape: u32[30], index: -1, kind: input, shape index: {}]
  %s1 = sld [smem:[%s0]]
  %s2 = scalar_lea.smem %s0, 1
  %s3 = sld [smem:[%s2]]
  %s4 = scalar_lea.smem %s0, 2
  %s5 = sld [smem:[%s4]]
  %s6 = scalar_lea.smem %s0, 3
  %s7 = sld [smem:[%s6]]
  %s8 = scalar_lea.smem %s0, 4
  %s9 = sld [smem:[%s8]]
  %s10 = scalar_lea.smem %s0, 5
  %s11 = sld [smem:[%s10]]
  %s12 = scalar_lea.smem %s0, 6
  %s13 = sld [smem:[%s12]]
  %s14 = scalar_lea.smem %s0, 7
  %s15 = sld [smem:[%s14]]
  %s16 = scalar_lea.smem %s0, 8
  %s17 = sld [smem:[%s16]]
  %s18 = scalar_lea.smem %s0, 9
  %s19 = sld [smem:[%s18]]
  %s20 = scalar_lea.smem %s0, 10
  %s21 = sld [smem:[%s20]]
  %s22 = scalar_lea.smem %s0, 11
  %s23 = sld [smem:[%s22]]
  %s24 = scalar_lea.smem %s0, 12
  %s25 = sld [smem:[%s24]]
  %s26 = scalar_lea.smem %s0, 13
  %s27 = sld [smem:[%s26]]
  %s28 = scalar_lea.smem %s0, 14
  %s29 = sld [smem:[%s28]]
  %s30 = scalar_lea.smem %s0, 15
  %s31 = sld [smem:[%s30]]
  %s32 = scalar_lea.smem %s0, 16
  %s33 = sld [smem:[%s32]]
  %s34 = scalar_lea.smem %s0, 17
  %s35 = sld [smem:[%s34]]
  %s36 = scalar_lea.smem %s0, 18
  %s37 = sld [smem:[%s36]]
  %s38 = scalar_lea.smem %s0, 19
  %s39 = sld [smem:[%s38]]
  %s40 = scalar_lea.smem %s0, 20
  %s41 = sld [smem:[%s40]]
  %s42 = scalar_lea.smem %s0, 21
  %s43 = sld [smem:[%s42]]
  %s44 = scalar_lea.smem %s0, 22
  %s45 = sld [smem:[%s44]]
  %s46 = scalar_lea.smem %s0, 23
  %s47 = sld [smem:[%s46]]
  %s48 = scalar_lea.smem %s0, 24
  %s49 = sld [smem:[%s48]]
  %s50 = scalar_lea.smem %s0, 25
  %s51 = sld [smem:[%s50]]
  %s52 = scalar_lea.smem %s0, 26
  %s53 = sld [smem:[%s52]]
  %s54 = scalar_lea.smem %s0, 27
  %s55 = sld [smem:[%s54]]
  %s56 = scalar_lea.smem %s0, 28
  %s57 = sld [smem:[%s56]]
  %s58 = scalar_lea.smem %s0, 29
  %s59 = sld [smem:[%s58]]
  %s60 = sld [smem:[#allocation0]]
  $region149: #{avgpool_continuous_diffusion_forward.1} parent=0
    _
  %s62 = ssub.s32 1, %s60
  %s63 = scalar_select 0, %s62, %s60
  loop: start=0, step=1, limit=4
  $region2: #{avgpool_continuous_diffusion_forward.1} parent=0 // loop_pre_header
    _
  $region3: #{avgpool_continuous_diffusion_forward.1} parent=0 // loop_header
    %s65 = sphi 0, %s69
    %p66 = scmp.ge.s32.totalorder %s65, 4
    %s75 = sphi 0, %s77
    %s78 = sphi 0, %s75
    %s79 = sphi 0, %s78
    %s95 = sphi 0, %s79
    %s99 = sphi 0, %s99
    %s101 = sphi 0, %s99
    %s102 = sphi 0, %s101
    %s116 = sphi 0, %s102
    %s120 = sphi 0, %s120
    %s122 = sphi 0, %s120
    %s123 = sphi 0, %s122
    %s137 = sphi 0, %s123
    %s141 = sphi 0, %s141
    %s143 = sphi 0, %s141
    %s144 = sphi 0, %s143
    %s158 = sphi 0, %s144
    %s164 = sphi 0, %s166
    %s167 = sphi 0, %s164
    %s168 = sphi 0, %s167
    %s184 = sphi 0, %s168
    %s188 = sphi 0, %s188
    %s190 = sphi 0, %s188
    %s191 = sphi 0, %s190
    %s205 = sphi 0, %s191
    %s209 = sphi 0, %s209
    %s211 = sphi 0, %s209
    %s212 = sphi 0, %s211
    %s226 = sphi 0, %s212
    %s232 = sphi 0, %s234
    %s235 = sphi 0, %s232
    %s236 = sphi 0, %s235
    %s252 = sphi 0, %s236
    %s256 = sphi 0, %s256
    %s258 = sphi 0, %s256
    %s259 = sphi 0, %s258
    %s273 = sphi 0, %s259
    %s277 = sphi 0, %s277
    %s279 = sphi 0, %s277
    %s280 = sphi 0, %s279
    %s294 = sphi 0, %s280
    %s298 = sphi 0, %s298
    %s300 = sphi 0, %s298
    %s301 = sphi 0, %s300
    %s315 = sphi 0, %s301
    %s319 = sphi 0, %s319
    %s321 = sphi 0, %s319
    %s322 = sphi 0, %s321
    %s336 = sphi 0, %s322
    %s340 = sphi 0, %s340
    %s342 = sphi 0, %s340
    %s343 = sphi 0, %s342
    %s357 = sphi 0, %s343
    %s361 = sphi 0, %s361
    %s363 = sphi 0, %s361
    %s364 = sphi 0, %s363
    %s378 = sphi 0, %s364
    %s382 = sphi 0, %s382
    %s384 = sphi 0, %s382
    %s385 = sphi 0, %s384
    %s399 = sphi 0, %s385
    %s403 = sphi 0, %s403
    %s405 = sphi 0, %s403
    %s406 = sphi 0, %s405
    %s420 = sphi 0, %s406
    %s424 = sphi 0, %s424
    %s426 = sphi 0, %s424
    %s427 = sphi 0, %s426
    %s441 = sphi 0, %s427
    %s445 = sphi 0, %s445
    %s447 = sphi 0, %s445
    %s448 = sphi 0, %s447
    %s462 = sphi 0, %s448
    %s466 = sphi 0, %s466
    %s468 = sphi 0, %s466
    %s469 = sphi 0, %s468
    %s483 = sphi 0, %s469
    %s487 = sphi 0, %s487
    %s489 = sphi 0, %s487
    %s490 = sphi 0, %s489
    %s504 = sphi 0, %s490
    %s508 = sphi 0, %s508
    %s510 = sphi 0, %s508
    %s511 = sphi 0, %s510
    %s525 = sphi 0, %s511
    %s529 = sphi 0, %s529
    %s531 = sphi 0, %s529
    %s532 = sphi 0, %s531
    %s546 = sphi 0, %s532
    %s550 = sphi 0, %s550
    %s552 = sphi 0, %s550
    %s553 = sphi 0, %s552
    %s567 = sphi 0, %s553
    %s571 = sphi 0, %s571
    %s573 = sphi 0, %s571
    %s574 = sphi 0, %s573
    %s588 = sphi 0, %s574
    %s592 = sphi 0, %s592
    %s594 = sphi 0, %s592
    %s595 = sphi 0, %s594
    %s609 = sphi 0, %s595
    %s613 = sphi 0, %s613
    %s615 = sphi 0, %s613
    %s616 = sphi 0, %s615
    %s630 = sphi 0, %s616
    %s634 = sphi 0, %s634
    %s636 = sphi 0, %s634
    %s637 = sphi 0, %s636
    %s651 = sphi 0, %s637
    %s655 = sphi 0, %s655
    %s657 = sphi 0, %s655
    %s658 = sphi 0, %s657
    %s672 = sphi 0, %s658
    %s676 = sphi 0, %s676
    %s678 = sphi 0, %s676
    %s679 = sphi 0, %s678
    %s693 = sphi 0, %s679
    %s699 = sphi 0, %s701
    %s702 = sphi 0, %s699
    %s703 = sphi 0, %s702
    %s719 = sphi 0, %s703
  $region4: #{avgpool_continuous_diffusion_forward.1} parent=0 // loop_header_branch
    %68 = sbr.rel (%p66) target = $region8
  $region5: #{avgpool_continuous_diffusion_forward.1} parent=0 // loop_body
    %s70 = ssub.s32 %s65, 1
    %s71 = ssub.s32 %s65, 2
    %s72 = sadd.s32 %s65, 1
    %s73 = ssub.s32 %s65, %s72
    %p74 = scmp.eq.s32.totalorder %s73, 0
    %s76 = sadd.s32 %s75, 1
    %s77 = scalar_select %p74, %s75, %s76
    %p80 = pneg %p74
    %p81 = scmp.eq.s32.totalorder %s65, 1
    %p82 = por %p80, %p81
    %p83 = scmp.ne.s32.totalorder %s75, %s78
    %p84 = scmp.eq.s32.totalorder %s65, 0
    %p85 = por %p83, %p84
    %p86 = scmp.ne.s32.totalorder %s75, %s78
    %p87 = scmp.eq.s32.totalorder %s70, 1
    %p88 = por %p86, %p87
    %p89 = scmp.ne.s32.totalorder %s78, %s79
    %p90 = scmp.eq.s32.totalorder %s70, 0
    %p91 = por %p89, %p90
    %p92 = scmp.ne.s32.totalorder %s78, %s79
    %p93 = scmp.eq.s32.totalorder %s71, 1
    %p94 = por %p92, %p93
    %p96 = scmp.ne.s32.totalorder %s79, %s95
    %p97 = scmp.eq.s32.totalorder %s71, 0
    %p98 = por %p96, %p97
    %s100 = sadd.s32 %s99, 1
    %p103 = scmp.eq.s32.totalorder %s65, 1
    %p104 = scmp.ne.s32.totalorder %s99, %s101
    %p105 = scmp.eq.s32.totalorder %s65, 0
    %p106 = por %p104, %p105
    %p107 = scmp.ne.s32.totalorder %s99, %s101
    %p108 = scmp.eq.s32.totalorder %s70, 1
    %p109 = por %p107, %p108
    %p110 = scmp.ne.s32.totalorder %s101, %s102
    %p111 = scmp.eq.s32.totalorder %s70, 0
    %p112 = por %p110, %p111
    %p113 = scmp.ne.s32.totalorder %s101, %s102
    %p114 = scmp.eq.s32.totalorder %s71, 1
    %p115 = por %p113, %p114
    %p117 = scmp.ne.s32.totalorder %s102, %s116
    %p118 = scmp.eq.s32.totalorder %s71, 0
    %p119 = por %p117, %p118
    %s121 = sadd.s32 %s120, 1
    %p124 = scmp.eq.s32.totalorder %s65, 1
    %p125 = scmp.ne.s32.totalorder %s120, %s122
    %p126 = scmp.eq.s32.totalorder %s65, 0
    %p127 = por %p125, %p126
    %p128 = scmp.ne.s32.totalorder %s120, %s122
    %p129 = scmp.eq.s32.totalorder %s70, 1
    %p130 = por %p128, %p129
    %p131 = scmp.ne.s32.totalorder %s122, %s123
    %p132 = scmp.eq.s32.totalorder %s70, 0
    %p133 = por %p131, %p132
    %p134 = scmp.ne.s32.totalorder %s122, %s123
    %p135 = scmp.eq.s32.totalorder %s71, 1
    %p136 = por %p134, %p135
    %p138 = scmp.ne.s32.totalorder %s123, %s137
    %p139 = scmp.eq.s32.totalorder %s71, 0
    %p140 = por %p138, %p139
    %s142 = sadd.s32 %s141, 1
    %p145 = scmp.eq.s32.totalorder %s65, 1
    %p146 = scmp.ne.s32.totalorder %s141, %s143
    %p147 = scmp.eq.s32.totalorder %s65, 0
    %p148 = por %p146, %p147
    %p149 = scmp.ne.s32.totalorder %s141, %s143
    %p150 = scmp.eq.s32.totalorder %s70, 1
    %p151 = por %p149, %p150
    %p152 = scmp.ne.s32.totalorder %s143, %s144
    %p153 = scmp.eq.s32.totalorder %s70, 0
    %p154 = por %p152, %p153
    %p155 = scmp.ne.s32.totalorder %s143, %s144
    %p156 = scmp.eq.s32.totalorder %s71, 1
    %p157 = por %p155, %p156
    %p159 = scmp.ne.s32.totalorder %s144, %s158
    %p160 = scmp.eq.s32.totalorder %s71, 0
    %p161 = por %p159, %p160
    %s162 = ssub.s32 %s65, %s72
    %p163 = scmp.eq.s32.totalorder %s162, 0
    %s165 = sadd.s32 %s164, 1
    %s166 = scalar_select %p163, %s164, %s165
    %p169 = pneg %p163
    %p170 = scmp.eq.s32.totalorder %s65, 1
    %p171 = por %p169, %p170
    %p172 = scmp.ne.s32.totalorder %s164, %s167
    %p173 = scmp.eq.s32.totalorder %s65, 0
    %p174 = por %p172, %p173
    %p175 = scmp.ne.s32.totalorder %s164, %s167
    %p176 = scmp.eq.s32.totalorder %s70, 1
    %p177 = por %p175, %p176
    %p178 = scmp.ne.s32.totalorder %s167, %s168
    %p179 = scmp.eq.s32.totalorder %s70, 0
    %p180 = por %p178, %p179
    %p181 = scmp.ne.s32.totalorder %s167, %s168
    %p182 = scmp.eq.s32.totalorder %s71, 1
    %p183 = por %p181, %p182
    %p185 = scmp.ne.s32.totalorder %s168, %s184
    %p186 = scmp.eq.s32.totalorder %s71, 0
    %p187 = por %p185, %p186
    %s189 = sadd.s32 %s188, 1
    %p192 = scmp.eq.s32.totalorder %s65, 1
    %p193 = scmp.ne.s32.totalorder %s188, %s190
    %p194 = scmp.eq.s32.totalorder %s65, 0
    %p195 = por %p193, %p194
    %p196 = scmp.ne.s32.totalorder %s188, %s190
    %p197 = scmp.eq.s32.totalorder %s70, 1
    %p198 = por %p196, %p197
    %p199 = scmp.ne.s32.totalorder %s190, %s191
    %p200 = scmp.eq.s32.totalorder %s70, 0
    %p201 = por %p199, %p200
    %p202 = scmp.ne.s32.totalorder %s190, %s191
    %p203 = scmp.eq.s32.totalorder %s71, 1
    %p204 = por %p202, %p203
    %p206 = scmp.ne.s32.totalorder %s191, %s205
    %p207 = scmp.eq.s32.totalorder %s71, 0
    %p208 = por %p206, %p207
    %s210 = sadd.s32 %s209, 1
    %p213 = scmp.eq.s32.totalorder %s65, 1
    %p214 = scmp.ne.s32.totalorder %s209, %s211
    %p215 = scmp.eq.s32.totalorder %s65, 0
    %p216 = por %p214, %p215
    %p217 = scmp.ne.s32.totalorder %s209, %s211
    %p218 = scmp.eq.s32.totalorder %s70, 1
    %p219 = por %p217, %p218
    %p220 = scmp.ne.s32.totalorder %s211, %s212
    %p221 = scmp.eq.s32.totalorder %s70, 0
    %p222 = por %p220, %p221
    %p223 = scmp.ne.s32.totalorder %s211, %s212
    %p224 = scmp.eq.s32.totalorder %s71, 1
    %p225 = por %p223, %p224
    %p227 = scmp.ne.s32.totalorder %s212, %s226
    %p228 = scmp.eq.s32.totalorder %s71, 0
    %p229 = por %p227, %p228
    %s230 = ssub.s32 %s65, %s72
    %p231 = scmp.eq.s32.totalorder %s230, 0
    %s233 = sadd.s32 %s232, 1
    %s234 = scalar_select %p231, %s232, %s233
    %p237 = pneg %p231
    %p238 = scmp.eq.s32.totalorder %s65, 1
    %p239 = por %p237, %p238
    %p240 = scmp.ne.s32.totalorder %s232, %s235
    %p241 = scmp.eq.s32.totalorder %s65, 0
    %p242 = por %p240, %p241
    %p243 = scmp.ne.s32.totalorder %s232, %s235
    %p244 = scmp.eq.s32.totalorder %s70, 1
    %p245 = por %p243, %p244
    %p246 = scmp.ne.s32.totalorder %s235, %s236
    %p247 = scmp.eq.s32.totalorder %s70, 0
    %p248 = por %p246, %p247
    %p249 = scmp.ne.s32.totalorder %s235, %s236
    %p250 = scmp.eq.s32.totalorder %s71, 1
    %p251 = por %p249, %p250
    %p253 = scmp.ne.s32.totalorder %s236, %s252
    %p254 = scmp.eq.s32.totalorder %s71, 0
    %p255 = por %p253, %p254
    %s257 = sadd.s32 %s256, 1
    %p260 = scmp.eq.s32.totalorder %s65, 1
    %p261 = scmp.ne.s32.totalorder %s256, %s258
    %p262 = scmp.eq.s32.totalorder %s65, 0
    %p263 = por %p261, %p262
    %p264 = scmp.ne.s32.totalorder %s256, %s258
    %p265 = scmp.eq.s32.totalorder %s70, 1
    %p266 = por %p264, %p265
    %p267 = scmp.ne.s32.totalorder %s258, %s259
    %p268 = scmp.eq.s32.totalorder %s70, 0
    %p269 = por %p267, %p268
    %p270 = scmp.ne.s32.totalorder %s258, %s259
    %p271 = scmp.eq.s32.totalorder %s71, 1
    %p272 = por %p270, %p271
    %p274 = scmp.ne.s32.totalorder %s259, %s273
    %p275 = scmp.eq.s32.totalorder %s71, 0
    %p276 = por %p274, %p275
    %s278 = sadd.s32 %s277, 1
    %p281 = scmp.eq.s32.totalorder %s65, 1
    %p282 = scmp.ne.s32.totalorder %s277, %s279
    %p283 = scmp.eq.s32.totalorder %s65, 0
    %p284 = por %p282, %p283
    %p285 = scmp.ne.s32.totalorder %s277, %s279
    %p286 = scmp.eq.s32.totalorder %s70, 1
    %p287 = por %p285, %p286
    %p288 = scmp.ne.s32.totalorder %s279, %s280
    %p289 = scmp.eq.s32.totalorder %s70, 0
    %p290 = por %p288, %p289
    %p291 = scmp.ne.s32.totalorder %s279, %s280
    %p292 = scmp.eq.s32.totalorder %s71, 1
    %p293 = por %p291, %p292
    %p295 = scmp.ne.s32.totalorder %s280, %s294
    %p296 = scmp.eq.s32.totalorder %s71, 0
    %p297 = por %p295, %p296
    %s299 = sadd.s32 %s298, 1
    %p302 = scmp.eq.s32.totalorder %s65, 1
    %p303 = scmp.ne.s32.totalorder %s298, %s300
    %p304 = scmp.eq.s32.totalorder %s65, 0
    %p305 = por %p303, %p304
    %p306 = scmp.ne.s32.totalorder %s298, %s300
    %p307 = scmp.eq.s32.totalorder %s70, 1
    %p308 = por %p306, %p307
    %p309 = scmp.ne.s32.totalorder %s300, %s301
    %p310 = scmp.eq.s32.totalorder %s70, 0
    %p311 = por %p309, %p310
    %p312 = scmp.ne.s32.totalorder %s300, %s301
    %p313 = scmp.eq.s32.totalorder %s71, 1
    %p314 = por %p312, %p313
    %p316 = scmp.ne.s32.totalorder %s301, %s315
    %p317 = scmp.eq.s32.totalorder %s71, 0
    %p318 = por %p316, %p317
    %s320 = sadd.s32 %s319, 1
    %p323 = scmp.eq.s32.totalorder %s65, 1
    %p324 = scmp.ne.s32.totalorder %s319, %s321
    %p325 = scmp.eq.s32.totalorder %s65, 0
    %p326 = por %p324, %p325
    %p327 = scmp.ne.s32.totalorder %s319, %s321
    %p328 = scmp.eq.s32.totalorder %s70, 1
    %p329 = por %p327, %p328
    %p330 = scmp.ne.s32.totalorder %s321, %s322
    %p331 = scmp.eq.s32.totalorder %s70, 0
    %p332 = por %p330, %p331
    %p333 = scmp.ne.s32.totalorder %s321, %s322
    %p334 = scmp.eq.s32.totalorder %s71, 1
    %p335 = por %p333, %p334
    %p337 = scmp.ne.s32.totalorder %s322, %s336
    %p338 = scmp.eq.s32.totalorder %s71, 0
    %p339 = por %p337, %p338
    %s341 = sadd.s32 %s340, 1
    %p344 = scmp.eq.s32.totalorder %s65, 1
    %p345 = scmp.ne.s32.totalorder %s340, %s342
    %p346 = scmp.eq.s32.totalorder %s65, 0
    %p347 = por %p345, %p346
    %p348 = scmp.ne.s32.totalorder %s340, %s342
    %p349 = scmp.eq.s32.totalorder %s70, 1
    %p350 = por %p348, %p349
    %p351 = scmp.ne.s32.totalorder %s342, %s343
    %p352 = scmp.eq.s32.totalorder %s70, 0
    %p353 = por %p351, %p352
    %p354 = scmp.ne.s32.totalorder %s342, %s343
    %p355 = scmp.eq.s32.totalorder %s71, 1
    %p356 = por %p354, %p355
    %p358 = scmp.ne.s32.totalorder %s343, %s357
    %p359 = scmp.eq.s32.totalorder %s71, 0
    %p360 = por %p358, %p359
    %s362 = sadd.s32 %s361, 1
    %p365 = scmp.eq.s32.totalorder %s65, 1
    %p366 = scmp.ne.s32.totalorder %s361, %s363
    %p367 = scmp.eq.s32.totalorder %s65, 0
    %p368 = por %p366, %p367
    %p369 = scmp.ne.s32.totalorder %s361, %s363
    %p370 = scmp.eq.s32.totalorder %s70, 1
    %p371 = por %p369, %p370
    %p372 = scmp.ne.s32.totalorder %s363, %s364
    %p373 = scmp.eq.s32.totalorder %s70, 0
    %p374 = por %p372, %p373
    %p375 = scmp.ne.s32.totalorder %s363, %s364
    %p376 = scmp.eq.s32.totalorder %s71, 1
    %p377 = por %p375, %p376
    %p379 = scmp.ne.s32.totalorder %s364, %s378
    %p380 = scmp.eq.s32.totalorder %s71, 0
    %p381 = por %p379, %p380
    %s383 = sadd.s32 %s382, 1
    %p386 = scmp.eq.s32.totalorder %s65, 1
    %p387 = scmp.ne.s32.totalorder %s382, %s384
    %p388 = scmp.eq.s32.totalorder %s65, 0
    %p389 = por %p387, %p388
    %p390 = scmp.ne.s32.totalorder %s382, %s384
    %p391 = scmp.eq.s32.totalorder %s70, 1
    %p392 = por %p390, %p391
    %p393 = scmp.ne.s32.totalorder %s384, %s385
    %p394 = scmp.eq.s32.totalorder %s70, 0
    %p395 = por %p393, %p394
    %p396 = scmp.ne.s32.totalorder %s384, %s385
    %p397 = scmp.eq.s32.totalorder %s71, 1
    %p398 = por %p396, %p397
    %p400 = scmp.ne.s32.totalorder %s385, %s399
    %p401 = scmp.eq.s32.totalorder %s71, 0
    %p402 = por %p400, %p401
    %s404 = sadd.s32 %s403, 1
    %p407 = scmp.eq.s32.totalorder %s65, 1
    %p408 = scmp.ne.s32.totalorder %s403, %s405
    %p409 = scmp.eq.s32.totalorder %s65, 0
    %p410 = por %p408, %p409
    %p411 = scmp.ne.s32.totalorder %s403, %s405
    %p412 = scmp.eq.s32.totalorder %s70, 1
    %p413 = por %p411, %p412
    %p414 = scmp.ne.s32.totalorder %s405, %s406
    %p415 = scmp.eq.s32.totalorder %s70, 0
    %p416 = por %p414, %p415
    %p417 = scmp.ne.s32.totalorder %s405, %s406
    %p418 = scmp.eq.s32.totalorder %s71, 1
    %p419 = por %p417, %p418
    %p421 = scmp.ne.s32.totalorder %s406, %s420
    %p422 = scmp.eq.s32.totalorder %s71, 0
    %p423 = por %p421, %p422
    %s425 = sadd.s32 %s424, 1
    %p428 = scmp.eq.s32.totalorder %s65, 1
    %p429 = scmp.ne.s32.totalorder %s424, %s426
    %p430 = scmp.eq.s32.totalorder %s65, 0
    %p431 = por %p429, %p430
    %p432 = scmp.ne.s32.totalorder %s424, %s426
    %p433 = scmp.eq.s32.totalorder %s70, 1
    %p434 = por %p432, %p433
    %p435 = scmp.ne.s32.totalorder %s426, %s427
    %p436 = scmp.eq.s32.totalorder %s70, 0
    %p437 = por %p435, %p436
    %p438 = scmp.ne.s32.totalorder %s426, %s427
    %p439 = scmp.eq.s32.totalorder %s71, 1
    %p440 = por %p438, %p439
    %p442 = scmp.ne.s32.totalorder %s427, %s441
    %p443 = scmp.eq.s32.totalorder %s71, 0
    %p444 = por %p442, %p443
    %s446 = sadd.s32 %s445, 1
    %p449 = scmp.eq.s32.totalorder %s65, 1
    %p450 = scmp.ne.s32.totalorder %s445, %s447
    %p451 = scmp.eq.s32.totalorder %s65, 0
    %p452 = por %p450, %p451
    %p453 = scmp.ne.s32.totalorder %s445, %s447
    %p454 = scmp.eq.s32.totalorder %s70, 1
    %p455 = por %p453, %p454
    %p456 = scmp.ne.s32.totalorder %s447, %s448
    %p457 = scmp.eq.s32.totalorder %s70, 0
    %p458 = por %p456, %p457
    %p459 = scmp.ne.s32.totalorder %s447, %s448
    %p460 = scmp.eq.s32.totalorder %s71, 1
    %p461 = por %p459, %p460
    %p463 = scmp.ne.s32.totalorder %s448, %s462
    %p464 = scmp.eq.s32.totalorder %s71, 0
    %p465 = por %p463, %p464
    %s467 = sadd.s32 %s466, 1
    %p470 = scmp.eq.s32.totalorder %s65, 1
    %p471 = scmp.ne.s32.totalorder %s466, %s468
    %p472 = scmp.eq.s32.totalorder %s65, 0
    %p473 = por %p471, %p472
    %p474 = scmp.ne.s32.totalorder %s466, %s468
    %p475 = scmp.eq.s32.totalorder %s70, 1
    %p476 = por %p474, %p475
    %p477 = scmp.ne.s32.totalorder %s468, %s469
    %p478 = scmp.eq.s32.totalorder %s70, 0
    %p479 = por %p477, %p478
    %p480 = scmp.ne.s32.totalorder %s468, %s469
    %p481 = scmp.eq.s32.totalorder %s71, 1
    %p482 = por %p480, %p481
    %p484 = scmp.ne.s32.totalorder %s469, %s483
    %p485 = scmp.eq.s32.totalorder %s71, 0
    %p486 = por %p484, %p485
    %s488 = sadd.s32 %s487, 1
    %p491 = scmp.eq.s32.totalorder %s65, 1
    %p492 = scmp.ne.s32.totalorder %s487, %s489
    %p493 = scmp.eq.s32.totalorder %s65, 0
    %p494 = por %p492, %p493
    %p495 = scmp.ne.s32.totalorder %s487, %s489
    %p496 = scmp.eq.s32.totalorder %s70, 1
    %p497 = por %p495, %p496
    %p498 = scmp.ne.s32.totalorder %s489, %s490
    %p499 = scmp.eq.s32.totalorder %s70, 0
    %p500 = por %p498, %p499
    %p501 = scmp.ne.s32.totalorder %s489, %s490
    %p502 = scmp.eq.s32.totalorder %s71, 1
    %p503 = por %p501, %p502
    %p505 = scmp.ne.s32.totalorder %s490, %s504
    %p506 = scmp.eq.s32.totalorder %s71, 0
    %p507 = por %p505, %p506
    %s509 = sadd.s32 %s508, 1
    %p512 = scmp.eq.s32.totalorder %s65, 1
    %p513 = scmp.ne.s32.totalorder %s508, %s510
    %p514 = scmp.eq.s32.totalorder %s65, 0
    %p515 = por %p513, %p514
    %p516 = scmp.ne.s32.totalorder %s508, %s510
    %p517 = scmp.eq.s32.totalorder %s70, 1
    %p518 = por %p516, %p517
    %p519 = scmp.ne.s32.totalorder %s510, %s511
    %p520 = scmp.eq.s32.totalorder %s70, 0
    %p521 = por %p519, %p520
    %p522 = scmp.ne.s32.totalorder %s510, %s511
    %p523 = scmp.eq.s32.totalorder %s71, 1
    %p524 = por %p522, %p523
    %p526 = scmp.ne.s32.totalorder %s511, %s525
    %p527 = scmp.eq.s32.totalorder %s71, 0
    %p528 = por %p526, %p527
    %s530 = sadd.s32 %s529, 1
    %p533 = scmp.eq.s32.totalorder %s65, 1
    %p534 = scmp.ne.s32.totalorder %s529, %s531
    %p535 = scmp.eq.s32.totalorder %s65, 0
    %p536 = por %p534, %p535
    %p537 = scmp.ne.s32.totalorder %s529, %s531
    %p538 = scmp.eq.s32.totalorder %s70, 1
    %p539 = por %p537, %p538
    %p540 = scmp.ne.s32.totalorder %s531, %s532
    %p541 = scmp.eq.s32.totalorder %s70, 0
    %p542 = por %p540, %p541
    %p543 = scmp.ne.s32.totalorder %s531, %s532
    %p544 = scmp.eq.s32.totalorder %s71, 1
    %p545 = por %p543, %p544
    %p547 = scmp.ne.s32.totalorder %s532, %s546
    %p548 = scmp.eq.s32.totalorder %s71, 0
    %p549 = por %p547, %p548
    %s551 = sadd.s32 %s550, 1
    %p554 = scmp.eq.s32.totalorder %s65, 1
    %p555 = scmp.ne.s32.totalorder %s550, %s552
    %p556 = scmp.eq.s32.totalorder %s65, 0
    %p557 = por %p555, %p556
    %p558 = scmp.ne.s32.totalorder %s550, %s552
    %p559 = scmp.eq.s32.totalorder %s70, 1
    %p560 = por %p558, %p559
    %p561 = scmp.ne.s32.totalorder %s552, %s553
    %p562 = scmp.eq.s32.totalorder %s70, 0
    %p563 = por %p561, %p562
    %p564 = scmp.ne.s32.totalorder %s552, %s553
    %p565 = scmp.eq.s32.totalorder %s71, 1
    %p566 = por %p564, %p565
    %p568 = scmp.ne.s32.totalorder %s553, %s567
    %p569 = scmp.eq.s32.totalorder %s71, 0
    %p570 = por %p568, %p569
    %s572 = sadd.s32 %s571, 1
    %p575 = scmp.eq.s32.totalorder %s65, 1
    %p576 = scmp.ne.s32.totalorder %s571, %s573
    %p577 = scmp.eq.s32.totalorder %s65, 0
    %p578 = por %p576, %p577
    %p579 = scmp.ne.s32.totalorder %s571, %s573
    %p580 = scmp.eq.s32.totalorder %s70, 1
    %p581 = por %p579, %p580
    %p582 = scmp.ne.s32.totalorder %s573, %s574
    %p583 = scmp.eq.s32.totalorder %s70, 0
    %p584 = por %p582, %p583
    %p585 = scmp.ne.s32.totalorder %s573, %s574
    %p586 = scmp.eq.s32.totalorder %s71, 1
    %p587 = por %p585, %p586
    %p589 = scmp.ne.s32.totalorder %s574, %s588
    %p590 = scmp.eq.s32.totalorder %s71, 0
    %p591 = por %p589, %p590
    %s593 = sadd.s32 %s592, 1
    %p596 = scmp.eq.s32.totalorder %s65, 1
    %p597 = scmp.ne.s32.totalorder %s592, %s594
    %p598 = scmp.eq.s32.totalorder %s65, 0
    %p599 = por %p597, %p598
    %p600 = scmp.ne.s32.totalorder %s592, %s594
    %p601 = scmp.eq.s32.totalorder %s70, 1
    %p602 = por %p600, %p601
    %p603 = scmp.ne.s32.totalorder %s594, %s595
    %p604 = scmp.eq.s32.totalorder %s70, 0
    %p605 = por %p603, %p604
    %p606 = scmp.ne.s32.totalorder %s594, %s595
    %p607 = scmp.eq.s32.totalorder %s71, 1
    %p608 = por %p606, %p607
    %p610 = scmp.ne.s32.totalorder %s595, %s609
    %p611 = scmp.eq.s32.totalorder %s71, 0
    %p612 = por %p610, %p611
    %s614 = sadd.s32 %s613, 1
    %p617 = scmp.eq.s32.totalorder %s65, 1
    %p618 = scmp.ne.s32.totalorder %s613, %s615
    %p619 = scmp.eq.s32.totalorder %s65, 0
    %p620 = por %p618, %p619
    %p621 = scmp.ne.s32.totalorder %s613, %s615
    %p622 = scmp.eq.s32.totalorder %s70, 1
    %p623 = por %p621, %p622
    %p624 = scmp.ne.s32.totalorder %s615, %s616
    %p625 = scmp.eq.s32.totalorder %s70, 0
    %p626 = por %p624, %p625
    %p627 = scmp.ne.s32.totalorder %s615, %s616
    %p628 = scmp.eq.s32.totalorder %s71, 1
    %p629 = por %p627, %p628
    %p631 = scmp.ne.s32.totalorder %s616, %s630
    %p632 = scmp.eq.s32.totalorder %s71, 0
    %p633 = por %p631, %p632
    %s635 = sadd.s32 %s634, 1
    %p638 = scmp.eq.s32.totalorder %s65, 1
    %p639 = scmp.ne.s32.totalorder %s634, %s636
    %p640 = scmp.eq.s32.totalorder %s65, 0
    %p641 = por %p639, %p640
    %p642 = scmp.ne.s32.totalorder %s634, %s636
    %p643 = scmp.eq.s32.totalorder %s70, 1
    %p644 = por %p642, %p643
    %p645 = scmp.ne.s32.totalorder %s636, %s637
    %p646 = scmp.eq.s32.totalorder %s70, 0
    %p647 = por %p645, %p646
    %p648 = scmp.ne.s32.totalorder %s636, %s637
    %p649 = scmp.eq.s32.totalorder %s71, 1
    %p650 = por %p648, %p649
    %p652 = scmp.ne.s32.totalorder %s637, %s651
    %p653 = scmp.eq.s32.totalorder %s71, 0
    %p654 = por %p652, %p653
    %s656 = sadd.s32 %s655, 1
    %p659 = scmp.eq.s32.totalorder %s65, 1
    %p660 = scmp.ne.s32.totalorder %s655, %s657
    %p661 = scmp.eq.s32.totalorder %s65, 0
    %p662 = por %p660, %p661
    %p663 = scmp.ne.s32.totalorder %s655, %s657
    %p664 = scmp.eq.s32.totalorder %s70, 1
    %p665 = por %p663, %p664
    %p666 = scmp.ne.s32.totalorder %s657, %s658
    %p667 = scmp.eq.s32.totalorder %s70, 0
    %p668 = por %p666, %p667
    %p669 = scmp.ne.s32.totalorder %s657, %s658
    %p670 = scmp.eq.s32.totalorder %s71, 1
    %p671 = por %p669, %p670
    %p673 = scmp.ne.s32.totalorder %s658, %s672
    %p674 = scmp.eq.s32.totalorder %s71, 0
    %p675 = por %p673, %p674
    %s677 = sadd.s32 %s676, 1
    %p680 = scmp.eq.s32.totalorder %s65, 1
    %p681 = scmp.ne.s32.totalorder %s676, %s678
    %p682 = scmp.eq.s32.totalorder %s65, 0
    %p683 = por %p681, %p682
    %p684 = scmp.ne.s32.totalorder %s676, %s678
    %p685 = scmp.eq.s32.totalorder %s70, 1
    %p686 = por %p684, %p685
    %p687 = scmp.ne.s32.totalorder %s678, %s679
    %p688 = scmp.eq.s32.totalorder %s70, 0
    %p689 = por %p687, %p688
    %p690 = scmp.ne.s32.totalorder %s678, %s679
    %p691 = scmp.eq.s32.totalorder %s71, 1
    %p692 = por %p690, %p691
    %p694 = scmp.ne.s32.totalorder %s679, %s693
    %p695 = scmp.eq.s32.totalorder %s71, 0
    %p696 = por %p694, %p695
    %s697 = ssub.s32 %s65, %s72
    %p698 = scmp.eq.s32.totalorder %s697, 0
    %s700 = sadd.s32 %s699, 1
    %s701 = scalar_select %p698, %s699, %s700
    %p704 = pneg %p698
    %p705 = scmp.eq.s32.totalorder %s65, 1
    %p706 = por %p704, %p705
    %p707 = scmp.ne.s32.totalorder %s699, %s702
    %p708 = scmp.eq.s32.totalorder %s65, 0
    %p709 = por %p707, %p708
    %p710 = scmp.ne.s32.totalorder %s699, %s702
    %p711 = scmp.eq.s32.totalorder %s70, 1
    %p712 = por %p710, %p711
    %p713 = scmp.ne.s32.totalorder %s702, %s703
    %p714 = scmp.eq.s32.totalorder %s70, 0
    %p715 = por %p713, %p714
    %p716 = scmp.ne.s32.totalorder %s702, %s703
    %p717 = scmp.eq.s32.totalorder %s71, 1
    %p718 = por %p716, %p717
    %p720 = scmp.ne.s32.totalorder %s703, %s719
    %p721 = scmp.eq.s32.totalorder %s71, 0
    %p722 = por %p720, %p721
    %p723 = scmp.le.s32.totalorder 1, %s65
    %p724 = scmp.lt.s32.totalorder %s65, 3
    %p725 = pnand %p723, %p724
    %p726 = pneg %p725
    // Predicated region
    $region9: #{avgpool_continuous_diffusion_forward.1} parent=5 // pred_check
      _
    $region10: #{avgpool_continuous_diffusion_forward.1} parent=5 // pred_check_branch
      %728 = sbr.rel (%p725) target = $region12
    $region11: #{avgpool_continuous_diffusion_forward.1} parent=5 // pred_region
      %s729 = ssub.s32 %s65, 1
      // Predicated region
      $region13: #{avgpool_continuous_diffusion_forward.1} parent=11 // pred_check
        %p730 = pneg %p112
      $region14: #{avgpool_continuous_diffusion_forward.1} parent=11 // pred_check_branch
        %732 = sbr.rel (%p730) target = $region16
      $region15: #{avgpool_continuous_diffusion_forward.1} parent=11 // pred_region
        _
      $region16: #{avgpool_continuous_diffusion_forward.1} parent=11 // pred_fallthru
        _
      // Predicated region
      $region17: #{avgpool_continuous_diffusion_forward.1} parent=11 // pred_check
        %p733 = pneg %p133
      $region18: #{avgpool_continuous_diffusion_forward.1} parent=11 // pred_check_branch
        %735 = sbr.rel (%p733) target = $region20
      $region19: #{avgpool_continuous_diffusion_forward.1} parent=11 // pred_region
        _
      $region20: #{avgpool_continuous_diffusion_forward.1} parent=11 // pred_fallthru
        _
      // Predicated region
      $region21: #{avgpool_continuous_diffusion_forward.1} parent=11 // pred_check
        %p736 = pneg %p154
      $region22: #{avgpool_continuous_diffusion_forward.1} parent=11 // pred_check_branch
        %738 = sbr.rel (%p736) target = $region24
      $region23: #{avgpool_continuous_diffusion_forward.1} parent=11 // pred_region
        _
      $region24: #{avgpool_continuous_diffusion_forward.1} parent=11 // pred_fallthru
        _
      // Predicated region
      $region25: #{avgpool_continuous_diffusion_forward.1} parent=11 // pred_check
        %p739 = pneg %p201
      $region26: #{avgpool_continuous_diffusion_forward.1} parent=11 // pred_check_branch
        %741 = sbr.rel (%p739) target = $region28
      $region27: #{avgpool_continuous_diffusion_forward.1} parent=11 // pred_region
        _
      $region28: #{avgpool_continuous_diffusion_forward.1} parent=11 // pred_fallthru
        _
      // Predicated region
      $region29: #{avgpool_continuous_diffusion_forward.1} parent=11 // pred_check
        %p742 = pneg %p222
      $region30: #{avgpool_continuous_diffusion_forward.1} parent=11 // pred_check_branch
        %744 = sbr.rel (%p742) target = $region32
      $region31: #{avgpool_continuous_diffusion_forward.1} parent=11 // pred_region
        _
      $region32: #{avgpool_continuous_diffusion_forward.1} parent=11 // pred_fallthru
        _
      // Predicated region
      $region33: #{avgpool_continuous_diffusion_forward.1} parent=11 // pred_check
        %p745 = pneg %p269
      $region34: #{avgpool_continuous_diffusion_forward.1} parent=11 // pred_check_branch
        %747 = sbr.rel (%p745) target = $region36
      $region35: #{avgpool_continuous_diffusion_forward.1} parent=11 // pred_region
        _
      $region36: #{avgpool_continuous_diffusion_forward.1} parent=11 // pred_fallthru
        _
      // Predicated region
      $region37: #{avgpool_continuous_diffusion_forward.1} parent=11 // pred_check
        %p748 = pneg %p290
      $region38: #{avgpool_continuous_diffusion_forward.1} parent=11 // pred_check_branch
        %750 = sbr.rel (%p748) target = $region40
      $region39: #{avgpool_continuous_diffusion_forward.1} parent=11 // pred_region
        _
      $region40: #{avgpool_continuous_diffusion_forward.1} parent=11 // pred_fallthru
        _
      // Predicated region
      $region41: #{avgpool_continuous_diffusion_forward.1} parent=11 // pred_check
        %p751 = pneg %p311
      $region42: #{avgpool_continuous_diffusion_forward.1} parent=11 // pred_check_branch
        %753 = sbr.rel (%p751) target = $region44
      $region43: #{avgpool_continuous_diffusion_forward.1} parent=11 // pred_region
        _
      $region44: #{avgpool_continuous_diffusion_forward.1} parent=11 // pred_fallthru
        _
      // Predicated region
      $region45: #{avgpool_continuous_diffusion_forward.1} parent=11 // pred_check
        %p754 = pneg %p332
      $region46: #{avgpool_continuous_diffusion_forward.1} parent=11 // pred_check_branch
        %756 = sbr.rel (%p754) target = $region48
      $region47: #{avgpool_continuous_diffusion_forward.1} parent=11 // pred_region
        _
      $region48: #{avgpool_continuous_diffusion_forward.1} parent=11 // pred_fallthru
        _
      // Predicated region
      $region49: #{avgpool_continuous_diffusion_forward.1} parent=11 // pred_check
        %p757 = pneg %p353
      $region50: #{avgpool_continuous_diffusion_forward.1} parent=11 // pred_check_branch
        %759 = sbr.rel (%p757) target = $region52
      $region51: #{avgpool_continuous_diffusion_forward.1} parent=11 // pred_region
        _
      $region52: #{avgpool_continuous_diffusion_forward.1} parent=11 // pred_fallthru
        _
      // Predicated region
      $region53: #{avgpool_continuous_diffusion_forward.1} parent=11 // pred_check
        %p760 = pneg %p374
      $region54: #{avgpool_continuous_diffusion_forward.1} parent=11 // pred_check_branch
        %762 = sbr.rel (%p760) target = $region56
      $region55: #{avgpool_continuous_diffusion_forward.1} parent=11 // pred_region
        _
      $region56: #{avgpool_continuous_diffusion_forward.1} parent=11 // pred_fallthru
        _
      // Predicated region
      $region57: #{avgpool_continuous_diffusion_forward.1} parent=11 // pred_check
        %p763 = pneg %p395
      $region58: #{avgpool_continuous_diffusion_forward.1} parent=11 // pred_check_branch
        %765 = sbr.rel (%p763) target = $region60
      $region59: #{avgpool_continuous_diffusion_forward.1} parent=11 // pred_region
        _
      $region60: #{avgpool_continuous_diffusion_forward.1} parent=11 // pred_fallthru
        _
      // Predicated region
      $region61: #{avgpool_continuous_diffusion_forward.1} parent=11 // pred_check
        %p766 = pneg %p416
      $region62: #{avgpool_continuous_diffusion_forward.1} parent=11 // pred_check_branch
        %768 = sbr.rel (%p766) target = $region64
      $region63: #{avgpool_continuous_diffusion_forward.1} parent=11 // pred_region
        _
      $region64: #{avgpool_continuous_diffusion_forward.1} parent=11 // pred_fallthru
        _
      // Predicated region
      $region65: #{avgpool_continuous_diffusion_forward.1} parent=11 // pred_check
        %p769 = pneg %p437
      $region66: #{avgpool_continuous_diffusion_forward.1} parent=11 // pred_check_branch
        %771 = sbr.rel (%p769) target = $region68
      $region67: #{avgpool_continuous_diffusion_forward.1} parent=11 // pred_region
        _
      $region68: #{avgpool_continuous_diffusion_forward.1} parent=11 // pred_fallthru
        _
      // Predicated region
      $region69: #{avgpool_continuous_diffusion_forward.1} parent=11 // pred_check
        %p772 = pneg %p458
      $region70: #{avgpool_continuous_diffusion_forward.1} parent=11 // pred_check_branch
        %774 = sbr.rel (%p772) target = $region72
      $region71: #{avgpool_continuous_diffusion_forward.1} parent=11 // pred_region
        _
      $region72: #{avgpool_continuous_diffusion_forward.1} parent=11 // pred_fallthru
        _
      // Predicated region
      $region73: #{avgpool_continuous_diffusion_forward.1} parent=11 // pred_check
        %p775 = pneg %p479
      $region74: #{avgpool_continuous_diffusion_forward.1} parent=11 // pred_check_branch
        %777 = sbr.rel (%p775) target = $region76
      $region75: #{avgpool_continuous_diffusion_forward.1} parent=11 // pred_region
        _
      $region76: #{avgpool_continuous_diffusion_forward.1} parent=11 // pred_fallthru
        _
      // Predicated region
      $region77: #{avgpool_continuous_diffusion_forward.1} parent=11 // pred_check
        %p778 = pneg %p500
      $region78: #{avgpool_continuous_diffusion_forward.1} parent=11 // pred_check_branch
        %780 = sbr.rel (%p778) target = $region80
      $region79: #{avgpool_continuous_diffusion_forward.1} parent=11 // pred_region
        _
      $region80: #{avgpool_continuous_diffusion_forward.1} parent=11 // pred_fallthru
        _
      // Predicated region
      $region81: #{avgpool_continuous_diffusion_forward.1} parent=11 // pred_check
        %p781 = pneg %p521
      $region82: #{avgpool_continuous_diffusion_forward.1} parent=11 // pred_check_branch
        %783 = sbr.rel (%p781) target = $region84
      $region83: #{avgpool_continuous_diffusion_forward.1} parent=11 // pred_region
        _
      $region84: #{avgpool_continuous_diffusion_forward.1} parent=11 // pred_fallthru
        _
      // Predicated region
      $region85: #{avgpool_continuous_diffusion_forward.1} parent=11 // pred_check
        %p784 = pneg %p542
      $region86: #{avgpool_continuous_diffusion_forward.1} parent=11 // pred_check_branch
        %786 = sbr.rel (%p784) target = $region88
      $region87: #{avgpool_continuous_diffusion_forward.1} parent=11 // pred_region
        _
      $region88: #{avgpool_continuous_diffusion_forward.1} parent=11 // pred_fallthru
        _
      // Predicated region
      $region89: #{avgpool_continuous_diffusion_forward.1} parent=11 // pred_check
        %p787 = pneg %p563
      $region90: #{avgpool_continuous_diffusion_forward.1} parent=11 // pred_check_branch
        %789 = sbr.rel (%p787) target = $region92
      $region91: #{avgpool_continuous_diffusion_forward.1} parent=11 // pred_region
        _
      $region92: #{avgpool_continuous_diffusion_forward.1} parent=11 // pred_fallthru
        _
      // Predicated region
      $region93: #{avgpool_continuous_diffusion_forward.1} parent=11 // pred_check
        %p790 = pneg %p584
      $region94: #{avgpool_continuous_diffusion_forward.1} parent=11 // pred_check_branch
        %792 = sbr.rel (%p790) target = $region96
      $region95: #{avgpool_continuous_diffusion_forward.1} parent=11 // pred_region
        _
      $region96: #{avgpool_continuous_diffusion_forward.1} parent=11 // pred_fallthru
        _
      // Predicated region
      $region97: #{avgpool_continuous_diffusion_forward.1} parent=11 // pred_check
        %p793 = pneg %p605
      $region98: #{avgpool_continuous_diffusion_forward.1} parent=11 // pred_check_branch
        %795 = sbr.rel (%p793) target = $region100
      $region99: #{avgpool_continuous_diffusion_forward.1} parent=11 // pred_region
        _
      $region100: #{avgpool_continuous_diffusion_forward.1} parent=11 // pred_fallthru
        _
      // Predicated region
      $region101: #{avgpool_continuous_diffusion_forward.1} parent=11 // pred_check
        %p796 = pneg %p626
      $region102: #{avgpool_continuous_diffusion_forward.1} parent=11 // pred_check_branch
        %798 = sbr.rel (%p796) target = $region104
      $region103: #{avgpool_continuous_diffusion_forward.1} parent=11 // pred_region
        _
      $region104: #{avgpool_continuous_diffusion_forward.1} parent=11 // pred_fallthru
        _
      // Predicated region
      $region105: #{avgpool_continuous_diffusion_forward.1} parent=11 // pred_check
        %p799 = pneg %p647
      $region106: #{avgpool_continuous_diffusion_forward.1} parent=11 // pred_check_branch
        %801 = sbr.rel (%p799) target = $region108
      $region107: #{avgpool_continuous_diffusion_forward.1} parent=11 // pred_region
        _
      $region108: #{avgpool_continuous_diffusion_forward.1} parent=11 // pred_fallthru
        _
      // Predicated region
      $region109: #{avgpool_continuous_diffusion_forward.1} parent=11 // pred_check
        %p802 = pneg %p668
      $region110: #{avgpool_continuous_diffusion_forward.1} parent=11 // pred_check_branch
        %804 = sbr.rel (%p802) target = $region112
      $region111: #{avgpool_continuous_diffusion_forward.1} parent=11 // pred_region
        _
      $region112: #{avgpool_continuous_diffusion_forward.1} parent=11 // pred_fallthru
        _
      // Predicated region
      $region113: #{avgpool_continuous_diffusion_forward.1} parent=11 // pred_check
        %p805 = pneg %p689
      $region114: #{avgpool_continuous_diffusion_forward.1} parent=11 // pred_check_branch
        %807 = sbr.rel (%p805) target = $region116
      $region115: #{avgpool_continuous_diffusion_forward.1} parent=11 // pred_region
        _
      $region116: #{avgpool_continuous_diffusion_forward.1} parent=11 // pred_fallthru
        _
    $region12: #{avgpool_continuous_diffusion_forward.1} parent=5 // pred_fallthru
      _
    %p808 = scmp.lt.s32.totalorder %s65, 2
    // Predicated region
    $region117: #{avgpool_continuous_diffusion_forward.1} parent=5 // pred_check
      %p809 = pneg %p808
    $region118: #{avgpool_continuous_diffusion_forward.1} parent=5 // pred_check_branch
      %811 = sbr.rel (%p809) target = $region120
    $region119: #{avgpool_continuous_diffusion_forward.1} parent=5 // pred_region
      // Predicated region
      $region121: #{avgpool_continuous_diffusion_forward.1} parent=119 // pred_check
        %p812 = pneg %p85
      $region122: #{avgpool_continuous_diffusion_forward.1} parent=119 // pred_check_branch
        %814 = sbr.rel (%p812) target = $region124
      $region123: #{avgpool_continuous_diffusion_forward.1} parent=119 // pred_region
        %p815 = scmp.lt.s32.totalorder %s65, 1
        %s816 = scalar_select %p815, %s65, 1
        %s817 = smul.addr %s816, 8
        %s818 = smul.addr %s817, 4
        %s819 = scalar_lea.vmem %s1, %s818
      $region124: #{avgpool_continuous_diffusion_forward.1} parent=119 // pred_fallthru
        _
      // Predicated region
      $region125: #{avgpool_continuous_diffusion_forward.1} parent=119 // pred_check
        %p820 = pneg %p174
      $region126: #{avgpool_continuous_diffusion_forward.1} parent=119 // pred_check_branch
        %822 = sbr.rel (%p820) target = $region128
      $region127: #{avgpool_continuous_diffusion_forward.1} parent=119 // pred_region
        %p823 = scmp.lt.s32.totalorder %s65, 1
        %s824 = scalar_select %p823, %s65, 1
        %s825 = smul.addr %s824, 8
        %s826 = scalar_lea.vmem %s9, %s825
      $region128: #{avgpool_continuous_diffusion_forward.1} parent=119 // pred_fallthru
        _
      // Predicated region
      $region129: #{avgpool_continuous_diffusion_forward.1} parent=119 // pred_check
        %p827 = pneg %p242
      $region130: #{avgpool_continuous_diffusion_forward.1} parent=119 // pred_check_branch
        %829 = sbr.rel (%p827) target = $region132
      $region131: #{avgpool_continuous_diffusion_forward.1} parent=119 // pred_region
        %p830 = scmp.lt.s32.totalorder %s65, 1
        %s831 = scalar_select %p830, %s65, 1
        %s832 = scalar_lea.vmem %s15, %s831
      $region132: #{avgpool_continuous_diffusion_forward.1} parent=119 // pred_fallthru
        _
    $region120: #{avgpool_continuous_diffusion_forward.1} parent=5 // pred_fallthru
      _
    %p833 = scmp.le.s32.totalorder 1, %s65
    %p834 = scmp.lt.s32.totalorder %s65, 3
    %p835 = pnand %p833, %p834
    %p836 = pneg %p835
    // Predicated region
    $region133: #{avgpool_continuous_diffusion_forward.1} parent=5 // pred_check
      _
    $region134: #{avgpool_continuous_diffusion_forward.1} parent=5 // pred_check_branch
      %838 = sbr.rel (%p835) target = $region136
    $region135: #{avgpool_continuous_diffusion_forward.1} parent=5 // pred_region
      %s839 = ssub.s32 %s65, 1
      %p840 = scmp.lt.s32.totalorder %s70, 1
      %s841 = scalar_select %p840, %s70, 1
      %s842 = smul.addr %s841, 8
      %s843 = smul.addr %s842, 4
      %s844 = scalar_lea.vmem %s1, %s843
      %p845 = pneg %p91
      %p846 = pneg %p88
      %p847 = pneg %p112
      %p848 = pneg %p109
      %p849 = pneg %p133
      %p850 = pneg %p130
      %p851 = pneg %p154
      %p852 = pneg %p151
      %p853 = scmp.lt.s32.totalorder %s70, 1
      %s854 = scalar_select %p853, %s70, 1
      %s855 = smul.addr %s854, 8
      %s856 = scalar_lea.vmem %s9, %s855
      %p857 = pneg %p180
      %p858 = pneg %p177
      %p859 = pneg %p201
      %p860 = pneg %p198
      %p861 = pneg %p222
      %p862 = pneg %p219
      %p863 = scmp.lt.s32.totalorder %s70, 1
      %s864 = scalar_select %p863, %s70, 1
      %s865 = scalar_lea.vmem %s15, %s864
      %p866 = pneg %p248
      %p867 = pneg %p245
      %p868 = pneg %p269
      %p869 = pneg %p266
      %p870 = pneg %p290
      %p871 = pneg %p287
      %p872 = pneg %p311
      %p873 = pneg %p308
      %p874 = pneg %p332
      %p875 = pneg %p329
      %p876 = pneg %p353
      %p877 = pneg %p350
      %p878 = pneg %p374
      %p879 = pneg %p371
      %p880 = pneg %p395
      %p881 = pneg %p392
      %p882 = pneg %p416
      %p883 = pneg %p413
      %p884 = pneg %p437
      %p885 = pneg %p434
      %p886 = pneg %p458
      %p887 = pneg %p455
      %p888 = pneg %p479
      %p889 = pneg %p476
      %p890 = pneg %p500
      %p891 = pneg %p497
      %p892 = pneg %p521
      %p893 = pneg %p518
      %p894 = pneg %p542
      %p895 = pneg %p539
      %p896 = pneg %p563
      %p897 = pneg %p560
      %p898 = pneg %p584
      %p899 = pneg %p581
      %p900 = pneg %p605
      %p901 = pneg %p602
      %p902 = pneg %p626
      %p903 = pneg %p623
      %p904 = pneg %p647
      %p905 = pneg %p644
      %p906 = pneg %p668
      %p907 = pneg %p665
      %p908 = pneg %p689
      %p909 = pneg %p686
      %p910 = pneg %p715
      %p911 = pneg %p712
      %p912 = scmp.lt.s32.totalorder %s70, 1
      %s913 = scalar_select %p912, %s70, 1
      %s914 = smul.addr %s913, 8
      %s915 = scalar_lea.vmem %s59, %s914
      %p916 = scmp.lt.s32.totalorder %s70, 1
      %s917 = scalar_select %p916, %s70, 1
      %s918 = smul.addr %s917, 8
      %s919 = smul.addr %s918, 4
      %s920 = scalar_lea.vmem %s1, %s919
      %p921 = scmp.lt.s32.totalorder %s70, 1
      %s922 = scalar_select %p921, %s70, 1
      %s923 = smul.addr %s922, 8
      %s924 = scalar_lea.vmem %s9, %s923
      %p925 = scmp.lt.s32.totalorder %s70, 1
      %s926 = scalar_select %p925, %s70, 1
      %s927 = scalar_lea.vmem %s15, %s926
      %p928 = scmp.lt.s32.totalorder %s70, 1
      %s929 = scalar_select %p928, %s70, 1
      %s930 = smul.addr %s929, 8
      %s931 = scalar_lea.vmem %s59, %s930
      %v932 = vld [vmem:[%s5] sm:$0xff]
      %v933 = vld [vmem:[%s5 + $0x8] sm:$0xff]
      %v934 = vld [vmem:[%s5 + $0x10] sm:$0xff]
      %v935 = vld [vmem:[%s5 + $0x18] sm:$0xff]
      %v936 = vld [vmem:[%s920] sm:$0xff]
      %v937 = vld [vmem:[%s920 + $0x8] sm:$0xff]
      %v938 = vld [vmem:[%s920 + $0x10] sm:$0xff]
      %v939 = vld [vmem:[%s920 + $0x18] sm:$0xff]
      %v940 = vld [vmem:[%s7] sm:$0xff]
      %v941 = vld [vmem:[%s7 + $0x8] sm:$0xff]
      %v942 = vld [vmem:[%s7 + $0x10] sm:$0xff]
      %v943 = vld [vmem:[%s7 + $0x18] sm:$0xff]
      %945 = vset.pattern.permute.xlu0 0
      %946 = vperm.xlu0 %945, %v940
      %v947 = vpop.permute.xlu0 %946
      %950 = vset.pattern.permute.xlu0 0
      %951 = vperm.xlu0 %950, %v941
      %v952 = vpop.permute.xlu0 %951
      %955 = vset.pattern.permute.xlu0 0
      %956 = vperm.xlu0 %955, %v942
      %v957 = vpop.permute.xlu0 %956
      %960 = vset.pattern.permute.xlu0 0
      %961 = vperm.xlu0 %960, %v943
      %v962 = vpop.permute.xlu0 %961
      %968 = vst [vmem:[#allocation1] ss:$2 sm:$0xff] %v936
      %s969 = scalar_lea.vmem [#allocation1], 16
      %970 = vst [vmem:[%s969] ss:$2 sm:$0xff] %v937
      %s971 = scalar_lea.vmem [#allocation1], 32
      %972 = vst [vmem:[%s971] ss:$2 sm:$0xff] %v938
      %s973 = scalar_lea.vmem [#allocation1], 48
      %974 = vst [vmem:[%s973] ss:$2 sm:$0xff] %v939
      %v975 = vld.sshfl [vmem:[#allocation1] sm:$0xff pattern:$0x75316420]
      %v976 = vld.sshfl [vmem:[#allocation1 + $0x8] sm:$0xff pattern:$0x75316420]
      %v977 = vld.sshfl [vmem:[#allocation1 + $0x10] sm:$0xff pattern:$0x75316420]
      %v978 = vld.sshfl [vmem:[#allocation1 + $0x18] sm:$0xff pattern:$0x75316420]
      %v979 = vld.sshfl [vmem:[#allocation1 + $0x20] sm:$0xff pattern:$0x75316420]
      %v980 = vld.sshfl [vmem:[#allocation1 + $0x28] sm:$0xff pattern:$0x75316420]
      %v981 = vld.sshfl [vmem:[#allocation1 + $0x30] sm:$0xff pattern:$0x75316420]
      %v982 = vld.sshfl [vmem:[#allocation1 + $0x38] sm:$0xff pattern:$0x75316420]
      %vm983 = vcmask 31744
      %v985 = vsel %vm983, %v932, 0
      %v988 = vsel %vm983, %v933, 0
      %v991 = vsel %vm983, %v934, 0
      %v994 = vsel %vm983, %v935, 0
      %vm996 = vcmask 1043456
      %v997 = vsel %vm996, %v975, 0
      %v999 = vsel %vm996, %v976, 0
      %v1001 = vsel %vm996, %v977, 0
      %v1003 = vsel %vm996, %v978, 0
      %v1005 = vsel %vm996, %v979, 0
      %v1007 = vsel %vm996, %v980, 0
      %v1009 = vsel %vm996, %v981, 0
      %v1011 = vsel %vm996, %v982, 0
      %1013 = vmatpush.msra.mxu0 0.0
      %1014 = vmatpush.msra.mxu0 0.0
      %1015 = vmatpush.msra.mxu0 0.0
      %1016 = vmatpush.msra.mxu0 0.0
      %1017 = vmatpush.msra.mxu0 0.0
      %1018 = vmatpush.msra.mxu0 0.0
      %1019 = vmatpush.msra.mxu0 0.0
      %1020 = vmatpush.msra.mxu0 0.0
      %1021 = vmatpush.msra.mxu0 0.0
      %1022 = vmatpush.msra.mxu0 0.0
      %1023 = vmatpush.msra.mxu0 0.0
      %1024 = vmatpush.msra.mxu0 0.0
      %1025 = vmatpush.msra.mxu0 0.0
      %1026 = vmatpush.msra.mxu0 0.0
      %1027 = vmatpush.msra.mxu0 0.0
      %1028 = vmatpush.msra.mxu0 %v997
      %1029 = vmatmul.f32.gmra.mxu0 %v985
      %v1030 = vpop.f32.mrf.mxu0
      %v1031 = vadd.f32 %v947, %v1030
      %1032 = vmatmul.f32.gmra.mxu0 %v988
      %v1033 = vpop.f32.mrf.mxu0
      %v1034 = vadd.f32 %v952, %v1033
      %1035 = vmatmul.f32.gmra.mxu0 %v991
      %v1036 = vpop.f32.mrf.mxu0
      %v1037 = vadd.f32 %v957, %v1036
      %1038 = vmatmul.f32.gmra.mxu0 %v994
      %v1039 = vpop.f32.mrf.mxu0
      %v1040 = vadd.f32 %v962, %v1039
      %1041 = vdwg.mxu0
      %1042 = vmatpush.msra.mxu0 0.0
      %1043 = vmatpush.msra.mxu0 0.0
      %1044 = vmatpush.msra.mxu0 0.0
      %1045 = vmatpush.msra.mxu0 0.0
      %1046 = vmatpush.msra.mxu0 0.0
      %1047 = vmatpush.msra.mxu0 0.0
      %1048 = vmatpush.msra.mxu0 0.0
      %1049 = vmatpush.msra.mxu0 0.0
      %1050 = vmatpush.msra.mxu0 0.0
      %1051 = vmatpush.msra.mxu0 0.0
      %1052 = vmatpush.msra.mxu0 0.0
      %1053 = vmatpush.msra.mxu0 0.0
      %1054 = vmatpush.msra.mxu0 0.0
      %1055 = vmatpush.msra.mxu0 0.0
      %1056 = vmatpush.msra.mxu0 0.0
      %1057 = vmatpush.msra.mxu0 %v999
      %1058 = vmatmul.f32.gmra.mxu0 %v985
      %v1059 = vpop.f32.mrf.mxu0
      %v1060 = vadd.f32 %v947, %v1059
      %1061 = vmatmul.f32.gmra.mxu0 %v988
      %v1062 = vpop.f32.mrf.mxu0
      %v1063 = vadd.f32 %v952, %v1062
      %1064 = vmatmul.f32.gmra.mxu0 %v991
      %v1065 = vpop.f32.mrf.mxu0
      %v1066 = vadd.f32 %v957, %v1065
      %1067 = vmatmul.f32.gmra.mxu0 %v994
      %v1068 = vpop.f32.mrf.mxu0
      %v1069 = vadd.f32 %v962, %v1068
      %1070 = vdwg.mxu0
      %1071 = vmatpush.msra.mxu0 0.0
      %1072 = vmatpush.msra.mxu0 0.0
      %1073 = vmatpush.msra.mxu0 0.0
      %1074 = vmatpush.msra.mxu0 0.0
      %1075 = vmatpush.msra.mxu0 0.0
      %1076 = vmatpush.msra.mxu0 0.0
      %1077 = vmatpush.msra.mxu0 0.0
      %1078 = vmatpush.msra.mxu0 0.0
      %1079 = vmatpush.msra.mxu0 0.0
      %1080 = vmatpush.msra.mxu0 0.0
      %1081 = vmatpush.msra.mxu0 0.0
      %1082 = vmatpush.msra.mxu0 0.0
      %1083 = vmatpush.msra.mxu0 0.0
      %1084 = vmatpush.msra.mxu0 0.0
      %1085 = vmatpush.msra.mxu0 0.0
      %1086 = vmatpush.msra.mxu0 %v1001
      %1087 = vmatmul.f32.gmra.mxu0 %v985
      %v1088 = vpop.f32.mrf.mxu0
      %v1089 = vadd.f32 %v947, %v1088
      %1090 = vmatmul.f32.gmra.mxu0 %v988
      %v1091 = vpop.f32.mrf.mxu0
      %v1092 = vadd.f32 %v952, %v1091
      %1093 = vmatmul.f32.gmra.mxu0 %v991
      %v1094 = vpop.f32.mrf.mxu0
      %v1095 = vadd.f32 %v957, %v1094
      %1096 = vmatmul.f32.gmra.mxu0 %v994
      %v1097 = vpop.f32.mrf.mxu0
      %v1098 = vadd.f32 %v962, %v1097
      %1099 = vdwg.mxu0
      %1100 = vmatpush.msra.mxu0 0.0
      %1101 = vmatpush.msra.mxu0 0.0
      %1102 = vmatpush.msra.mxu0 0.0
      %1103 = vmatpush.msra.mxu0 0.0
      %1104 = vmatpush.msra.mxu0 0.0
      %1105 = vmatpush.msra.mxu0 0.0
      %1106 = vmatpush.msra.mxu0 0.0
      %1107 = vmatpush.msra.mxu0 0.0
      %1108 = vmatpush.msra.mxu0 0.0
      %1109 = vmatpush.msra.mxu0 0.0
      %1110 = vmatpush.msra.mxu0 0.0
      %1111 = vmatpush.msra.mxu0 0.0
      %1112 = vmatpush.msra.mxu0 0.0
      %1113 = vmatpush.msra.mxu0 0.0
      %1114 = vmatpush.msra.mxu0 0.0
      %1115 = vmatpush.msra.mxu0 %v1003
      %1116 = vmatmul.f32.gmra.mxu0 %v985
      %v1117 = vpop.f32.mrf.mxu0
      %v1118 = vadd.f32 %v947, %v1117
      %1119 = vmatmul.f32.gmra.mxu0 %v988
      %v1120 = vpop.f32.mrf.mxu0
      %v1121 = vadd.f32 %v952, %v1120
      %1122 = vmatmul.f32.gmra.mxu0 %v991
      %v1123 = vpop.f32.mrf.mxu0
      %v1124 = vadd.f32 %v957, %v1123
      %1125 = vmatmul.f32.gmra.mxu0 %v994
      %v1126 = vpop.f32.mrf.mxu0
      %v1127 = vadd.f32 %v962, %v1126
      %1128 = vdwg.mxu0
      %1129 = vmatpush.msra.mxu0 0.0
      %1130 = vmatpush.msra.mxu0 0.0
      %1131 = vmatpush.msra.mxu0 0.0
      %1132 = vmatpush.msra.mxu0 0.0
      %1133 = vmatpush.msra.mxu0 0.0
      %1134 = vmatpush.msra.mxu0 0.0
      %1135 = vmatpush.msra.mxu0 0.0
      %1136 = vmatpush.msra.mxu0 0.0
      %1137 = vmatpush.msra.mxu0 0.0
      %1138 = vmatpush.msra.mxu0 0.0
      %1139 = vmatpush.msra.mxu0 0.0
      %1140 = vmatpush.msra.mxu0 0.0
      %1141 = vmatpush.msra.mxu0 0.0
      %1142 = vmatpush.msra.mxu0 0.0
      %1143 = vmatpush.msra.mxu0 0.0
      %1144 = vmatpush.msra.mxu0 %v1005
      %1145 = vmatmul.f32.gmra.mxu0 %v985
      %v1146 = vpop.f32.mrf.mxu0
      %v1147 = vadd.f32 %v947, %v1146
      %1148 = vmatmul.f32.gmra.mxu0 %v988
      %v1149 = vpop.f32.mrf.mxu0
      %v1150 = vadd.f32 %v952, %v1149
      %1151 = vmatmul.f32.gmra.mxu0 %v991
      %v1152 = vpop.f32.mrf.mxu0
      %v1153 = vadd.f32 %v957, %v1152
      %1154 = vmatmul.f32.gmra.mxu0 %v994
      %v1155 = vpop.f32.mrf.mxu0
      %v1156 = vadd.f32 %v962, %v1155
      %1157 = vdwg.mxu0
      %1158 = vmatpush.msra.mxu0 0.0
      %1159 = vmatpush.msra.mxu0 0.0
      %1160 = vmatpush.msra.mxu0 0.0
      %1161 = vmatpush.msra.mxu0 0.0
      %1162 = vmatpush.msra.mxu0 0.0
      %1163 = vmatpush.msra.mxu0 0.0
      %1164 = vmatpush.msra.mxu0 0.0
      %1165 = vmatpush.msra.mxu0 0.0
      %1166 = vmatpush.msra.mxu0 0.0
      %1167 = vmatpush.msra.mxu0 0.0
      %1168 = vmatpush.msra.mxu0 0.0
      %1169 = vmatpush.msra.mxu0 0.0
      %1170 = vmatpush.msra.mxu0 0.0
      %1171 = vmatpush.msra.mxu0 0.0
      %1172 = vmatpush.msra.mxu0 0.0
      %1173 = vmatpush.msra.mxu0 %v1007
      %1174 = vmatmul.f32.gmra.mxu0 %v985
      %v1175 = vpop.f32.mrf.mxu0
      %v1176 = vadd.f32 %v947, %v1175
      %1177 = vmatmul.f32.gmra.mxu0 %v988
      %v1178 = vpop.f32.mrf.mxu0
      %v1179 = vadd.f32 %v952, %v1178
      %1180 = vmatmul.f32.gmra.mxu0 %v991
      %v1181 = vpop.f32.mrf.mxu0
      %v1182 = vadd.f32 %v957, %v1181
      %1183 = vmatmul.f32.gmra.mxu0 %v994
      %v1184 = vpop.f32.mrf.mxu0
      %v1185 = vadd.f32 %v962, %v1184
      %1186 = vdwg.mxu0
      %1187 = vmatpush.msra.mxu0 0.0
      %1188 = vmatpush.msra.mxu0 0.0
      %1189 = vmatpush.msra.mxu0 0.0
      %1190 = vmatpush.msra.mxu0 0.0
      %1191 = vmatpush.msra.mxu0 0.0
      %1192 = vmatpush.msra.mxu0 0.0
      %1193 = vmatpush.msra.mxu0 0.0
      %1194 = vmatpush.msra.mxu0 0.0
      %1195 = vmatpush.msra.mxu0 0.0
      %1196 = vmatpush.msra.mxu0 0.0
      %1197 = vmatpush.msra.mxu0 0.0
      %1198 = vmatpush.msra.mxu0 0.0
      %1199 = vmatpush.msra.mxu0 0.0
      %1200 = vmatpush.msra.mxu0 0.0
      %1201 = vmatpush.msra.mxu0 0.0
      %1202 = vmatpush.msra.mxu0 %v1009
      %1203 = vmatmul.f32.gmra.mxu0 %v985
      %v1204 = vpop.f32.mrf.mxu0
      %v1205 = vadd.f32 %v947, %v1204
      %1206 = vmatmul.f32.gmra.mxu0 %v988
      %v1207 = vpop.f32.mrf.mxu0
      %v1208 = vadd.f32 %v952, %v1207
      %1209 = vmatmul.f32.gmra.mxu0 %v991
      %v1210 = vpop.f32.mrf.mxu0
      %v1211 = vadd.f32 %v957, %v1210
      %1212 = vmatmul.f32.gmra.mxu0 %v994
      %v1213 = vpop.f32.mrf.mxu0
      %v1214 = vadd.f32 %v962, %v1213
      %1215 = vdwg.mxu0
      %1216 = vmatpush.msra.mxu0 0.0
      %1217 = vmatpush.msra.mxu0 0.0
      %1218 = vmatpush.msra.mxu0 0.0
      %1219 = vmatpush.msra.mxu0 0.0
      %1220 = vmatpush.msra.mxu0 0.0
      %1221 = vmatpush.msra.mxu0 0.0
      %1222 = vmatpush.msra.mxu0 0.0
      %1223 = vmatpush.msra.mxu0 0.0
      %1224 = vmatpush.msra.mxu0 0.0
      %1225 = vmatpush.msra.mxu0 0.0
      %1226 = vmatpush.msra.mxu0 0.0
      %1227 = vmatpush.msra.mxu0 0.0
      %1228 = vmatpush.msra.mxu0 0.0
      %1229 = vmatpush.msra.mxu0 0.0
      %1230 = vmatpush.msra.mxu0 0.0
      %1231 = vmatpush.msra.mxu0 %v1011
      %1232 = vmatmul.f32.gmra.mxu0 %v985
      %v1233 = vpop.f32.mrf.mxu0
      %v1234 = vadd.f32 %v947, %v1233
      %1235 = vmatmul.f32.gmra.mxu0 %v988
      %v1236 = vpop.f32.mrf.mxu0
      %v1237 = vadd.f32 %v952, %v1236
      %1238 = vmatmul.f32.gmra.mxu0 %v991
      %v1239 = vpop.f32.mrf.mxu0
      %v1240 = vadd.f32 %v957, %v1239
      %1241 = vmatmul.f32.gmra.mxu0 %v994
      %v1242 = vpop.f32.mrf.mxu0
      %v1243 = vadd.f32 %v962, %v1242
      %1244 = vdwg.mxu0
      %v1245 = vmul.f32 %v1031, %v1031
      %v1246 = vmul.f32 %v1060, %v1060
      %v1247 = vmul.f32 %v1089, %v1089
      %v1248 = vmul.f32 %v1118, %v1118
      %v1249 = vmul.f32 %v1147, %v1147
      %v1250 = vmul.f32 %v1176, %v1176
      %v1251 = vmul.f32 %v1205, %v1205
      %v1252 = vmul.f32 %v1234, %v1234
      %v1253 = vmul.f32 %v1034, %v1034
      %v1254 = vmul.f32 %v1063, %v1063
      %v1255 = vmul.f32 %v1092, %v1092
      %v1256 = vmul.f32 %v1121, %v1121
      %v1257 = vmul.f32 %v1150, %v1150
      %v1258 = vmul.f32 %v1179, %v1179
      %v1259 = vmul.f32 %v1208, %v1208
      %v1260 = vmul.f32 %v1237, %v1237
      %v1261 = vmul.f32 %v1037, %v1037
      %v1262 = vmul.f32 %v1066, %v1066
      %v1263 = vmul.f32 %v1095, %v1095
      %v1264 = vmul.f32 %v1124, %v1124
      %v1265 = vmul.f32 %v1153, %v1153
      %v1266 = vmul.f32 %v1182, %v1182
      %v1267 = vmul.f32 %v1211, %v1211
      %v1268 = vmul.f32 %v1240, %v1240
      %v1269 = vmul.f32 %v1040, %v1040
      %v1270 = vmul.f32 %v1069, %v1069
      %v1271 = vmul.f32 %v1098, %v1098
      %v1272 = vmul.f32 %v1127, %v1127
      %v1273 = vmul.f32 %v1156, %v1156
      %v1274 = vmul.f32 %v1185, %v1185
      %v1275 = vmul.f32 %v1214, %v1214
      %v1276 = vmul.f32 %v1243, %v1243
      %v1277 = vmul.f32 %v1031, %v1245
      %v1278 = vmul.f32 %v1060, %v1246
      %v1279 = vmul.f32 %v1089, %v1247
      %v1280 = vmul.f32 %v1118, %v1248
      %v1281 = vmul.f32 %v1147, %v1249
      %v1282 = vmul.f32 %v1176, %v1250
      %v1283 = vmul.f32 %v1205, %v1251
      %v1284 = vmul.f32 %v1234, %v1252
      %v1285 = vmul.f32 %v1034, %v1253
      %v1286 = vmul.f32 %v1063, %v1254
      %v1287 = vmul.f32 %v1092, %v1255
      %v1288 = vmul.f32 %v1121, %v1256
      %v1289 = vmul.f32 %v1150, %v1257
      %v1290 = vmul.f32 %v1179, %v1258
      %v1291 = vmul.f32 %v1208, %v1259
      %v1292 = vmul.f32 %v1237, %v1260
      %v1293 = vmul.f32 %v1037, %v1261
      %v1294 = vmul.f32 %v1066, %v1262
      %v1295 = vmul.f32 %v1095, %v1263
      %v1296 = vmul.f32 %v1124, %v1264
      %v1297 = vmul.f32 %v1153, %v1265
      %v1298 = vmul.f32 %v1182, %v1266
      %v1299 = vmul.f32 %v1211, %v1267
      %v1300 = vmul.f32 %v1240, %v1268
      %v1301 = vmul.f32 %v1040, %v1269
      %v1302 = vmul.f32 %v1069, %v1270
      %v1303 = vmul.f32 %v1098, %v1271
      %v1304 = vmul.f32 %v1127, %v1272
      %v1305 = vmul.f32 %v1156, %v1273
      %v1306 = vmul.f32 %v1185, %v1274
      %v1307 = vmul.f32 %v1214, %v1275
      %v1308 = vmul.f32 %v1243, %v1276
      %v1309 = vmul.f32 %v1277, 0.044715
      %v1310 = vmul.f32 %v1278, 0.044715
      %v1311 = vmul.f32 %v1279, 0.044715
      %v1312 = vmul.f32 %v1280, 0.044715
      %v1313 = vmul.f32 %v1281, 0.044715
      %v1314 = vmul.f32 %v1282, 0.044715
      %v1315 = vmul.f32 %v1283, 0.044715
      %v1316 = vmul.f32 %v1284, 0.044715
      %v1317 = vmul.f32 %v1285, 0.044715
      %v1318 = vmul.f32 %v1286, 0.044715
      %v1319 = vmul.f32 %v1287, 0.044715
      %v1320 = vmul.f32 %v1288, 0.044715
      %v1321 = vmul.f32 %v1289, 0.044715
      %v1322 = vmul.f32 %v1290, 0.044715
      %v1323 = vmul.f32 %v1291, 0.044715
      %v1324 = vmul.f32 %v1292, 0.044715
      %v1325 = vmul.f32 %v1293, 0.044715
      %v1326 = vmul.f32 %v1294, 0.044715
      %v1327 = vmul.f32 %v1295, 0.044715
      %v1328 = vmul.f32 %v1296, 0.044715
      %v1329 = vmul.f32 %v1297, 0.044715
      %v1330 = vmul.f32 %v1298, 0.044715
      %v1331 = vmul.f32 %v1299, 0.044715
      %v1332 = vmul.f32 %v1300, 0.044715
      %v1333 = vmul.f32 %v1301, 0.044715
      %v1334 = vmul.f32 %v1302, 0.044715
      %v1335 = vmul.f32 %v1303, 0.044715
      %v1336 = vmul.f32 %v1304, 0.044715
      %v1337 = vmul.f32 %v1305, 0.044715
      %v1338 = vmul.f32 %v1306, 0.044715
      %v1339 = vmul.f32 %v1307, 0.044715
      %v1340 = vmul.f32 %v1308, 0.044715
      %v1341 = vadd.f32 %v1031, %v1309
      %v1342 = vadd.f32 %v1060, %v1310
      %v1343 = vadd.f32 %v1089, %v1311
      %v1344 = vadd.f32 %v1118, %v1312
      %v1345 = vadd.f32 %v1147, %v1313
      %v1346 = vadd.f32 %v1176, %v1314
      %v1347 = vadd.f32 %v1205, %v1315
      %v1348 = vadd.f32 %v1234, %v1316
      %v1349 = vadd.f32 %v1034, %v1317
      %v1350 = vadd.f32 %v1063, %v1318
      %v1351 = vadd.f32 %v1092, %v1319
      %v1352 = vadd.f32 %v1121, %v1320
      %v1353 = vadd.f32 %v1150, %v1321
      %v1354 = vadd.f32 %v1179, %v1322
      %v1355 = vadd.f32 %v1208, %v1323
      %v1356 = vadd.f32 %v1237, %v1324
      %v1357 = vadd.f32 %v1037, %v1325
      %v1358 = vadd.f32 %v1066, %v1326
      %v1359 = vadd.f32 %v1095, %v1327
      %v1360 = vadd.f32 %v1124, %v1328
      %v1361 = vadd.f32 %v1153, %v1329
      %v1362 = vadd.f32 %v1182, %v1330
      %v1363 = vadd.f32 %v1211, %v1331
      %v1364 = vadd.f32 %v1240, %v1332
      %v1365 = vadd.f32 %v1040, %v1333
      %v1366 = vadd.f32 %v1069, %v1334
      %v1367 = vadd.f32 %v1098, %v1335
      %v1368 = vadd.f32 %v1127, %v1336
      %v1369 = vadd.f32 %v1156, %v1337
      %v1370 = vadd.f32 %v1185, %v1338
      %v1371 = vadd.f32 %v1214, %v1339
      %v1372 = vadd.f32 %v1243, %v1340
      %v1373 = vmul.f32 %v1341, 0.7978846
      %v1374 = vmul.f32 %v1342, 0.7978846
      %v1375 = vmul.f32 %v1343, 0.7978846
      %v1376 = vmul.f32 %v1344, 0.7978846
      %v1377 = vmul.f32 %v1345, 0.7978846
      %v1378 = vmul.f32 %v1346, 0.7978846
      %v1379 = vmul.f32 %v1347, 0.7978846
      %v1380 = vmul.f32 %v1348, 0.7978846
      %v1381 = vmul.f32 %v1349, 0.7978846
      %v1382 = vmul.f32 %v1350, 0.7978846
      %v1383 = vmul.f32 %v1351, 0.7978846
      %v1384 = vmul.f32 %v1352, 0.7978846
      %v1385 = vmul.f32 %v1353, 0.7978846
      %v1386 = vmul.f32 %v1354, 0.7978846
      %v1387 = vmul.f32 %v1355, 0.7978846
      %v1388 = vmul.f32 %v1356, 0.7978846
      %v1389 = vmul.f32 %v1357, 0.7978846
      %v1390 = vmul.f32 %v1358, 0.7978846
      %v1391 = vmul.f32 %v1359, 0.7978846
      %v1392 = vmul.f32 %v1360, 0.7978846
      %v1393 = vmul.f32 %v1361, 0.7978846
      %v1394 = vmul.f32 %v1362, 0.7978846
      %v1395 = vmul.f32 %v1363, 0.7978846
      %v1396 = vmul.f32 %v1364, 0.7978846
      %v1397 = vmul.f32 %v1365, 0.7978846
      %v1398 = vmul.f32 %v1366, 0.7978846
      %v1399 = vmul.f32 %v1367, 0.7978846
      %v1400 = vmul.f32 %v1368, 0.7978846
      %v1401 = vmul.f32 %v1369, 0.7978846
      %v1402 = vmul.f32 %v1370, 0.7978846
      %v1403 = vmul.f32 %v1371, 0.7978846
      %v1404 = vmul.f32 %v1372, 0.7978846
      %v1405 = vtanh.pop %v1373
      %v1406 = vtanh.pop %v1374
      %v1407 = vtanh.pop %v1375
      %v1408 = vtanh.pop %v1376
      %v1409 = vtanh.pop %v1377
      %v1410 = vtanh.pop %v1378
      %v1411 = vtanh.pop %v1379
      %v1412 = vtanh.pop %v1380
      %v1413 = vtanh.pop %v1381
      %v1414 = vtanh.pop %v1382
      %v1415 = vtanh.pop %v1383
      %v1416 = vtanh.pop %v1384
      %v1417 = vtanh.pop %v1385
      %v1418 = vtanh.pop %v1386
      %v1419 = vtanh.pop %v1387
      %v1420 = vtanh.pop %v1388
      %v1421 = vtanh.pop %v1389
      %v1422 = vtanh.pop %v1390
      %v1423 = vtanh.pop %v1391
      %v1424 = vtanh.pop %v1392
      %v1425 = vtanh.pop %v1393
      %v1426 = vtanh.pop %v1394
      %v1427 = vtanh.pop %v1395
      %v1428 = vtanh.pop %v1396
      %v1429 = vtanh.pop %v1397
      %v1430 = vtanh.pop %v1398
      %v1431 = vtanh.pop %v1399
      %v1432 = vtanh.pop %v1400
      %v1433 = vtanh.pop %v1401
      %v1434 = vtanh.pop %v1402
      %v1435 = vtanh.pop %v1403
      %v1436 = vtanh.pop %v1404
      %v1437 = vadd.f32 %v1405, 1.0
      %v1438 = vadd.f32 %v1406, 1.0
      %v1439 = vadd.f32 %v1407, 1.0
      %v1440 = vadd.f32 %v1408, 1.0
      %v1441 = vadd.f32 %v1409, 1.0
      %v1442 = vadd.f32 %v1410, 1.0
      %v1443 = vadd.f32 %v1411, 1.0
      %v1444 = vadd.f32 %v1412, 1.0
      %v1445 = vadd.f32 %v1413, 1.0
      %v1446 = vadd.f32 %v1414, 1.0
      %v1447 = vadd.f32 %v1415, 1.0
      %v1448 = vadd.f32 %v1416, 1.0
      %v1449 = vadd.f32 %v1417, 1.0
      %v1450 = vadd.f32 %v1418, 1.0
      %v1451 = vadd.f32 %v1419, 1.0
      %v1452 = vadd.f32 %v1420, 1.0
      %v1453 = vadd.f32 %v1421, 1.0
      %v1454 = vadd.f32 %v1422, 1.0
      %v1455 = vadd.f32 %v1423, 1.0
      %v1456 = vadd.f32 %v1424, 1.0
      %v1457 = vadd.f32 %v1425, 1.0
      %v1458 = vadd.f32 %v1426, 1.0
      %v1459 = vadd.f32 %v1427, 1.0
      %v1460 = vadd.f32 %v1428, 1.0
      %v1461 = vadd.f32 %v1429, 1.0
      %v1462 = vadd.f32 %v1430, 1.0
      %v1463 = vadd.f32 %v1431, 1.0
      %v1464 = vadd.f32 %v1432, 1.0
      %v1465 = vadd.f32 %v1433, 1.0
      %v1466 = vadd.f32 %v1434, 1.0
      %v1467 = vadd.f32 %v1435, 1.0
      %v1468 = vadd.f32 %v1436, 1.0
      %v1469 = vmul.f32 %v1437, 0.5
      %v1470 = vmul.f32 %v1438, 0.5
      %v1471 = vmul.f32 %v1439, 0.5
      %v1472 = vmul.f32 %v1440, 0.5
      %v1473 = vmul.f32 %v1441, 0.5
      %v1474 = vmul.f32 %v1442, 0.5
      %v1475 = vmul.f32 %v1443, 0.5
      %v1476 = vmul.f32 %v1444, 0.5
      %v1477 = vmul.f32 %v1445, 0.5
      %v1478 = vmul.f32 %v1446, 0.5
      %v1479 = vmul.f32 %v1447, 0.5
      %v1480 = vmul.f32 %v1448, 0.5
      %v1481 = vmul.f32 %v1449, 0.5
      %v1482 = vmul.f32 %v1450, 0.5
      %v1483 = vmul.f32 %v1451, 0.5
      %v1484 = vmul.f32 %v1452, 0.5
      %v1485 = vmul.f32 %v1453, 0.5
      %v1486 = vmul.f32 %v1454, 0.5
      %v1487 = vmul.f32 %v1455, 0.5
      %v1488 = vmul.f32 %v1456, 0.5
      %v1489 = vmul.f32 %v1457, 0.5
      %v1490 = vmul.f32 %v1458, 0.5
      %v1491 = vmul.f32 %v1459, 0.5
      %v1492 = vmul.f32 %v1460, 0.5
      %v1493 = vmul.f32 %v1461, 0.5
      %v1494 = vmul.f32 %v1462, 0.5
      %v1495 = vmul.f32 %v1463, 0.5
      %v1496 = vmul.f32 %v1464, 0.5
      %v1497 = vmul.f32 %v1465, 0.5
      %v1498 = vmul.f32 %v1466, 0.5
      %v1499 = vmul.f32 %v1467, 0.5
      %v1500 = vmul.f32 %v1468, 0.5
      %v1501 = vmul.f32 %v1031, %v1469
      %v1502 = vmul.f32 %v1060, %v1470
      %v1503 = vmul.f32 %v1089, %v1471
      %v1504 = vmul.f32 %v1118, %v1472
      %v1505 = vmul.f32 %v1147, %v1473
      %v1506 = vmul.f32 %v1176, %v1474
      %v1507 = vmul.f32 %v1205, %v1475
      %v1508 = vmul.f32 %v1234, %v1476
      %v1509 = vmul.f32 %v1034, %v1477
      %v1510 = vmul.f32 %v1063, %v1478
      %v1511 = vmul.f32 %v1092, %v1479
      %v1512 = vmul.f32 %v1121, %v1480
      %v1513 = vmul.f32 %v1150, %v1481
      %v1514 = vmul.f32 %v1179, %v1482
      %v1515 = vmul.f32 %v1208, %v1483
      %v1516 = vmul.f32 %v1237, %v1484
      %v1517 = vmul.f32 %v1037, %v1485
      %v1518 = vmul.f32 %v1066, %v1486
      %v1519 = vmul.f32 %v1095, %v1487
      %v1520 = vmul.f32 %v1124, %v1488
      %v1521 = vmul.f32 %v1153, %v1489
      %v1522 = vmul.f32 %v1182, %v1490
      %v1523 = vmul.f32 %v1211, %v1491
      %v1524 = vmul.f32 %v1240, %v1492
      %v1525 = vmul.f32 %v1040, %v1493
      %v1526 = vmul.f32 %v1069, %v1494
      %v1527 = vmul.f32 %v1098, %v1495
      %v1528 = vmul.f32 %v1127, %v1496
      %v1529 = vmul.f32 %v1156, %v1497
      %v1530 = vmul.f32 %v1185, %v1498
      %v1531 = vmul.f32 %v1214, %v1499
      %v1532 = vmul.f32 %v1243, %v1500
      %v1533 = vld [vmem:[%s3] sm:$0xff]
      %v1534 = vld [vmem:[%s3 + $0x8] sm:$0xff]
      %v1535 = vld [vmem:[%s3 + $0x10] sm:$0xff]
      %v1536 = vld [vmem:[%s3 + $0x18] sm:$0xff]
      %1541 = vst [vmem:[#allocation1] ss:$2 sm:$0xff] %v1533
      %s1542 = scalar_lea.vmem [#allocation1], 16
      %1543 = vst [vmem:[%s1542] ss:$2 sm:$0xff] %v1534
      %s1544 = scalar_lea.vmem [#allocation1], 32
      %1545 = vst [vmem:[%s1544] ss:$2 sm:$0xff] %v1535
      %s1546 = scalar_lea.vmem [#allocation1], 48
      %1547 = vst [vmem:[%s1546] ss:$2 sm:$0xff] %v1536
      %v1548 = vld.sshfl [vmem:[#allocation1] sm:$0xff pattern:$0x75316420]
      %v1549 = vld.sshfl [vmem:[#allocation1 + $0x8] sm:$0xff pattern:$0x75316420]
      %v1550 = vld.sshfl [vmem:[#allocation1 + $0x10] sm:$0xff pattern:$0x75316420]
      %v1551 = vld.sshfl [vmem:[#allocation1 + $0x18] sm:$0xff pattern:$0x75316420]
      %v1552 = vld.sshfl [vmem:[#allocation1 + $0x20] sm:$0xff pattern:$0x75316420]
      %v1553 = vld.sshfl [vmem:[#allocation1 + $0x28] sm:$0xff pattern:$0x75316420]
      %v1554 = vld.sshfl [vmem:[#allocation1 + $0x30] sm:$0xff pattern:$0x75316420]
      %v1555 = vld.sshfl [vmem:[#allocation1 + $0x38] sm:$0xff pattern:$0x75316420]
      %1564 = vmatpush.xpose.msra.mxu0 0.0
      %1565 = vmatpush.xpose.msra.mxu0 0.0
      %1566 = vmatpush.xpose.msra.mxu0 0.0
      %1567 = vmatpush.xpose.msra.mxu0 0.0
      %1568 = vmatpush.xpose.msra.mxu0 0.0
      %1569 = vmatpush.xpose.msra.mxu0 0.0
      %1570 = vmatpush.xpose.msra.mxu0 0.0
      %1571 = vmatpush.xpose.msra.mxu0 0.0
      %1572 = vmatpush.xpose.msra.mxu0 0.0
      %1573 = vmatpush.xpose.msra.mxu0 0.0
      %1574 = vmatpush.xpose.msra.mxu0 0.0
      %1575 = vmatpush.xpose.msra.mxu0 0.0
      %1576 = vmatpush.xpose.msra.mxu0 %v1525
      %1577 = vmatpush.xpose.msra.mxu0 %v1517
      %1578 = vmatpush.xpose.msra.mxu0 %v1509
      %1579 = vmatpush.xpose.msra.mxu0 %v1501
      %1580 = vmatmul.f32.gmra.mxu0 %v1548
      %v1581 = vpop.f32.mrf.mxu0
      %v1582 = vadd.f32 0.0, %v1581
      %1583 = vdwg.mxu0
      %1584 = vmatpush.xpose.msra.mxu0 0.0
      %1585 = vmatpush.xpose.msra.mxu0 0.0
      %1586 = vmatpush.xpose.msra.mxu0 0.0
      %1587 = vmatpush.xpose.msra.mxu0 0.0
      %1588 = vmatpush.xpose.msra.mxu0 0.0
      %1589 = vmatpush.xpose.msra.mxu0 0.0
      %1590 = vmatpush.xpose.msra.mxu0 0.0
      %1591 = vmatpush.xpose.msra.mxu0 0.0
      %1592 = vmatpush.xpose.msra.mxu0 0.0
      %1593 = vmatpush.xpose.msra.mxu0 0.0
      %1594 = vmatpush.xpose.msra.mxu0 0.0
      %1595 = vmatpush.xpose.msra.mxu0 0.0
      %1596 = vmatpush.xpose.msra.mxu0 %v1526
      %1597 = vmatpush.xpose.msra.mxu0 %v1518
      %1598 = vmatpush.xpose.msra.mxu0 %v1510
      %1599 = vmatpush.xpose.msra.mxu0 %v1502
      %1600 = vmatmul.f32.gmra.mxu0 %v1549
      %v1601 = vpop.f32.mrf.mxu0
      %v1602 = vadd.f32 %v1582, %v1601
      %1603 = vdwg.mxu0
      %1604 = vmatpush.xpose.msra.mxu0 0.0
      %1605 = vmatpush.xpose.msra.mxu0 0.0
      %1606 = vmatpush.xpose.msra.mxu0 0.0
      %1607 = vmatpush.xpose.msra.mxu0 0.0
      %1608 = vmatpush.xpose.msra.mxu0 0.0
      %1609 = vmatpush.xpose.msra.mxu0 0.0
      %1610 = vmatpush.xpose.msra.mxu0 0.0
      %1611 = vmatpush.xpose.msra.mxu0 0.0
      %1612 = vmatpush.xpose.msra.mxu0 0.0
      %1613 = vmatpush.xpose.msra.mxu0 0.0
      %1614 = vmatpush.xpose.msra.mxu0 0.0
      %1615 = vmatpush.xpose.msra.mxu0 0.0
      %1616 = vmatpush.xpose.msra.mxu0 %v1527
      %1617 = vmatpush.xpose.msra.mxu0 %v1519
      %1618 = vmatpush.xpose.msra.mxu0 %v1511
      %1619 = vmatpush.xpose.msra.mxu0 %v1503
      %1620 = vmatmul.f32.gmra.mxu0 %v1550
      %v1621 = vpop.f32.mrf.mxu0
      %v1622 = vadd.f32 %v1602, %v1621
      %1623 = vdwg.mxu0
      %1624 = vmatpush.xpose.msra.mxu0 0.0
      %1625 = vmatpush.xpose.msra.mxu0 0.0
      %1626 = vmatpush.xpose.msra.mxu0 0.0
      %1627 = vmatpush.xpose.msra.mxu0 0.0
      %1628 = vmatpush.xpose.msra.mxu0 0.0
      %1629 = vmatpush.xpose.msra.mxu0 0.0
      %1630 = vmatpush.xpose.msra.mxu0 0.0
      %1631 = vmatpush.xpose.msra.mxu0 0.0
      %1632 = vmatpush.xpose.msra.mxu0 0.0
      %1633 = vmatpush.xpose.msra.mxu0 0.0
      %1634 = vmatpush.xpose.msra.mxu0 0.0
      %1635 = vmatpush.xpose.msra.mxu0 0.0
      %1636 = vmatpush.xpose.msra.mxu0 %v1528
      %1637 = vmatpush.xpose.msra.mxu0 %v1520
      %1638 = vmatpush.xpose.msra.mxu0 %v1512
      %1639 = vmatpush.xpose.msra.mxu0 %v1504
      %1640 = vmatmul.f32.gmra.mxu0 %v1551
      %v1641 = vpop.f32.mrf.mxu0
      %v1642 = vadd.f32 %v1622, %v1641
      %1643 = vdwg.mxu0
      %1644 = vmatpush.xpose.msra.mxu0 0.0
      %1645 = vmatpush.xpose.msra.mxu0 0.0
      %1646 = vmatpush.xpose.msra.mxu0 0.0
      %1647 = vmatpush.xpose.msra.mxu0 0.0
      %1648 = vmatpush.xpose.msra.mxu0 0.0
      %1649 = vmatpush.xpose.msra.mxu0 0.0
      %1650 = vmatpush.xpose.msra.mxu0 0.0
      %1651 = vmatpush.xpose.msra.mxu0 0.0
      %1652 = vmatpush.xpose.msra.mxu0 0.0
      %1653 = vmatpush.xpose.msra.mxu0 0.0
      %1654 = vmatpush.xpose.msra.mxu0 0.0
      %1655 = vmatpush.xpose.msra.mxu0 0.0
      %1656 = vmatpush.xpose.msra.mxu0 %v1529
      %1657 = vmatpush.xpose.msra.mxu0 %v1521
      %1658 = vmatpush.xpose.msra.mxu0 %v1513
      %1659 = vmatpush.xpose.msra.mxu0 %v1505
      %1660 = vmatmul.f32.gmra.mxu0 %v1552
      %v1661 = vpop.f32.mrf.mxu0
      %v1662 = vadd.f32 %v1642, %v1661
      %1663 = vdwg.mxu0
      %1664 = vmatpush.xpose.msra.mxu0 0.0
      %1665 = vmatpush.xpose.msra.mxu0 0.0
      %1666 = vmatpush.xpose.msra.mxu0 0.0
      %1667 = vmatpush.xpose.msra.mxu0 0.0
      %1668 = vmatpush.xpose.msra.mxu0 0.0
      %1669 = vmatpush.xpose.msra.mxu0 0.0
      %1670 = vmatpush.xpose.msra.mxu0 0.0
      %1671 = vmatpush.xpose.msra.mxu0 0.0
      %1672 = vmatpush.xpose.msra.mxu0 0.0
      %1673 = vmatpush.xpose.msra.mxu0 0.0
      %1674 = vmatpush.xpose.msra.mxu0 0.0
      %1675 = vmatpush.xpose.msra.mxu0 0.0
      %1676 = vmatpush.xpose.msra.mxu0 %v1530
      %1677 = vmatpush.xpose.msra.mxu0 %v1522
      %1678 = vmatpush.xpose.msra.mxu0 %v1514
      %1679 = vmatpush.xpose.msra.mxu0 %v1506
      %1680 = vmatmul.f32.gmra.mxu0 %v1553
      %v1681 = vpop.f32.mrf.mxu0
      %v1682 = vadd.f32 %v1662, %v1681
      %1683 = vdwg.mxu0
      %1684 = vmatpush.xpose.msra.mxu0 0.0
      %1685 = vmatpush.xpose.msra.mxu0 0.0
      %1686 = vmatpush.xpose.msra.mxu0 0.0
      %1687 = vmatpush.xpose.msra.mxu0 0.0
      %1688 = vmatpush.xpose.msra.mxu0 0.0
      %1689 = vmatpush.xpose.msra.mxu0 0.0
      %1690 = vmatpush.xpose.msra.mxu0 0.0
      %1691 = vmatpush.xpose.msra.mxu0 0.0
      %1692 = vmatpush.xpose.msra.mxu0 0.0
      %1693 = vmatpush.xpose.msra.mxu0 0.0
      %1694 = vmatpush.xpose.msra.mxu0 0.0
      %1695 = vmatpush.xpose.msra.mxu0 0.0
      %1696 = vmatpush.xpose.msra.mxu0 %v1531
      %1697 = vmatpush.xpose.msra.mxu0 %v1523
      %1698 = vmatpush.xpose.msra.mxu0 %v1515
      %1699 = vmatpush.xpose.msra.mxu0 %v1507
      %1700 = vmatmul.f32.gmra.mxu0 %v1554
      %v1701 = vpop.f32.mrf.mxu0
      %v1702 = vadd.f32 %v1682, %v1701
      %1703 = vdwg.mxu0
      %1704 = vmatpush.xpose.msra.mxu0 0.0
      %1705 = vmatpush.xpose.msra.mxu0 0.0
      %1706 = vmatpush.xpose.msra.mxu0 0.0
      %1707 = vmatpush.xpose.msra.mxu0 0.0
      %1708 = vmatpush.xpose.msra.mxu0 0.0
      %1709 = vmatpush.xpose.msra.mxu0 0.0
      %1710 = vmatpush.xpose.msra.mxu0 0.0
      %1711 = vmatpush.xpose.msra.mxu0 0.0
      %1712 = vmatpush.xpose.msra.mxu0 0.0
      %1713 = vmatpush.xpose.msra.mxu0 0.0
      %1714 = vmatpush.xpose.msra.mxu0 0.0
      %1715 = vmatpush.xpose.msra.mxu0 0.0
      %1716 = vmatpush.xpose.msra.mxu0 %v1532
      %1717 = vmatpush.xpose.msra.mxu0 %v1524
      %1718 = vmatpush.xpose.msra.mxu0 %v1516
      %1719 = vmatpush.xpose.msra.mxu0 %v1508
      %1720 = vmatmul.f32.gmra.mxu0 %v1555
      %v1721 = vpop.f32.mrf.mxu0
      %v1722 = vadd.f32 %v1702, %v1721
      %1723 = vdwg.mxu0
      %v1724 = vld [vmem:[%s924] sm:$0xff]
      %v1725 = vld [vmem:[%s11] sm:$0x1f]
      %v1726 = vld [vmem:[%s13] sm:$0x1]
      %v1728 = vperm.slane %v1726, 0
      %vm1730 = vcmask 39936
      %v1732 = vsel %vm1730, %v1724, 0
      %vm1734 = vcmask 1044480
      %v1736 = vsel %vm1734, %v1725, 0
      %1738 = vmatpush.msra.mxu0 0.0
      %1739 = vmatpush.msra.mxu0 0.0
      %1740 = vmatpush.msra.mxu0 0.0
      %1741 = vmatpush.msra.mxu0 0.0
      %1742 = vmatpush.msra.mxu0 0.0
      %1743 = vmatpush.msra.mxu0 0.0
      %1744 = vmatpush.msra.mxu0 0.0
      %1745 = vmatpush.msra.mxu0 0.0
      %1746 = vmatpush.msra.mxu0 0.0
      %1747 = vmatpush.msra.mxu0 0.0
      %1748 = vmatpush.msra.mxu0 0.0
      %1749 = vmatpush.msra.mxu0 0.0
      %1750 = vmatpush.msra.mxu0 0.0
      %1751 = vmatpush.msra.mxu0 0.0
      %1752 = vmatpush.msra.mxu0 0.0
      %1753 = vmatpush.msra.mxu0 %v1736
      %1754 = vmatmul.f32.gmra.mxu0 %v1732
      %v1755 = vpop.f32.mrf.mxu0
      %v1756 = vadd.f32 %v1728, %v1755
      %1757 = vdwg.mxu0
      %v1758 = vld [vmem:[%s927] sm:$0x1]
      %v1759 = vld [vmem:[%s17] sm:$0xff]
      %v1760 = vld [vmem:[%s17 + $0x8] sm:$0xff]
      %v1761 = vld [vmem:[%s17 + $0x10] sm:$0xff]
      %v1762 = vld [vmem:[%s17 + $0x18] sm:$0xff]
      %v1763 = vld [vmem:[%s19] sm:$0x1]
      %vm1764 = vcmask 261120
      %v1766 = vsel %vm1764, %v1758, 0
      %1768 = vmatpush.msra.mxu0 0.0
      %1769 = vmatpush.msra.mxu0 0.0
      %1770 = vmatpush.msra.mxu0 0.0
      %1771 = vmatpush.msra.mxu0 0.0
      %1772 = vmatpush.msra.mxu0 0.0
      %1773 = vmatpush.msra.mxu0 0.0
      %1774 = vmatpush.msra.mxu0 0.0
      %1775 = vmatpush.msra.mxu0 0.0
      %1776 = vmatpush.msra.mxu0 0.0
      %1777 = vmatpush.msra.mxu0 0.0
      %1778 = vmatpush.msra.mxu0 0.0
      %1779 = vmatpush.msra.mxu0 0.0
      %1780 = vmatpush.msra.mxu0 %v1762
      %1781 = vmatpush.msra.mxu0 %v1761
      %1782 = vmatpush.msra.mxu0 %v1760
      %1783 = vmatpush.msra.mxu0 %v1759
      %1784 = vmatmul.f32.gmra.mxu0 %v1766
      %v1785 = vpop.f32.mrf.mxu0
      %v1786 = vadd.f32 %v1763, %v1785
      %1787 = vdwg.mxu0
      %v1788 = vmul.f32 %v1786, %v1786
      %v1789 = vmul.f32 %v1786, %v1788
      %v1790 = vmul.f32 %v1789, 0.044715
      %v1791 = vadd.f32 %v1786, %v1790
      %v1792 = vmul.f32 %v1791, 0.7978846
      %v1793 = vtanh.pop %v1792
      %v1794 = vadd.f32 %v1793, 1.0
      %v1795 = vmul.f32 %v1794, 0.5
      %v1796 = vmul.f32 %v1786, %v1795
      %v1798 = vrot.slane %v1722, 7
      %vm1800 = vcmask 1040384
      %v1801 = vsel %vm1800, %v1796, %v1798
      %v1802 = vld [vmem:[%s21] sm:$0xff]
      %v1803 = vld [vmem:[%s21 + $0x8] sm:$0x1f]
      %v1804 = vadd.f32 %v1756, %v1802
      %v1805 = vadd.f32 %v1801, %v1803
      %v1806 = vld [vmem:[%s23] sm:$0xff]
      %v1807 = vld [vmem:[%s23 + $0x8] sm:$0xff]
      %v1808 = vld [vmem:[%s23 + $0x10] sm:$0xff]
      %v1809 = vld [vmem:[%s23 + $0x18] sm:$0xff]
      %v1810 = vld [vmem:[%s25] sm:$0x1]
      %v1812 = vperm.slane %v1810, 0
      %v1815 = vsel %vm1764, %v1804, 0
      %v1818 = vsel %vm1764, %v1805, 0
      %1820 = vmatpush.msra.mxu0 0.0
      %1821 = vmatpush.msra.mxu0 0.0
      %1822 = vmatpush.msra.mxu0 0.0
      %1823 = vmatpush.msra.mxu0 0.0
      %1824 = vmatpush.msra.mxu0 0.0
      %1825 = vmatpush.msra.mxu0 0.0
      %1826 = vmatpush.msra.mxu0 0.0
      %1827 = vmatpush.msra.mxu0 0.0
      %1828 = vmatpush.msra.mxu0 0.0
      %1829 = vmatpush.msra.mxu0 0.0
      %1830 = vmatpush.msra.mxu0 0.0
      %1831 = vmatpush.msra.mxu0 0.0
      %1832 = vmatpush.msra.mxu0 %v1809
      %1833 = vmatpush.msra.mxu0 %v1808
      %1834 = vmatpush.msra.mxu0 %v1807
      %1835 = vmatpush.msra.mxu0 %v1806
      %1836 = vmatmul.f32.gmra.mxu0 %v1815
      %v1837 = vpop.f32.mrf.mxu0
      %v1838 = vadd.f32 %v1812, %v1837
      %1839 = vmatmul.f32.gmra.mxu0 %v1818
      %v1840 = vpop.f32.mrf.mxu0
      %v1841 = vadd.f32 %v1812, %v1840
      %1842 = vdwg.mxu0
      %1845 = vrot.lane.b32.xlu0 %v1838, 96
      %v1846 = vpop.permute.xlu0 %1845
      %1847 = vrot.lane.b32.xlu0 %v1841, 96
      %v1848 = vpop.permute.xlu0 %1847
      %vm1849 = vcmask 64512
      %v1850 = vsel %vm1849, %v1838, 0
      %v1852 = vsel %vm1849, %v1841, 0
      %v1854 = vsel %vm1849, %v1846, 0
      %v1856 = vsel %vm1849, %v1848, 0
      %1858 = vmatpush.xpose.msra.mxu0 0.0
      %1859 = vmatpush.xpose.msra.mxu0 0.0
      %1860 = vmatpush.xpose.msra.mxu0 0.0
      %1861 = vmatpush.xpose.msra.mxu0 0.0
      %1862 = vmatpush.xpose.msra.mxu0 0.0
      %1863 = vmatpush.xpose.msra.mxu0 0.0
      %1864 = vmatpush.xpose.msra.mxu0 0.0
      %1865 = vmatpush.xpose.msra.mxu0 0.0
      %1866 = vmatpush.xpose.msra.mxu0 0.0
      %1867 = vmatpush.xpose.msra.mxu0 0.0
      %1868 = vmatpush.xpose.msra.mxu0 0.0
      %1869 = vmatpush.xpose.msra.mxu0 0.0
      %1870 = vmatpush.xpose.msra.mxu0 0.0
      %1871 = vmatpush.xpose.msra.mxu0 0.0
      %1872 = vmatpush.xpose.msra.mxu0 %v1856
      %1873 = vmatpush.xpose.msra.mxu0 %v1854
      %1874 = vmatmul.f32.gmra.mxu0 %v1850
      %v1875 = vpop.f32.mrf.mxu0
      %v1876 = vadd.f32 0.0, %v1875
      %1877 = vmatmul.f32.gmra.mxu0 %v1852
      %v1878 = vpop.f32.mrf.mxu0
      %v1879 = vadd.f32 0.0, %v1878
      %1880 = vdwg.mxu0
      %v1881 = vmul.f32 %v1876, 0.35355338
      %v1882 = vmul.f32 %v1879, 0.35355338
      %vm1883 = vcmask 105472
      %v1884 = vsel %vm1883, %v1881, -inf
      %1885 = vmax.xlane.f32.xlu0 %v1884
      %v1886 = vpop.xlane.xlu0 %1885
      %vm1887 = vcmask 102400
      %v1888 = vsel %vm1887, %v1882, -inf
      %1889 = vmax.xlane.f32.xlu0 %v1888
      %v1890 = vpop.xlane.xlu0 %1889
      %v1891 = vsub.f32 %v1881, %v1886
      %v1892 = vsub.f32 %v1882, %v1890
      %v1893 = vmul.f32 %v1891, 1.442695
      %v1894 = vpow.pop %v1893
      %v1895 = vmul.f32 %v1892, 1.442695
      %v1896 = vpow.pop %v1895
      %v1897 = vsel %vm1883, %v1894, 0.0
      %1898 = vadd.xlane.f32.xlu0 %v1897
      %v1899 = vpop.xlane.xlu0 %1898
      %v1900 = vsel %vm1887, %v1896, 0.0
      %1901 = vadd.xlane.f32.xlu0 %v1900
      %v1902 = vpop.xlane.xlu0 %1901
      %v1903 = vrcp.pop %v1899
      %v1904 = vrcp.pop %v1902
      %v1905 = vmul.f32 %v1894, %v1903
      %v1906 = vmul.f32 %v1896, %v1904
      %1907 = vrot.lane.b32.xlu0 %v1838, 64
      %v1908 = vpop.permute.xlu0 %1907
      %1909 = vrot.lane.b32.xlu0 %v1841, 64
      %v1910 = vpop.permute.xlu0 %1909
      %v1913 = vsel %vm1883, %v1905, 0
      %v1916 = vsel %vm1883, %v1906, 0
      %v1918 = vsel %vm1734, %v1910, 0
      %1920 = vmatpush.msra.mxu0 0.0
      %1921 = vmatpush.msra.mxu0 0.0
      %1922 = vmatpush.msra.mxu0 0.0
      %1923 = vmatpush.msra.mxu0 0.0
      %1924 = vmatpush.msra.mxu0 0.0
      %1925 = vmatpush.msra.mxu0 0.0
      %1926 = vmatpush.msra.mxu0 0.0
      %1927 = vmatpush.msra.mxu0 0.0
      %1928 = vmatpush.msra.mxu0 0.0
      %1929 = vmatpush.msra.mxu0 0.0
      %1930 = vmatpush.msra.mxu0 0.0
      %1931 = vmatpush.msra.mxu0 0.0
      %1932 = vmatpush.msra.mxu0 0.0
      %1933 = vmatpush.msra.mxu0 0.0
      %1934 = vmatpush.msra.mxu0 %v1918
      %1935 = vmatpush.msra.mxu0 %v1908
      %1936 = vmatmul.f32.gmra.mxu0 %v1913
      %v1937 = vpop.f32.mrf.mxu0
      %v1938 = vadd.f32 0.0, %v1937
      %1939 = vmatmul.f32.gmra.mxu0 %v1916
      %v1940 = vpop.f32.mrf.mxu0
      %v1941 = vadd.f32 0.0, %v1940
      %1942 = vdwg.mxu0
      %1943 = vrot.lane.b32.xlu0 %v1838, 120
      %v1944 = vpop.permute.xlu0 %1943
      %1945 = vrot.lane.b32.xlu0 %v1841, 120
      %v1946 = vpop.permute.xlu0 %1945
      %1947 = vrot.lane.b32.xlu0 %v1838, 88
      %v1948 = vpop.permute.xlu0 %1947
      %1949 = vrot.lane.b32.xlu0 %v1841, 88
      %v1950 = vpop.permute.xlu0 %1949
      %v1951 = vsel %vm1849, %v1944, 0
      %v1953 = vsel %vm1849, %v1946, 0
      %v1955 = vsel %vm1849, %v1948, 0
      %v1957 = vsel %vm1849, %v1950, 0
      %1959 = vmatpush.xpose.msra.mxu0 0.0
      %1960 = vmatpush.xpose.msra.mxu0 0.0
      %1961 = vmatpush.xpose.msra.mxu0 0.0
      %1962 = vmatpush.xpose.msra.mxu0 0.0
      %1963 = vmatpush.xpose.msra.mxu0 0.0
      %1964 = vmatpush.xpose.msra.mxu0 0.0
      %1965 = vmatpush.xpose.msra.mxu0 0.0
      %1966 = vmatpush.xpose.msra.mxu0 0.0
      %1967 = vmatpush.xpose.msra.mxu0 0.0
      %1968 = vmatpush.xpose.msra.mxu0 0.0
      %1969 = vmatpush.xpose.msra.mxu0 0.0
      %1970 = vmatpush.xpose.msra.mxu0 0.0
      %1971 = vmatpush.xpose.msra.mxu0 0.0
      %1972 = vmatpush.xpose.msra.mxu0 0.0
      %1973 = vmatpush.xpose.msra.mxu0 %v1957
      %1974 = vmatpush.xpose.msra.mxu0 %v1955
      %1975 = vmatmul.f32.gmra.mxu0 %v1951
      %v1976 = vpop.f32.mrf.mxu0
      %v1977 = vadd.f32 0.0, %v1976
      %1978 = vmatmul.f32.gmra.mxu0 %v1953
      %v1979 = vpop.f32.mrf.mxu0
      %v1980 = vadd.f32 0.0, %v1979
      %1981 = vdwg.mxu0
      %v1982 = vmul.f32 %v1977, 0.35355338
      %v1983 = vmul.f32 %v1980, 0.35355338
      %v1984 = vsel %vm1883, %v1982, -inf
      %1985 = vmax.xlane.f32.xlu0 %v1984
      %v1986 = vpop.xlane.xlu0 %1985
      %v1987 = vsel %vm1887, %v1983, -inf
      %1988 = vmax.xlane.f32.xlu0 %v1987
      %v1989 = vpop.xlane.xlu0 %1988
      %v1990 = vsub.f32 %v1982, %v1986
      %v1991 = vsub.f32 %v1983, %v1989
      %v1992 = vmul.f32 %v1990, 1.442695
      %v1993 = vpow.pop %v1992
      %v1994 = vmul.f32 %v1991, 1.442695
      %v1995 = vpow.pop %v1994
      %v1996 = vsel %vm1883, %v1993, 0.0
      %1997 = vadd.xlane.f32.xlu0 %v1996
      %v1998 = vpop.xlane.xlu0 %1997
      %v1999 = vsel %vm1887, %v1995, 0.0
      %2000 = vadd.xlane.f32.xlu0 %v1999
      %v2001 = vpop.xlane.xlu0 %2000
      %v2002 = vrcp.pop %v1998
      %v2003 = vrcp.pop %v2001
      %v2004 = vmul.f32 %v1993, %v2002
      %v2005 = vmul.f32 %v1995, %v2003
      %2006 = vrot.lane.b32.xlu0 %v1838, 56
      %v2007 = vpop.permute.xlu0 %2006
      %2008 = vrot.lane.b32.xlu0 %v1841, 56
      %v2009 = vpop.permute.xlu0 %2008
      %v2012 = vsel %vm1883, %v2004, 0
      %v2015 = vsel %vm1883, %v2005, 0
      %v2017 = vsel %vm1734, %v2009, 0
      %2019 = vmatpush.msra.mxu0 0.0
      %2020 = vmatpush.msra.mxu0 0.0
      %2021 = vmatpush.msra.mxu0 0.0
      %2022 = vmatpush.msra.mxu0 0.0
      %2023 = vmatpush.msra.mxu0 0.0
      %2024 = vmatpush.msra.mxu0 0.0
      %2025 = vmatpush.msra.mxu0 0.0
      %2026 = vmatpush.msra.mxu0 0.0
      %2027 = vmatpush.msra.mxu0 0.0
      %2028 = vmatpush.msra.mxu0 0.0
      %2029 = vmatpush.msra.mxu0 0.0
      %2030 = vmatpush.msra.mxu0 0.0
      %2031 = vmatpush.msra.mxu0 0.0
      %2032 = vmatpush.msra.mxu0 0.0
      %2033 = vmatpush.msra.mxu0 %v2017
      %2034 = vmatpush.msra.mxu0 %v2007
      %2035 = vmatmul.f32.gmra.mxu0 %v2012
      %v2036 = vpop.f32.mrf.mxu0
      %v2037 = vadd.f32 0.0, %v2036
      %2038 = vmatmul.f32.gmra.mxu0 %v2015
      %v2039 = vpop.f32.mrf.mxu0
      %v2040 = vadd.f32 0.0, %v2039
      %2041 = vdwg.mxu0
      %2042 = vrot.lane.b32.xlu0 %v1838, 112
      %v2043 = vpop.permute.xlu0 %2042
      %2044 = vrot.lane.b32.xlu0 %v1841, 112
      %v2045 = vpop.permute.xlu0 %2044
      %2046 = vrot.lane.b32.xlu0 %v1838, 80
      %v2047 = vpop.permute.xlu0 %2046
      %2048 = vrot.lane.b32.xlu0 %v1841, 80
      %v2049 = vpop.permute.xlu0 %2048
      %v2050 = vsel %vm1849, %v2043, 0
      %v2052 = vsel %vm1849, %v2045, 0
      %v2054 = vsel %vm1849, %v2047, 0
      %v2056 = vsel %vm1849, %v2049, 0
      %2058 = vmatpush.xpose.msra.mxu0 0.0
      %2059 = vmatpush.xpose.msra.mxu0 0.0
      %2060 = vmatpush.xpose.msra.mxu0 0.0
      %2061 = vmatpush.xpose.msra.mxu0 0.0
      %2062 = vmatpush.xpose.msra.mxu0 0.0
      %2063 = vmatpush.xpose.msra.mxu0 0.0
      %2064 = vmatpush.xpose.msra.mxu0 0.0
      %2065 = vmatpush.xpose.msra.mxu0 0.0
      %2066 = vmatpush.xpose.msra.mxu0 0.0
      %2067 = vmatpush.xpose.msra.mxu0 0.0
      %2068 = vmatpush.xpose.msra.mxu0 0.0
      %2069 = vmatpush.xpose.msra.mxu0 0.0
      %2070 = vmatpush.xpose.msra.mxu0 0.0
      %2071 = vmatpush.xpose.msra.mxu0 0.0
      %2072 = vmatpush.xpose.msra.mxu0 %v2056
      %2073 = vmatpush.xpose.msra.mxu0 %v2054
      %2074 = vmatmul.f32.gmra.mxu0 %v2050
      %v2075 = vpop.f32.mrf.mxu0
      %v2076 = vadd.f32 0.0, %v2075
      %2077 = vmatmul.f32.gmra.mxu0 %v2052
      %v2078 = vpop.f32.mrf.mxu0
      %v2079 = vadd.f32 0.0, %v2078
      %2080 = vdwg.mxu0
      %v2081 = vmul.f32 %v2076, 0.35355338
      %v2082 = vmul.f32 %v2079, 0.35355338
      %v2083 = vsel %vm1883, %v2081, -inf
      %2084 = vmax.xlane.f32.xlu0 %v2083
      %v2085 = vpop.xlane.xlu0 %2084
      %v2086 = vsel %vm1887, %v2082, -inf
      %2087 = vmax.xlane.f32.xlu0 %v2086
      %v2088 = vpop.xlane.xlu0 %2087
      %v2089 = vsub.f32 %v2081, %v2085
      %v2090 = vsub.f32 %v2082, %v2088
      %v2091 = vmul.f32 %v2089, 1.442695
      %v2092 = vpow.pop %v2091
      %v2093 = vmul.f32 %v2090, 1.442695
      %v2094 = vpow.pop %v2093
      %v2095 = vsel %vm1883, %v2092, 0.0
      %2096 = vadd.xlane.f32.xlu0 %v2095
      %v2097 = vpop.xlane.xlu0 %2096
      %v2098 = vsel %vm1887, %v2094, 0.0
      %2099 = vadd.xlane.f32.xlu0 %v2098
      %v2100 = vpop.xlane.xlu0 %2099
      %v2101 = vrcp.pop %v2097
      %v2102 = vrcp.pop %v2100
      %v2103 = vmul.f32 %v2092, %v2101
      %v2104 = vmul.f32 %v2094, %v2102
      %2105 = vrot.lane.b32.xlu0 %v1838, 48
      %v2106 = vpop.permute.xlu0 %2105
      %2107 = vrot.lane.b32.xlu0 %v1841, 48
      %v2108 = vpop.permute.xlu0 %2107
      %v2111 = vsel %vm1883, %v2103, 0
      %v2114 = vsel %vm1883, %v2104, 0
      %v2116 = vsel %vm1734, %v2108, 0
      %2118 = vmatpush.msra.mxu0 0.0
      %2119 = vmatpush.msra.mxu0 0.0
      %2120 = vmatpush.msra.mxu0 0.0
      %2121 = vmatpush.msra.mxu0 0.0
      %2122 = vmatpush.msra.mxu0 0.0
      %2123 = vmatpush.msra.mxu0 0.0
      %2124 = vmatpush.msra.mxu0 0.0
      %2125 = vmatpush.msra.mxu0 0.0
      %2126 = vmatpush.msra.mxu0 0.0
      %2127 = vmatpush.msra.mxu0 0.0
      %2128 = vmatpush.msra.mxu0 0.0
      %2129 = vmatpush.msra.mxu0 0.0
      %2130 = vmatpush.msra.mxu0 0.0
      %2131 = vmatpush.msra.mxu0 0.0
      %2132 = vmatpush.msra.mxu0 %v2116
      %2133 = vmatpush.msra.mxu0 %v2106
      %2134 = vmatmul.f32.gmra.mxu0 %v2111
      %v2135 = vpop.f32.mrf.mxu0
      %v2136 = vadd.f32 0.0, %v2135
      %2137 = vmatmul.f32.gmra.mxu0 %v2114
      %v2138 = vpop.f32.mrf.mxu0
      %v2139 = vadd.f32 0.0, %v2138
      %2140 = vdwg.mxu0
      %2141 = vrot.lane.b32.xlu0 %v1838, 104
      %v2142 = vpop.permute.xlu0 %2141
      %2143 = vrot.lane.b32.xlu0 %v1841, 104
      %v2144 = vpop.permute.xlu0 %2143
      %2145 = vrot.lane.b32.xlu0 %v1838, 72
      %v2146 = vpop.permute.xlu0 %2145
      %2147 = vrot.lane.b32.xlu0 %v1841, 72
      %v2148 = vpop.permute.xlu0 %2147
      %v2149 = vsel %vm1849, %v2142, 0
      %v2151 = vsel %vm1849, %v2144, 0
      %v2153 = vsel %vm1849, %v2146, 0
      %v2155 = vsel %vm1849, %v2148, 0
      %2157 = vmatpush.xpose.msra.mxu0 0.0
      %2158 = vmatpush.xpose.msra.mxu0 0.0
      %2159 = vmatpush.xpose.msra.mxu0 0.0
      %2160 = vmatpush.xpose.msra.mxu0 0.0
      %2161 = vmatpush.xpose.msra.mxu0 0.0
      %2162 = vmatpush.xpose.msra.mxu0 0.0
      %2163 = vmatpush.xpose.msra.mxu0 0.0
      %2164 = vmatpush.xpose.msra.mxu0 0.0
      %2165 = vmatpush.xpose.msra.mxu0 0.0
      %2166 = vmatpush.xpose.msra.mxu0 0.0
      %2167 = vmatpush.xpose.msra.mxu0 0.0
      %2168 = vmatpush.xpose.msra.mxu0 0.0
      %2169 = vmatpush.xpose.msra.mxu0 0.0
      %2170 = vmatpush.xpose.msra.mxu0 0.0
      %2171 = vmatpush.xpose.msra.mxu0 %v2155
      %2172 = vmatpush.xpose.msra.mxu0 %v2153
      %2173 = vmatmul.f32.gmra.mxu0 %v2149
      %v2174 = vpop.f32.mrf.mxu0
      %v2175 = vadd.f32 0.0, %v2174
      %2176 = vmatmul.f32.gmra.mxu0 %v2151
      %v2177 = vpop.f32.mrf.mxu0
      %v2178 = vadd.f32 0.0, %v2177
      %2179 = vdwg.mxu0
      %v2180 = vmul.f32 %v2175, 0.35355338
      %v2181 = vmul.f32 %v2178, 0.35355338
      %v2182 = vsel %vm1883, %v2180, -inf
      %2183 = vmax.xlane.f32.xlu0 %v2182
      %v2184 = vpop.xlane.xlu0 %2183
      %v2185 = vsel %vm1887, %v2181, -inf
      %2186 = vmax.xlane.f32.xlu0 %v2185
      %v2187 = vpop.xlane.xlu0 %2186
      %v2188 = vsub.f32 %v2180, %v2184
      %v2189 = vsub.f32 %v2181, %v2187
      %v2190 = vmul.f32 %v2188, 1.442695
      %v2191 = vpow.pop %v2190
      %v2192 = vmul.f32 %v2189, 1.442695
      %v2193 = vpow.pop %v2192
      %v2194 = vsel %vm1883, %v2191, 0.0
      %2195 = vadd.xlane.f32.xlu0 %v2194
      %v2196 = vpop.xlane.xlu0 %2195
      %v2197 = vsel %vm1887, %v2193, 0.0
      %2198 = vadd.xlane.f32.xlu0 %v2197
      %v2199 = vpop.xlane.xlu0 %2198
      %v2200 = vrcp.pop %v2196
      %v2201 = vrcp.pop %v2199
      %v2202 = vmul.f32 %v2191, %v2200
      %v2203 = vmul.f32 %v2193, %v2201
      %2204 = vrot.lane.b32.xlu0 %v1838, 40
      %v2205 = vpop.permute.xlu0 %2204
      %2206 = vrot.lane.b32.xlu0 %v1841, 40
      %v2207 = vpop.permute.xlu0 %2206
      %v2210 = vsel %vm1883, %v2202, 0
      %v2213 = vsel %vm1883, %v2203, 0
      %v2215 = vsel %vm1734, %v2207, 0
      %2217 = vmatpush.msra.mxu0 0.0
      %2218 = vmatpush.msra.mxu0 0.0
      %2219 = vmatpush.msra.mxu0 0.0
      %2220 = vmatpush.msra.mxu0 0.0
      %2221 = vmatpush.msra.mxu0 0.0
      %2222 = vmatpush.msra.mxu0 0.0
      %2223 = vmatpush.msra.mxu0 0.0
      %2224 = vmatpush.msra.mxu0 0.0
      %2225 = vmatpush.msra.mxu0 0.0
      %2226 = vmatpush.msra.mxu0 0.0
      %2227 = vmatpush.msra.mxu0 0.0
      %2228 = vmatpush.msra.mxu0 0.0
      %2229 = vmatpush.msra.mxu0 0.0
      %2230 = vmatpush.msra.mxu0 0.0
      %2231 = vmatpush.msra.mxu0 %v2215
      %2232 = vmatpush.msra.mxu0 %v2205
      %2233 = vmatmul.f32.gmra.mxu0 %v2210
      %v2234 = vpop.f32.mrf.mxu0
      %v2235 = vadd.f32 0.0, %v2234
      %2236 = vmatmul.f32.gmra.mxu0 %v2213
      %v2237 = vpop.f32.mrf.mxu0
      %v2238 = vadd.f32 0.0, %v2237
      %2239 = vdwg.mxu0
      %2242 = vrot.lane.b32.xlu0 %v2037, 8
      %v2243 = vpop.permute.xlu0 %2242
      %2244 = vrot.lane.b32.xlu0 %v2040, 8
      %v2245 = vpop.permute.xlu0 %2244
      %2250 = vrot.lane.b32.xlu0 %v2136, 16
      %v2251 = vpop.permute.xlu0 %2250
      %2252 = vrot.lane.b32.xlu0 %v2139, 16
      %v2253 = vpop.permute.xlu0 %2252
      %2258 = vrot.lane.b32.xlu0 %v2235, 24
      %v2259 = vpop.permute.xlu0 %2258
      %2260 = vrot.lane.b32.xlu0 %v2238, 24
      %v2261 = vpop.permute.xlu0 %2260
      %v2264 = vsel %vm1849, %v1938, %v2243
      %v2265 = vsel %vm1849, %v1941, %v2245
      %vm2266 = vcmask 130048
      %v2267 = vsel %vm2266, %v2264, %v2251
      %v2268 = vsel %vm2266, %v2265, %v2253
      %vm2269 = vcmask 195584
      %v2270 = vsel %vm2269, %v2267, %v2259
      %v2271 = vsel %vm2269, %v2268, %v2261
      %v2272 = vld [vmem:[%s27] sm:$0xff]
      %v2273 = vld [vmem:[%s27 + $0x8] sm:$0xff]
      %v2274 = vld [vmem:[%s27 + $0x10] sm:$0xff]
      %v2275 = vld [vmem:[%s27 + $0x18] sm:$0xff]
      %v2276 = vld [vmem:[%s29] sm:$0x1]
      %v2278 = vperm.slane %v2276, 0
      %v2281 = vsel %vm1764, %v2270, 0
      %v2284 = vsel %vm1764, %v2271, 0
      %2286 = vmatpush.msra.mxu0 0.0
      %2287 = vmatpush.msra.mxu0 0.0
      %2288 = vmatpush.msra.mxu0 0.0
      %2289 = vmatpush.msra.mxu0 0.0
      %2290 = vmatpush.msra.mxu0 0.0
      %2291 = vmatpush.msra.mxu0 0.0
      %2292 = vmatpush.msra.mxu0 0.0
      %2293 = vmatpush.msra.mxu0 0.0
      %2294 = vmatpush.msra.mxu0 0.0
      %2295 = vmatpush.msra.mxu0 0.0
      %2296 = vmatpush.msra.mxu0 0.0
      %2297 = vmatpush.msra.mxu0 0.0
      %2298 = vmatpush.msra.mxu0 %v2275
      %2299 = vmatpush.msra.mxu0 %v2274
      %2300 = vmatpush.msra.mxu0 %v2273
      %2301 = vmatpush.msra.mxu0 %v2272
      %2302 = vmatmul.f32.gmra.mxu0 %v2281
      %v2303 = vpop.f32.mrf.mxu0
      %v2304 = vadd.f32 %v2278, %v2303
      %2305 = vmatmul.f32.gmra.mxu0 %v2284
      %v2306 = vpop.f32.mrf.mxu0
      %v2307 = vadd.f32 %v2278, %v2306
      %2308 = vdwg.mxu0
      %v2309 = vadd.f32 %v1804, %v2304
      %v2310 = vadd.f32 %v1805, %v2307
      %v2311 = vsel %vm1764, %v2309, 0.0
      %2312 = vadd.xlane.f32.xlu0 %v2311
      %v2313 = vpop.xlane.xlu0 %2312
      %vm2314 = vcmask 258048
      %v2315 = vsel %vm2314, %v2310, 0.0
      %2316 = vadd.xlane.f32.xlu0 %v2315
      %v2317 = vpop.xlane.xlu0 %2316
      %v2318 = vrcp.pop 32.0
      %v2319 = vmul.f32 32.0, %v2318
      %v2320 = vsub.f32 1.0, %v2319
      %v2321 = vmul.f32 %v2318, %v2320
      %v2322 = vadd.f32 %v2318, %v2321
      %vm2323 = vweird.f32 %v2318
      %v2324 = vsel %vm2323, %v2318, %v2322
      %v2325 = vmul.f32 %v2313, %v2324
      %v2326 = vmul.f32 %v2317, %v2324
      %v2327 = vsub.f32 %v2309, %v2325
      %v2328 = vsub.f32 %v2310, %v2326
      %v2329 = vmul.f32 %v2327, %v2327
      %v2330 = vmul.f32 %v2328, %v2328
      %v2331 = vsel %vm1764, %v2329, 0.0
      %2332 = vadd.xlane.f32.xlu0 %v2331
      %v2333 = vpop.xlane.xlu0 %2332
      %v2334 = vsel %vm2314, %v2330, 0.0
      %2335 = vadd.xlane.f32.xlu0 %v2334
      %v2336 = vpop.xlane.xlu0 %2335
      %v2337 = vmul.f32 %v2333, %v2324
      %v2338 = vmul.f32 %v2336, %v2324
      %v2339 = vadd.f32 %v2337, 1e-05
      %v2340 = vadd.f32 %v2338, 1e-05
      %v2341 = vrsqrt.pop %v2339
      %v2342 = vmul.f32 %v2341, %v2339
      %v2343 = vmul.f32 %v2342, %v2341
      %v2344 = vmul.f32 0.5, %v2343
      %v2345 = vsub.f32 1.5, %v2344
      %v2346 = vmul.f32 %v2341, %v2345
      %vm2347 = vweird.f32 %v2339
      %vm2348 = vweird.f32 %v2341
      %vm2349 = vmor %vm2347, %vm2348
      %v2350 = vsel %vm2349, %v2341, %v2346
      %v2351 = vrsqrt.pop %v2340
      %v2352 = vmul.f32 %v2351, %v2340
      %v2353 = vmul.f32 %v2352, %v2351
      %v2354 = vmul.f32 0.5, %v2353
      %v2355 = vsub.f32 1.5, %v2354
      %v2356 = vmul.f32 %v2351, %v2355
      %vm2357 = vweird.f32 %v2340
      %vm2358 = vweird.f32 %v2351
      %vm2359 = vmor %vm2357, %vm2358
      %v2360 = vsel %vm2359, %v2351, %v2356
      %v2361 = vmul.f32 %v2327, %v2350
      %v2362 = vmul.f32 %v2328, %v2360
      %v2363 = vld [vmem:[%s31] sm:$0x1]
      %v2365 = vperm.slane %v2363, 0
      %v2367 = vmul.f32 %v2361, %v2365
      %v2368 = vmul.f32 %v2362, %v2365
      %v2369 = vld [vmem:[%s33] sm:$0x1]
      %v2371 = vperm.slane %v2369, 0
      %v2373 = vadd.f32 %v2367, %v2371
      %v2374 = vadd.f32 %v2368, %v2371
      %v2375 = vld [vmem:[%s35] sm:$0xff]
      %v2376 = vld [vmem:[%s35 + $0x8] sm:$0xff]
      %v2377 = vld [vmem:[%s35 + $0x10] sm:$0xff]
      %v2378 = vld [vmem:[%s35 + $0x18] sm:$0xff]
      %v2379 = vld [vmem:[%s37] sm:$0x1]
      %v2381 = vperm.slane %v2379, 0
      %v2384 = vsel %vm1764, %v2373, 0
      %v2387 = vsel %vm1764, %v2374, 0
      %2389 = vmatpush.msra.mxu0 0.0
      %2390 = vmatpush.msra.mxu0 0.0
      %2391 = vmatpush.msra.mxu0 0.0
      %2392 = vmatpush.msra.mxu0 0.0
      %2393 = vmatpush.msra.mxu0 0.0
      %2394 = vmatpush.msra.mxu0 0.0
      %2395 = vmatpush.msra.mxu0 0.0
      %2396 = vmatpush.msra.mxu0 0.0
      %2397 = vmatpush.msra.mxu0 0.0
      %2398 = vmatpush.msra.mxu0 0.0
      %2399 = vmatpush.msra.mxu0 0.0
      %2400 = vmatpush.msra.mxu0 0.0
      %2401 = vmatpush.msra.mxu0 %v2378
      %2402 = vmatpush.msra.mxu0 %v2377
      %2403 = vmatpush.msra.mxu0 %v2376
      %2404 = vmatpush.msra.mxu0 %v2375
      %2405 = vmatmul.f32.gmra.mxu0 %v2384
      %v2406 = vpop.f32.mrf.mxu0
      %v2407 = vadd.f32 %v2381, %v2406
      %2408 = vmatmul.f32.gmra.mxu0 %v2387
      %v2409 = vpop.f32.mrf.mxu0
      %v2410 = vadd.f32 %v2381, %v2409
      %2411 = vdwg.mxu0
      %v2412 = vmul.f32 %v2407, %v2407
      %v2413 = vmul.f32 %v2410, %v2410
      %v2414 = vmul.f32 %v2407, %v2412
      %v2415 = vmul.f32 %v2410, %v2413
      %v2416 = vmul.f32 %v2414, 0.044715
      %v2417 = vmul.f32 %v2415, 0.044715
      %v2418 = vadd.f32 %v2407, %v2416
      %v2419 = vadd.f32 %v2410, %v2417
      %v2420 = vmul.f32 %v2418, 0.7978846
      %v2421 = vmul.f32 %v2419, 0.7978846
      %v2422 = vtanh.pop %v2420
      %v2423 = vtanh.pop %v2421
      %v2424 = vadd.f32 %v2422, 1.0
      %v2425 = vadd.f32 %v2423, 1.0
      %v2426 = vmul.f32 %v2424, 0.5
      %v2427 = vmul.f32 %v2425, 0.5
      %v2428 = vmul.f32 %v2407, %v2426
      %v2429 = vmul.f32 %v2410, %v2427
      %v2430 = vld [vmem:[%s39] sm:$0xff]
      %v2431 = vld [vmem:[%s39 + $0x8] sm:$0xff]
      %v2432 = vld [vmem:[%s39 + $0x10] sm:$0xff]
      %v2433 = vld [vmem:[%s39 + $0x18] sm:$0xff]
      %v2434 = vld [vmem:[%s39 + $0x20] sm:$0xff]
      %v2435 = vld [vmem:[%s39 + $0x28] sm:$0xff]
      %v2436 = vld [vmem:[%s39 + $0x30] sm:$0xff]
      %v2437 = vld [vmem:[%s39 + $0x38] sm:$0xff]
      %v2438 = vld [vmem:[%s41] sm:$0x1]
      %v2440 = vperm.slane %v2438, 0
      %vm2442 = vcmask 523264
      %v2444 = vsel %vm2442, %v2428, 0
      %v2447 = vsel %vm2442, %v2429, 0
      %2449 = vmatpush.msra.mxu0 0.0
      %2450 = vmatpush.msra.mxu0 0.0
      %2451 = vmatpush.msra.mxu0 0.0
      %2452 = vmatpush.msra.mxu0 0.0
      %2453 = vmatpush.msra.mxu0 0.0
      %2454 = vmatpush.msra.mxu0 0.0
      %2455 = vmatpush.msra.mxu0 0.0
      %2456 = vmatpush.msra.mxu0 0.0
      %2457 = vmatpush.msra.mxu0 %v2437
      %2458 = vmatpush.msra.mxu0 %v2436
      %2459 = vmatpush.msra.mxu0 %v2435
      %2460 = vmatpush.msra.mxu0 %v2434
      %2461 = vmatpush.msra.mxu0 %v2433
      %2462 = vmatpush.msra.mxu0 %v2432
      %2463 = vmatpush.msra.mxu0 %v2431
      %2464 = vmatpush.msra.mxu0 %v2430
      %2465 = vmatmul.f32.gmra.mxu0 %v2444
      %v2466 = vpop.f32.mrf.mxu0
      %v2467 = vadd.f32 %v2440, %v2466
      %2468 = vmatmul.f32.gmra.mxu0 %v2447
      %v2469 = vpop.f32.mrf.mxu0
      %v2470 = vadd.f32 %v2440, %v2469
      %2471 = vdwg.mxu0
      %v2472 = vadd.f32 %v2373, %v2467
      %v2473 = vadd.f32 %v2374, %v2470
      %v2474 = vsel %vm1764, %v2472, 0.0
      %2475 = vadd.xlane.f32.xlu0 %v2474
      %v2476 = vpop.xlane.xlu0 %2475
      %v2477 = vsel %vm2314, %v2473, 0.0
      %2478 = vadd.xlane.f32.xlu0 %v2477
      %v2479 = vpop.xlane.xlu0 %2478
      %v2480 = vmul.f32 %v2476, %v2324
      %v2481 = vmul.f32 %v2479, %v2324
      %v2482 = vsub.f32 %v2472, %v2480
      %v2483 = vsub.f32 %v2473, %v2481
      %v2484 = vmul.f32 %v2482, %v2482
      %v2485 = vmul.f32 %v2483, %v2483
      %v2486 = vsel %vm1764, %v2484, 0.0
      %2487 = vadd.xlane.f32.xlu0 %v2486
      %v2488 = vpop.xlane.xlu0 %2487
      %v2489 = vsel %vm2314, %v2485, 0.0
      %2490 = vadd.xlane.f32.xlu0 %v2489
      %v2491 = vpop.xlane.xlu0 %2490
      %v2492 = vmul.f32 %v2488, %v2324
      %v2493 = vmul.f32 %v2491, %v2324
      %v2494 = vadd.f32 %v2492, 1e-05
      %v2495 = vadd.f32 %v2493, 1e-05
      %v2496 = vrsqrt.pop %v2494
      %v2497 = vmul.f32 %v2496, %v2494
      %v2498 = vmul.f32 %v2497, %v2496
      %v2499 = vmul.f32 0.5, %v2498
      %v2500 = vsub.f32 1.5, %v2499
      %v2501 = vmul.f32 %v2496, %v2500
      %vm2502 = vweird.f32 %v2494
      %vm2503 = vweird.f32 %v2496
      %vm2504 = vmor %vm2502, %vm2503
      %v2505 = vsel %vm2504, %v2496, %v2501
      %v2506 = vrsqrt.pop %v2495
      %v2507 = vmul.f32 %v2506, %v2495
      %v2508 = vmul.f32 %v2507, %v2506
      %v2509 = vmul.f32 0.5, %v2508
      %v2510 = vsub.f32 1.5, %v2509
      %v2511 = vmul.f32 %v2506, %v2510
      %vm2512 = vweird.f32 %v2495
      %vm2513 = vweird.f32 %v2506
      %vm2514 = vmor %vm2512, %vm2513
      %v2515 = vsel %vm2514, %v2506, %v2511
      %v2516 = vmul.f32 %v2482, %v2505
      %v2517 = vmul.f32 %v2483, %v2515
      %v2518 = vld [vmem:[%s43] sm:$0x1]
      %v2520 = vperm.slane %v2518, 0
      %v2522 = vmul.f32 %v2516, %v2520
      %v2523 = vmul.f32 %v2517, %v2520
      %v2524 = vld [vmem:[%s45] sm:$0x1]
      %v2526 = vperm.slane %v2524, 0
      %v2528 = vadd.f32 %v2522, %v2526
      %v2529 = vadd.f32 %v2523, %v2526
      %s2530 = scalar_lea.vmem %s23, 32
      %v2531 = vld [vmem:[%s2530] sm:$0xff]
      %v2532 = vld [vmem:[%s2530 + $0x8] sm:$0xff]
      %v2533 = vld [vmem:[%s2530 + $0x10] sm:$0xff]
      %v2534 = vld [vmem:[%s2530 + $0x18] sm:$0xff]
      %s2535 = scalar_lea.vmem %s25, 1
      %v2536 = vld [vmem:[%s2535] sm:$0x1]
      %v2538 = vperm.slane %v2536, 0
      %v2541 = vsel %vm1764, %v2528, 0
      %v2544 = vsel %vm1764, %v2529, 0
      %2546 = vmatpush.msra.mxu0 0.0
      %2547 = vmatpush.msra.mxu0 0.0
      %2548 = vmatpush.msra.mxu0 0.0
      %2549 = vmatpush.msra.mxu0 0.0
      %2550 = vmatpush.msra.mxu0 0.0
      %2551 = vmatpush.msra.mxu0 0.0
      %2552 = vmatpush.msra.mxu0 0.0
      %2553 = vmatpush.msra.mxu0 0.0
      %2554 = vmatpush.msra.mxu0 0.0
      %2555 = vmatpush.msra.mxu0 0.0
      %2556 = vmatpush.msra.mxu0 0.0
      %2557 = vmatpush.msra.mxu0 0.0
      %2558 = vmatpush.msra.mxu0 %v2534
      %2559 = vmatpush.msra.mxu0 %v2533
      %2560 = vmatpush.msra.mxu0 %v2532
      %2561 = vmatpush.msra.mxu0 %v2531
      %2562 = vmatmul.f32.gmra.mxu0 %v2541
      %v2563 = vpop.f32.mrf.mxu0
      %v2564 = vadd.f32 %v2538, %v2563
      %2565 = vmatmul.f32.gmra.mxu0 %v2544
      %v2566 = vpop.f32.mrf.mxu0
      %v2567 = vadd.f32 %v2538, %v2566
      %2568 = vdwg.mxu0
      %2571 = vrot.lane.b32.xlu0 %v2564, 96
      %v2572 = vpop.permute.xlu0 %2571
      %2573 = vrot.lane.b32.xlu0 %v2567, 96
      %v2574 = vpop.permute.xlu0 %2573
      %v2575 = vsel %vm1849, %v2564, 0
      %v2577 = vsel %vm1849, %v2567, 0
      %v2579 = vsel %vm1849, %v2572, 0
      %v2581 = vsel %vm1849, %v2574, 0
      %2583 = vmatpush.xpose.msra.mxu0 0.0
      %2584 = vmatpush.xpose.msra.mxu0 0.0
      %2585 = vmatpush.xpose.msra.mxu0 0.0
      %2586 = vmatpush.xpose.msra.mxu0 0.0
      %2587 = vmatpush.xpose.msra.mxu0 0.0
      %2588 = vmatpush.xpose.msra.mxu0 0.0
      %2589 = vmatpush.xpose.msra.mxu0 0.0
      %2590 = vmatpush.xpose.msra.mxu0 0.0
      %2591 = vmatpush.xpose.msra.mxu0 0.0
      %2592 = vmatpush.xpose.msra.mxu0 0.0
      %2593 = vmatpush.xpose.msra.mxu0 0.0
      %2594 = vmatpush.xpose.msra.mxu0 0.0
      %2595 = vmatpush.xpose.msra.mxu0 0.0
      %2596 = vmatpush.xpose.msra.mxu0 0.0
      %2597 = vmatpush.xpose.msra.mxu0 %v2581
      %2598 = vmatpush.xpose.msra.mxu0 %v2579
      %2599 = vmatmul.f32.gmra.mxu0 %v2575
      %v2600 = vpop.f32.mrf.mxu0
      %v2601 = vadd.f32 0.0, %v2600
      %2602 = vmatmul.f32.gmra.mxu0 %v2577
      %v2603 = vpop.f32.mrf.mxu0
      %v2604 = vadd.f32 0.0, %v2603
      %2605 = vdwg.mxu0
      %v2606 = vmul.f32 %v2601, 0.35355338
      %v2607 = vmul.f32 %v2604, 0.35355338
      %v2608 = vsel %vm1883, %v2606, -inf
      %2609 = vmax.xlane.f32.xlu0 %v2608
      %v2610 = vpop.xlane.xlu0 %2609
      %v2611 = vsel %vm1887, %v2607, -inf
      %2612 = vmax.xlane.f32.xlu0 %v2611
      %v2613 = vpop.xlane.xlu0 %2612
      %v2614 = vsub.f32 %v2606, %v2610
      %v2615 = vsub.f32 %v2607, %v2613
      %v2616 = vmul.f32 %v2614, 1.442695
      %v2617 = vpow.pop %v2616
      %v2618 = vmul.f32 %v2615, 1.442695
      %v2619 = vpow.pop %v2618
      %v2620 = vsel %vm1883, %v2617, 0.0
      %2621 = vadd.xlane.f32.xlu0 %v2620
      %v2622 = vpop.xlane.xlu0 %2621
      %v2623 = vsel %vm1887, %v2619, 0.0
      %2624 = vadd.xlane.f32.xlu0 %v2623
      %v2625 = vpop.xlane.xlu0 %2624
      %v2626 = vrcp.pop %v2622
      %v2627 = vrcp.pop %v2625
      %v2628 = vmul.f32 %v2617, %v2626
      %v2629 = vmul.f32 %v2619, %v2627
      %2630 = vrot.lane.b32.xlu0 %v2564, 64
      %v2631 = vpop.permute.xlu0 %2630
      %2632 = vrot.lane.b32.xlu0 %v2567, 64
      %v2633 = vpop.permute.xlu0 %2632
      %v2636 = vsel %vm1883, %v2628, 0
      %v2639 = vsel %vm1883, %v2629, 0
      %v2641 = vsel %vm1734, %v2633, 0
      %2643 = vmatpush.msra.mxu0 0.0
      %2644 = vmatpush.msra.mxu0 0.0
      %2645 = vmatpush.msra.mxu0 0.0
      %2646 = vmatpush.msra.mxu0 0.0
      %2647 = vmatpush.msra.mxu0 0.0
      %2648 = vmatpush.msra.mxu0 0.0
      %2649 = vmatpush.msra.mxu0 0.0
      %2650 = vmatpush.msra.mxu0 0.0
      %2651 = vmatpush.msra.mxu0 0.0
      %2652 = vmatpush.msra.mxu0 0.0
      %2653 = vmatpush.msra.mxu0 0.0
      %2654 = vmatpush.msra.mxu0 0.0
      %2655 = vmatpush.msra.mxu0 0.0
      %2656 = vmatpush.msra.mxu0 0.0
      %2657 = vmatpush.msra.mxu0 %v2641
      %2658 = vmatpush.msra.mxu0 %v2631
      %2659 = vmatmul.f32.gmra.mxu0 %v2636
      %v2660 = vpop.f32.mrf.mxu0
      %v2661 = vadd.f32 0.0, %v2660
      %2662 = vmatmul.f32.gmra.mxu0 %v2639
      %v2663 = vpop.f32.mrf.mxu0
      %v2664 = vadd.f32 0.0, %v2663
      %2665 = vdwg.mxu0
      %2666 = vrot.lane.b32.xlu0 %v2564, 120
      %v2667 = vpop.permute.xlu0 %2666
      %2668 = vrot.lane.b32.xlu0 %v2567, 120
      %v2669 = vpop.permute.xlu0 %2668
      %2670 = vrot.lane.b32.xlu0 %v2564, 88
      %v2671 = vpop.permute.xlu0 %2670
      %2672 = vrot.lane.b32.xlu0 %v2567, 88
      %v2673 = vpop.permute.xlu0 %2672
      %v2674 = vsel %vm1849, %v2667, 0
      %v2676 = vsel %vm1849, %v2669, 0
      %v2678 = vsel %vm1849, %v2671, 0
      %v2680 = vsel %vm1849, %v2673, 0
      %2682 = vmatpush.xpose.msra.mxu0 0.0
      %2683 = vmatpush.xpose.msra.mxu0 0.0
      %2684 = vmatpush.xpose.msra.mxu0 0.0
      %2685 = vmatpush.xpose.msra.mxu0 0.0
      %2686 = vmatpush.xpose.msra.mxu0 0.0
      %2687 = vmatpush.xpose.msra.mxu0 0.0
      %2688 = vmatpush.xpose.msra.mxu0 0.0
      %2689 = vmatpush.xpose.msra.mxu0 0.0
      %2690 = vmatpush.xpose.msra.mxu0 0.0
      %2691 = vmatpush.xpose.msra.mxu0 0.0
      %2692 = vmatpush.xpose.msra.mxu0 0.0
      %2693 = vmatpush.xpose.msra.mxu0 0.0
      %2694 = vmatpush.xpose.msra.mxu0 0.0
      %2695 = vmatpush.xpose.msra.mxu0 0.0
      %2696 = vmatpush.xpose.msra.mxu0 %v2680
      %2697 = vmatpush.xpose.msra.mxu0 %v2678
      %2698 = vmatmul.f32.gmra.mxu0 %v2674
      %v2699 = vpop.f32.mrf.mxu0
      %v2700 = vadd.f32 0.0, %v2699
      %2701 = vmatmul.f32.gmra.mxu0 %v2676
      %v2702 = vpop.f32.mrf.mxu0
      %v2703 = vadd.f32 0.0, %v2702
      %2704 = vdwg.mxu0
      %v2705 = vmul.f32 %v2700, 0.35355338
      %v2706 = vmul.f32 %v2703, 0.35355338
      %v2707 = vsel %vm1883, %v2705, -inf
      %2708 = vmax.xlane.f32.xlu0 %v2707
      %v2709 = vpop.xlane.xlu0 %2708
      %v2710 = vsel %vm1887, %v2706, -inf
      %2711 = vmax.xlane.f32.xlu0 %v2710
      %v2712 = vpop.xlane.xlu0 %2711
      %v2713 = vsub.f32 %v2705, %v2709
      %v2714 = vsub.f32 %v2706, %v2712
      %v2715 = vmul.f32 %v2713, 1.442695
      %v2716 = vpow.pop %v2715
      %v2717 = vmul.f32 %v2714, 1.442695
      %v2718 = vpow.pop %v2717
      %v2719 = vsel %vm1883, %v2716, 0.0
      %2720 = vadd.xlane.f32.xlu0 %v2719
      %v2721 = vpop.xlane.xlu0 %2720
      %v2722 = vsel %vm1887, %v2718, 0.0
      %2723 = vadd.xlane.f32.xlu0 %v2722
      %v2724 = vpop.xlane.xlu0 %2723
      %v2725 = vrcp.pop %v2721
      %v2726 = vrcp.pop %v2724
      %v2727 = vmul.f32 %v2716, %v2725
      %v2728 = vmul.f32 %v2718, %v2726
      %2729 = vrot.lane.b32.xlu0 %v2564, 56
      %v2730 = vpop.permute.xlu0 %2729
      %2731 = vrot.lane.b32.xlu0 %v2567, 56
      %v2732 = vpop.permute.xlu0 %2731
      %v2735 = vsel %vm1883, %v2727, 0
      %v2738 = vsel %vm1883, %v2728, 0
      %v2740 = vsel %vm1734, %v2732, 0
      %2742 = vmatpush.msra.mxu0 0.0
      %2743 = vmatpush.msra.mxu0 0.0
      %2744 = vmatpush.msra.mxu0 0.0
      %2745 = vmatpush.msra.mxu0 0.0
      %2746 = vmatpush.msra.mxu0 0.0
      %2747 = vmatpush.msra.mxu0 0.0
      %2748 = vmatpush.msra.mxu0 0.0
      %2749 = vmatpush.msra.mxu0 0.0
      %2750 = vmatpush.msra.mxu0 0.0
      %2751 = vmatpush.msra.mxu0 0.0
      %2752 = vmatpush.msra.mxu0 0.0
      %2753 = vmatpush.msra.mxu0 0.0
      %2754 = vmatpush.msra.mxu0 0.0
      %2755 = vmatpush.msra.mxu0 0.0
      %2756 = vmatpush.msra.mxu0 %v2740
      %2757 = vmatpush.msra.mxu0 %v2730
      %2758 = vmatmul.f32.gmra.mxu0 %v2735
      %v2759 = vpop.f32.mrf.mxu0
      %v2760 = vadd.f32 0.0, %v2759
      %2761 = vmatmul.f32.gmra.mxu0 %v2738
      %v2762 = vpop.f32.mrf.mxu0
      %v2763 = vadd.f32 0.0, %v2762
      %2764 = vdwg.mxu0
      %2765 = vrot.lane.b32.xlu0 %v2564, 112
      %v2766 = vpop.permute.xlu0 %2765
      %2767 = vrot.lane.b32.xlu0 %v2567, 112
      %v2768 = vpop.permute.xlu0 %2767
      %2769 = vrot.lane.b32.xlu0 %v2564, 80
      %v2770 = vpop.permute.xlu0 %2769
      %2771 = vrot.lane.b32.xlu0 %v2567, 80
      %v2772 = vpop.permute.xlu0 %2771
      %v2773 = vsel %vm1849, %v2766, 0
      %v2775 = vsel %vm1849, %v2768, 0
      %v2777 = vsel %vm1849, %v2770, 0
      %v2779 = vsel %vm1849, %v2772, 0
      %2781 = vmatpush.xpose.msra.mxu0 0.0
      %2782 = vmatpush.xpose.msra.mxu0 0.0
      %2783 = vmatpush.xpose.msra.mxu0 0.0
      %2784 = vmatpush.xpose.msra.mxu0 0.0
      %2785 = vmatpush.xpose.msra.mxu0 0.0
      %2786 = vmatpush.xpose.msra.mxu0 0.0
      %2787 = vmatpush.xpose.msra.mxu0 0.0
      %2788 = vmatpush.xpose.msra.mxu0 0.0
      %2789 = vmatpush.xpose.msra.mxu0 0.0
      %2790 = vmatpush.xpose.msra.mxu0 0.0
      %2791 = vmatpush.xpose.msra.mxu0 0.0
      %2792 = vmatpush.xpose.msra.mxu0 0.0
      %2793 = vmatpush.xpose.msra.mxu0 0.0
      %2794 = vmatpush.xpose.msra.mxu0 0.0
      %2795 = vmatpush.xpose.msra.mxu0 %v2779
      %2796 = vmatpush.xpose.msra.mxu0 %v2777
      %2797 = vmatmul.f32.gmra.mxu0 %v2773
      %v2798 = vpop.f32.mrf.mxu0
      %v2799 = vadd.f32 0.0, %v2798
      %2800 = vmatmul.f32.gmra.mxu0 %v2775
      %v2801 = vpop.f32.mrf.mxu0
      %v2802 = vadd.f32 0.0, %v2801
      %2803 = vdwg.mxu0
      %v2804 = vmul.f32 %v2799, 0.35355338
      %v2805 = vmul.f32 %v2802, 0.35355338
      %v2806 = vsel %vm1883, %v2804, -inf
      %2807 = vmax.xlane.f32.xlu0 %v2806
      %v2808 = vpop.xlane.xlu0 %2807
      %v2809 = vsel %vm1887, %v2805, -inf
      %2810 = vmax.xlane.f32.xlu0 %v2809
      %v2811 = vpop.xlane.xlu0 %2810
      %v2812 = vsub.f32 %v2804, %v2808
      %v2813 = vsub.f32 %v2805, %v2811
      %v2814 = vmul.f32 %v2812, 1.442695
      %v2815 = vpow.pop %v2814
      %v2816 = vmul.f32 %v2813, 1.442695
      %v2817 = vpow.pop %v2816
      %v2818 = vsel %vm1883, %v2815, 0.0
      %2819 = vadd.xlane.f32.xlu0 %v2818
      %v2820 = vpop.xlane.xlu0 %2819
      %v2821 = vsel %vm1887, %v2817, 0.0
      %2822 = vadd.xlane.f32.xlu0 %v2821
      %v2823 = vpop.xlane.xlu0 %2822
      %v2824 = vrcp.pop %v2820
      %v2825 = vrcp.pop %v2823
      %v2826 = vmul.f32 %v2815, %v2824
      %v2827 = vmul.f32 %v2817, %v2825
      %2828 = vrot.lane.b32.xlu0 %v2564, 48
      %v2829 = vpop.permute.xlu0 %2828
      %2830 = vrot.lane.b32.xlu0 %v2567, 48
      %v2831 = vpop.permute.xlu0 %2830
      %v2834 = vsel %vm1883, %v2826, 0
      %v2837 = vsel %vm1883, %v2827, 0
      %v2839 = vsel %vm1734, %v2831, 0
      %2841 = vmatpush.msra.mxu0 0.0
      %2842 = vmatpush.msra.mxu0 0.0
      %2843 = vmatpush.msra.mxu0 0.0
      %2844 = vmatpush.msra.mxu0 0.0
      %2845 = vmatpush.msra.mxu0 0.0
      %2846 = vmatpush.msra.mxu0 0.0
      %2847 = vmatpush.msra.mxu0 0.0
      %2848 = vmatpush.msra.mxu0 0.0
      %2849 = vmatpush.msra.mxu0 0.0
      %2850 = vmatpush.msra.mxu0 0.0
      %2851 = vmatpush.msra.mxu0 0.0
      %2852 = vmatpush.msra.mxu0 0.0
      %2853 = vmatpush.msra.mxu0 0.0
      %2854 = vmatpush.msra.mxu0 0.0
      %2855 = vmatpush.msra.mxu0 %v2839
      %2856 = vmatpush.msra.mxu0 %v2829
      %2857 = vmatmul.f32.gmra.mxu0 %v2834
      %v2858 = vpop.f32.mrf.mxu0
      %v2859 = vadd.f32 0.0, %v2858
      %2860 = vmatmul.f32.gmra.mxu0 %v2837
      %v2861 = vpop.f32.mrf.mxu0
      %v2862 = vadd.f32 0.0, %v2861
      %2863 = vdwg.mxu0
      %2864 = vrot.lane.b32.xlu0 %v2564, 104
      %v2865 = vpop.permute.xlu0 %2864
      %2866 = vrot.lane.b32.xlu0 %v2567, 104
      %v2867 = vpop.permute.xlu0 %2866
      %2868 = vrot.lane.b32.xlu0 %v2564, 72
      %v2869 = vpop.permute.xlu0 %2868
      %2870 = vrot.lane.b32.xlu0 %v2567, 72
      %v2871 = vpop.permute.xlu0 %2870
      %v2872 = vsel %vm1849, %v2865, 0
      %v2874 = vsel %vm1849, %v2867, 0
      %v2876 = vsel %vm1849, %v2869, 0
      %v2878 = vsel %vm1849, %v2871, 0
      %2880 = vmatpush.xpose.msra.mxu0 0.0
      %2881 = vmatpush.xpose.msra.mxu0 0.0
      %2882 = vmatpush.xpose.msra.mxu0 0.0
      %2883 = vmatpush.xpose.msra.mxu0 0.0
      %2884 = vmatpush.xpose.msra.mxu0 0.0
      %2885 = vmatpush.xpose.msra.mxu0 0.0
      %2886 = vmatpush.xpose.msra.mxu0 0.0
      %2887 = vmatpush.xpose.msra.mxu0 0.0
      %2888 = vmatpush.xpose.msra.mxu0 0.0
      %2889 = vmatpush.xpose.msra.mxu0 0.0
      %2890 = vmatpush.xpose.msra.mxu0 0.0
      %2891 = vmatpush.xpose.msra.mxu0 0.0
      %2892 = vmatpush.xpose.msra.mxu0 0.0
      %2893 = vmatpush.xpose.msra.mxu0 0.0
      %2894 = vmatpush.xpose.msra.mxu0 %v2878
      %2895 = vmatpush.xpose.msra.mxu0 %v2876
      %2896 = vmatmul.f32.gmra.mxu0 %v2872
      %v2897 = vpop.f32.mrf.mxu0
      %v2898 = vadd.f32 0.0, %v2897
      %2899 = vmatmul.f32.gmra.mxu0 %v2874
      %v2900 = vpop.f32.mrf.mxu0
      %v2901 = vadd.f32 0.0, %v2900
      %2902 = vdwg.mxu0
      %v2903 = vmul.f32 %v2898, 0.35355338
      %v2904 = vmul.f32 %v2901, 0.35355338
      %v2905 = vsel %vm1883, %v2903, -inf
      %2906 = vmax.xlane.f32.xlu0 %v2905
      %v2907 = vpop.xlane.xlu0 %2906
      %v2908 = vsel %vm1887, %v2904, -inf
      %2909 = vmax.xlane.f32.xlu0 %v2908
      %v2910 = vpop.xlane.xlu0 %2909
      %v2911 = vsub.f32 %v2903, %v2907
      %v2912 = vsub.f32 %v2904, %v2910
      %v2913 = vmul.f32 %v2911, 1.442695
      %v2914 = vpow.pop %v2913
      %v2915 = vmul.f32 %v2912, 1.442695
      %v2916 = vpow.pop %v2915
      %v2917 = vsel %vm1883, %v2914, 0.0
      %2918 = vadd.xlane.f32.xlu0 %v2917
      %v2919 = vpop.xlane.xlu0 %2918
      %v2920 = vsel %vm1887, %v2916, 0.0
      %2921 = vadd.xlane.f32.xlu0 %v2920
      %v2922 = vpop.xlane.xlu0 %2921
      %v2923 = vrcp.pop %v2919
      %v2924 = vrcp.pop %v2922
      %v2925 = vmul.f32 %v2914, %v2923
      %v2926 = vmul.f32 %v2916, %v2924
      %2927 = vrot.lane.b32.xlu0 %v2564, 40
      %v2928 = vpop.permute.xlu0 %2927
      %2929 = vrot.lane.b32.xlu0 %v2567, 40
      %v2930 = vpop.permute.xlu0 %2929
      %v2933 = vsel %vm1883, %v2925, 0
      %v2936 = vsel %vm1883, %v2926, 0
      %v2938 = vsel %vm1734, %v2930, 0
      %2940 = vmatpush.msra.mxu0 0.0
      %2941 = vmatpush.msra.mxu0 0.0
      %2942 = vmatpush.msra.mxu0 0.0
      %2943 = vmatpush.msra.mxu0 0.0
      %2944 = vmatpush.msra.mxu0 0.0
      %2945 = vmatpush.msra.mxu0 0.0
      %2946 = vmatpush.msra.mxu0 0.0
      %2947 = vmatpush.msra.mxu0 0.0
      %2948 = vmatpush.msra.mxu0 0.0
      %2949 = vmatpush.msra.mxu0 0.0
      %2950 = vmatpush.msra.mxu0 0.0
      %2951 = vmatpush.msra.mxu0 0.0
      %2952 = vmatpush.msra.mxu0 0.0
      %2953 = vmatpush.msra.mxu0 0.0
      %2954 = vmatpush.msra.mxu0 %v2938
      %2955 = vmatpush.msra.mxu0 %v2928
      %2956 = vmatmul.f32.gmra.mxu0 %v2933
      %v2957 = vpop.f32.mrf.mxu0
      %v2958 = vadd.f32 0.0, %v2957
      %2959 = vmatmul.f32.gmra.mxu0 %v2936
      %v2960 = vpop.f32.mrf.mxu0
      %v2961 = vadd.f32 0.0, %v2960
      %2962 = vdwg.mxu0
      %2965 = vrot.lane.b32.xlu0 %v2760, 8
      %v2966 = vpop.permute.xlu0 %2965
      %2967 = vrot.lane.b32.xlu0 %v2763, 8
      %v2968 = vpop.permute.xlu0 %2967
      %2973 = vrot.lane.b32.xlu0 %v2859, 16
      %v2974 = vpop.permute.xlu0 %2973
      %2975 = vrot.lane.b32.xlu0 %v2862, 16
      %v2976 = vpop.permute.xlu0 %2975
      %2981 = vrot.lane.b32.xlu0 %v2958, 24
      %v2982 = vpop.permute.xlu0 %2981
      %2983 = vrot.lane.b32.xlu0 %v2961, 24
      %v2984 = vpop.permute.xlu0 %2983
      %v2987 = vsel %vm1849, %v2661, %v2966
      %v2988 = vsel %vm1849, %v2664, %v2968
      %v2989 = vsel %vm2266, %v2987, %v2974
      %v2990 = vsel %vm2266, %v2988, %v2976
      %v2991 = vsel %vm2269, %v2989, %v2982
      %v2992 = vsel %vm2269, %v2990, %v2984
      %s2993 = scalar_lea.vmem %s27, 32
      %v2994 = vld [vmem:[%s2993] sm:$0xff]
      %v2995 = vld [vmem:[%s2993 + $0x8] sm:$0xff]
      %v2996 = vld [vmem:[%s2993 + $0x10] sm:$0xff]
      %v2997 = vld [vmem:[%s2993 + $0x18] sm:$0xff]
      %s2998 = scalar_lea.vmem %s29, 1
      %v2999 = vld [vmem:[%s2998] sm:$0x1]
      %v3001 = vperm.slane %v2999, 0
      %v3004 = vsel %vm1764, %v2991, 0
      %v3007 = vsel %vm1764, %v2992, 0
      %3009 = vmatpush.msra.mxu0 0.0
      %3010 = vmatpush.msra.mxu0 0.0
      %3011 = vmatpush.msra.mxu0 0.0
      %3012 = vmatpush.msra.mxu0 0.0
      %3013 = vmatpush.msra.mxu0 0.0
      %3014 = vmatpush.msra.mxu0 0.0
      %3015 = vmatpush.msra.mxu0 0.0
      %3016 = vmatpush.msra.mxu0 0.0
      %3017 = vmatpush.msra.mxu0 0.0
      %3018 = vmatpush.msra.mxu0 0.0
      %3019 = vmatpush.msra.mxu0 0.0
      %3020 = vmatpush.msra.mxu0 0.0
      %3021 = vmatpush.msra.mxu0 %v2997
      %3022 = vmatpush.msra.mxu0 %v2996
      %3023 = vmatpush.msra.mxu0 %v2995
      %3024 = vmatpush.msra.mxu0 %v2994
      %3025 = vmatmul.f32.gmra.mxu0 %v3004
      %v3026 = vpop.f32.mrf.mxu0
      %v3027 = vadd.f32 %v3001, %v3026
      %3028 = vmatmul.f32.gmra.mxu0 %v3007
      %v3029 = vpop.f32.mrf.mxu0
      %v3030 = vadd.f32 %v3001, %v3029
      %3031 = vdwg.mxu0
      %v3032 = vadd.f32 %v2528, %v3027
      %v3033 = vadd.f32 %v2529, %v3030
      %v3034 = vsel %vm1764, %v3032, 0.0
      %3035 = vadd.xlane.f32.xlu0 %v3034
      %v3036 = vpop.xlane.xlu0 %3035
      %v3037 = vsel %vm2314, %v3033, 0.0
      %3038 = vadd.xlane.f32.xlu0 %v3037
      %v3039 = vpop.xlane.xlu0 %3038
      %v3040 = vmul.f32 %v3036, %v2324
      %v3041 = vmul.f32 %v3039, %v2324
      %v3042 = vsub.f32 %v3032, %v3040
      %v3043 = vsub.f32 %v3033, %v3041
      %v3044 = vmul.f32 %v3042, %v3042
      %v3045 = vmul.f32 %v3043, %v3043
      %v3046 = vsel %vm1764, %v3044, 0.0
      %3047 = vadd.xlane.f32.xlu0 %v3046
      %v3048 = vpop.xlane.xlu0 %3047
      %v3049 = vsel %vm2314, %v3045, 0.0
      %3050 = vadd.xlane.f32.xlu0 %v3049
      %v3051 = vpop.xlane.xlu0 %3050
      %v3052 = vmul.f32 %v3048, %v2324
      %v3053 = vmul.f32 %v3051, %v2324
      %v3054 = vadd.f32 %v3052, 1e-05
      %v3055 = vadd.f32 %v3053, 1e-05
      %v3056 = vrsqrt.pop %v3054
      %v3057 = vmul.f32 %v3056, %v3054
      %v3058 = vmul.f32 %v3057, %v3056
      %v3059 = vmul.f32 0.5, %v3058
      %v3060 = vsub.f32 1.5, %v3059
      %v3061 = vmul.f32 %v3056, %v3060
      %vm3062 = vweird.f32 %v3054
      %vm3063 = vweird.f32 %v3056
      %vm3064 = vmor %vm3062, %vm3063
      %v3065 = vsel %vm3064, %v3056, %v3061
      %v3066 = vrsqrt.pop %v3055
      %v3067 = vmul.f32 %v3066, %v3055
      %v3068 = vmul.f32 %v3067, %v3066
      %v3069 = vmul.f32 0.5, %v3068
      %v3070 = vsub.f32 1.5, %v3069
      %v3071 = vmul.f32 %v3066, %v3070
      %vm3072 = vweird.f32 %v3055
      %vm3073 = vweird.f32 %v3066
      %vm3074 = vmor %vm3072, %vm3073
      %v3075 = vsel %vm3074, %v3066, %v3071
      %v3076 = vmul.f32 %v3042, %v3065
      %v3077 = vmul.f32 %v3043, %v3075
      %s3078 = scalar_lea.vmem %s31, 1
      %v3079 = vld [vmem:[%s3078] sm:$0x1]
      %v3081 = vperm.slane %v3079, 0
      %v3083 = vmul.f32 %v3076, %v3081
      %v3084 = vmul.f32 %v3077, %v3081
      %s3085 = scalar_lea.vmem %s33, 1
      %v3086 = vld [vmem:[%s3085] sm:$0x1]
      %v3088 = vperm.slane %v3086, 0
      %v3090 = vadd.f32 %v3083, %v3088
      %v3091 = vadd.f32 %v3084, %v3088
      %s3092 = scalar_lea.vmem %s35, 32
      %v3093 = vld [vmem:[%s3092] sm:$0xff]
      %v3094 = vld [vmem:[%s3092 + $0x8] sm:$0xff]
      %v3095 = vld [vmem:[%s3092 + $0x10] sm:$0xff]
      %v3096 = vld [vmem:[%s3092 + $0x18] sm:$0xff]
      %s3097 = scalar_lea.vmem %s37, 1
      %v3098 = vld [vmem:[%s3097] sm:$0x1]
      %v3100 = vperm.slane %v3098, 0
      %v3103 = vsel %vm1764, %v3090, 0
      %v3106 = vsel %vm1764, %v3091, 0
      %3108 = vmatpush.msra.mxu0 0.0
      %3109 = vmatpush.msra.mxu0 0.0
      %3110 = vmatpush.msra.mxu0 0.0
      %3111 = vmatpush.msra.mxu0 0.0
      %3112 = vmatpush.msra.mxu0 0.0
      %3113 = vmatpush.msra.mxu0 0.0
      %3114 = vmatpush.msra.mxu0 0.0
      %3115 = vmatpush.msra.mxu0 0.0
      %3116 = vmatpush.msra.mxu0 0.0
      %3117 = vmatpush.msra.mxu0 0.0
      %3118 = vmatpush.msra.mxu0 0.0
      %3119 = vmatpush.msra.mxu0 0.0
      %3120 = vmatpush.msra.mxu0 %v3096
      %3121 = vmatpush.msra.mxu0 %v3095
      %3122 = vmatpush.msra.mxu0 %v3094
      %3123 = vmatpush.msra.mxu0 %v3093
      %3124 = vmatmul.f32.gmra.mxu0 %v3103
      %v3125 = vpop.f32.mrf.mxu0
      %v3126 = vadd.f32 %v3100, %v3125
      %3127 = vmatmul.f32.gmra.mxu0 %v3106
      %v3128 = vpop.f32.mrf.mxu0
      %v3129 = vadd.f32 %v3100, %v3128
      %3130 = vdwg.mxu0
      %v3131 = vmul.f32 %v3126, %v3126
      %v3132 = vmul.f32 %v3129, %v3129
      %v3133 = vmul.f32 %v3126, %v3131
      %v3134 = vmul.f32 %v3129, %v3132
      %v3135 = vmul.f32 %v3133, 0.044715
      %v3136 = vmul.f32 %v3134, 0.044715
      %v3137 = vadd.f32 %v3126, %v3135
      %v3138 = vadd.f32 %v3129, %v3136
      %v3139 = vmul.f32 %v3137, 0.7978846
      %v3140 = vmul.f32 %v3138, 0.7978846
      %v3141 = vtanh.pop %v3139
      %v3142 = vtanh.pop %v3140
      %v3143 = vadd.f32 %v3141, 1.0
      %v3144 = vadd.f32 %v3142, 1.0
      %v3145 = vmul.f32 %v3143, 0.5
      %v3146 = vmul.f32 %v3144, 0.5
      %v3147 = vmul.f32 %v3126, %v3145
      %v3148 = vmul.f32 %v3129, %v3146
      %s3149 = scalar_lea.vmem %s39, 64
      %v3150 = vld [vmem:[%s3149] sm:$0xff]
      %v3151 = vld [vmem:[%s3149 + $0x8] sm:$0xff]
      %v3152 = vld [vmem:[%s3149 + $0x10] sm:$0xff]
      %v3153 = vld [vmem:[%s3149 + $0x18] sm:$0xff]
      %v3154 = vld [vmem:[%s3149 + $0x20] sm:$0xff]
      %v3155 = vld [vmem:[%s3149 + $0x28] sm:$0xff]
      %v3156 = vld [vmem:[%s3149 + $0x30] sm:$0xff]
      %v3157 = vld [vmem:[%s3149 + $0x38] sm:$0xff]
      %s3158 = scalar_lea.vmem %s41, 1
      %v3159 = vld [vmem:[%s3158] sm:$0x1]
      %v3161 = vperm.slane %v3159, 0
      %v3164 = vsel %vm2442, %v3147, 0
      %v3167 = vsel %vm2442, %v3148, 0
      %3169 = vmatpush.msra.mxu0 0.0
      %3170 = vmatpush.msra.mxu0 0.0
      %3171 = vmatpush.msra.mxu0 0.0
      %3172 = vmatpush.msra.mxu0 0.0
      %3173 = vmatpush.msra.mxu0 0.0
      %3174 = vmatpush.msra.mxu0 0.0
      %3175 = vmatpush.msra.mxu0 0.0
      %3176 = vmatpush.msra.mxu0 0.0
      %3177 = vmatpush.msra.mxu0 %v3157
      %3178 = vmatpush.msra.mxu0 %v3156
      %3179 = vmatpush.msra.mxu0 %v3155
      %3180 = vmatpush.msra.mxu0 %v3154
      %3181 = vmatpush.msra.mxu0 %v3153
      %3182 = vmatpush.msra.mxu0 %v3152
      %3183 = vmatpush.msra.mxu0 %v3151
      %3184 = vmatpush.msra.mxu0 %v3150
      %3185 = vmatmul.f32.gmra.mxu0 %v3164
      %v3186 = vpop.f32.mrf.mxu0
      %v3187 = vadd.f32 %v3161, %v3186
      %3188 = vmatmul.f32.gmra.mxu0 %v3167
      %v3189 = vpop.f32.mrf.mxu0
      %3190 = vdwg.mxu0
      %v3191 = vadd.f32 %v3090, %v3187
      %v3192 = vsel %vm1764, %v3191, 0.0
      %3193 = vadd.xlane.f32.xlu0 %v3192
      %v3194 = vpop.xlane.xlu0 %3193
      %v3195 = vmul.f32 %v3194, %v2324
      %v3196 = vsub.f32 %v3191, %v3195
      %v3197 = vmul.f32 %v3196, %v3196
      %v3198 = vsel %vm1764, %v3197, 0.0
      %3199 = vadd.xlane.f32.xlu0 %v3198
      %v3200 = vpop.xlane.xlu0 %3199
      %v3201 = vmul.f32 %v3200, %v2324
      %v3202 = vadd.f32 %v3201, 1e-05
      %v3203 = vrsqrt.pop %v3202
      %v3204 = vmul.f32 %v3203, %v3202
      %v3205 = vmul.f32 %v3204, %v3203
      %v3206 = vmul.f32 0.5, %v3205
      %v3207 = vsub.f32 1.5, %v3206
      %v3208 = vmul.f32 %v3203, %v3207
      %vm3209 = vweird.f32 %v3202
      %vm3210 = vweird.f32 %v3203
      %vm3211 = vmor %vm3209, %vm3210
      %v3212 = vsel %vm3211, %v3203, %v3208
      %v3213 = vmul.f32 %v3196, %v3212
      %s3214 = scalar_lea.vmem %s43, 1
      %v3215 = vld [vmem:[%s3214] sm:$0x1]
      %v3217 = vperm.slane %v3215, 0
      %v3219 = vmul.f32 %v3213, %v3217
      %s3220 = scalar_lea.vmem %s45, 1
      %v3221 = vld [vmem:[%s3220] sm:$0x1]
      %v3223 = vperm.slane %v3221, 0
      %v3225 = vadd.f32 %v3219, %v3223
      %v3226 = vld [vmem:[%s47] sm:$0xff]
      %v3227 = vld [vmem:[%s47 + $0x8] sm:$0xff]
      %v3228 = vld [vmem:[%s47 + $0x10] sm:$0xff]
      %v3229 = vld [vmem:[%s47 + $0x18] sm:$0xff]
      %v3230 = vld [vmem:[%s49] sm:$0x1]
      %v3232 = vperm.slane %v3230, 0
      %v3235 = vsel %vm1764, %v3225, 0
      %3237 = vmatpush.msra.mxu0 0.0
      %3238 = vmatpush.msra.mxu0 0.0
      %3239 = vmatpush.msra.mxu0 0.0
      %3240 = vmatpush.msra.mxu0 0.0
      %3241 = vmatpush.msra.mxu0 0.0
      %3242 = vmatpush.msra.mxu0 0.0
      %3243 = vmatpush.msra.mxu0 0.0
      %3244 = vmatpush.msra.mxu0 0.0
      %3245 = vmatpush.msra.mxu0 0.0
      %3246 = vmatpush.msra.mxu0 0.0
      %3247 = vmatpush.msra.mxu0 0.0
      %3248 = vmatpush.msra.mxu0 0.0
      %3249 = vmatpush.msra.mxu0 %v3229
      %3250 = vmatpush.msra.mxu0 %v3228
      %3251 = vmatpush.msra.mxu0 %v3227
      %3252 = vmatpush.msra.mxu0 %v3226
      %3253 = vmatmul.f32.gmra.mxu0 %v3235
      %v3254 = vpop.f32.mrf.mxu0
      %v3255 = vadd.f32 %v3232, %v3254
      %3256 = vdwg.mxu0
      %v3257 = vmul.f32 %v3255, %v3255
      %v3258 = vmul.f32 %v3255, %v3257
      %v3259 = vmul.f32 %v3258, 0.044715
      %v3260 = vadd.f32 %v3255, %v3259
      %v3261 = vmul.f32 %v3260, 0.7978846
      %v3262 = vtanh.pop %v3261
      %v3263 = vadd.f32 %v3262, 1.0
      %v3264 = vmul.f32 %v3263, 0.5
      %v3265 = vmul.f32 %v3255, %v3264
      %v3266 = vld [vmem:[%s51] sm:$0xff]
      %v3267 = vld [vmem:[%s51 + $0x8] sm:$0xff]
      %v3268 = vld [vmem:[%s51 + $0x10] sm:$0xff]
      %v3269 = vld [vmem:[%s51 + $0x18] sm:$0xff]
      %v3270 = vld [vmem:[%s53] sm:$0x1]
      %v3272 = vperm.slane %v3270, 0
      %v3275 = vsel %vm1764, %v3265, 0
      %3277 = vmatpush.msra.mxu0 0.0
      %3278 = vmatpush.msra.mxu0 0.0
      %3279 = vmatpush.msra.mxu0 0.0
      %3280 = vmatpush.msra.mxu0 0.0
      %3281 = vmatpush.msra.mxu0 0.0
      %3282 = vmatpush.msra.mxu0 0.0
      %3283 = vmatpush.msra.mxu0 0.0
      %3284 = vmatpush.msra.mxu0 0.0
      %3285 = vmatpush.msra.mxu0 0.0
      %3286 = vmatpush.msra.mxu0 0.0
      %3287 = vmatpush.msra.mxu0 0.0
      %3288 = vmatpush.msra.mxu0 0.0
      %3289 = vmatpush.msra.mxu0 %v3269
      %3290 = vmatpush.msra.mxu0 %v3268
      %3291 = vmatpush.msra.mxu0 %v3267
      %3292 = vmatpush.msra.mxu0 %v3266
      %3293 = vmatmul.f32.gmra.mxu0 %v3275
      %v3294 = vpop.f32.mrf.mxu0
      %v3295 = vadd.f32 %v3272, %v3294
      %3296 = vdwg.mxu0
      %v3297 = vmul.f32 %v3295, %v3295
      %v3298 = vmul.f32 %v3295, %v3297
      %v3299 = vmul.f32 %v3298, 0.044715
      %v3300 = vadd.f32 %v3295, %v3299
      %v3301 = vmul.f32 %v3300, 0.7978846
      %v3302 = vtanh.pop %v3301
      %v3303 = vadd.f32 %v3302, 1.0
      %v3304 = vmul.f32 %v3303, 0.5
      %v3305 = vmul.f32 %v3295, %v3304
      %v3306 = vld [vmem:[%s55] sm:$0xff]
      %v3307 = vld [vmem:[%s55 + $0x8] sm:$0xff]
      %v3308 = vld [vmem:[%s55 + $0x10] sm:$0xff]
      %v3309 = vld [vmem:[%s55 + $0x18] sm:$0xff]
      %v3310 = vld [vmem:[%s57] sm:$0x1]
      %v3312 = vperm.slane %v3310, 0
      %v3315 = vsel %vm1764, %v3305, 0
      %3317 = vmatpush.msra.mxu0 0.0
      %3318 = vmatpush.msra.mxu0 0.0
      %3319 = vmatpush.msra.mxu0 0.0
      %3320 = vmatpush.msra.mxu0 0.0
      %3321 = vmatpush.msra.mxu0 0.0
      %3322 = vmatpush.msra.mxu0 0.0
      %3323 = vmatpush.msra.mxu0 0.0
      %3324 = vmatpush.msra.mxu0 0.0
      %3325 = vmatpush.msra.mxu0 0.0
      %3326 = vmatpush.msra.mxu0 0.0
      %3327 = vmatpush.msra.mxu0 0.0
      %3328 = vmatpush.msra.mxu0 0.0
      %3329 = vmatpush.msra.mxu0 %v3309
      %3330 = vmatpush.msra.mxu0 %v3308
      %3331 = vmatpush.msra.mxu0 %v3307
      %3332 = vmatpush.msra.mxu0 %v3306
      %3333 = vmatmul.f32.gmra.mxu0 %v3315
      %v3334 = vpop.f32.mrf.mxu0
      %v3335 = vadd.f32 %v3312, %v3334
      %3336 = vdwg.mxu0
      %v3337 = vld [vmem:[%s924] sm:$0xff]
      %v3338 = vadd.f32 %v3337, %v3335
      %3339 = vst.msk [vmem:[%s931] sm:$0xff] %vm1730, %v3338
      %p3340 = scmp.lt.s32.totalorder %s70, 1
      %s3341 = scalar_select %p3340, %s70, 1
      %s3342 = smul.addr %s3341, 8
      %s3343 = scalar_lea.vmem %s59, %s3342
      // Predicated region
      $region137: #{avgpool_continuous_diffusion_forward.1} parent=135 // pred_check
        %p3344 = pneg %p712
      $region138: #{avgpool_continuous_diffusion_forward.1} parent=135 // pred_check_branch
        %3346 = sbr.rel (%p3344) target = $region140
      $region139: #{avgpool_continuous_diffusion_forward.1} parent=135 // pred_region
        _
      $region140: #{avgpool_continuous_diffusion_forward.1} parent=135 // pred_fallthru
        _
    $region136: #{avgpool_continuous_diffusion_forward.1} parent=5 // pred_fallthru
      _
    %p3347 = scmp.le.s32.totalorder 2, %s65
    // Predicated region
    $region141: #{avgpool_continuous_diffusion_forward.1} parent=5 // pred_check
      %p3348 = pneg %p3347
    $region142: #{avgpool_continuous_diffusion_forward.1} parent=5 // pred_check_branch
      %3350 = sbr.rel (%p3348) target = $region144
    $region143: #{avgpool_continuous_diffusion_forward.1} parent=5 // pred_region
      %s3351 = ssub.s32 %s65, 2
      // Predicated region
      $region145: #{avgpool_continuous_diffusion_forward.1} parent=143 // pred_check
        %p3352 = pneg %p718
      $region146: #{avgpool_continuous_diffusion_forward.1} parent=143 // pred_check_branch
        %3354 = sbr.rel (%p3352) target = $region148
      $region147: #{avgpool_continuous_diffusion_forward.1} parent=143 // pred_region
        %p3355 = scmp.lt.s32.totalorder %s71, 1
        %s3356 = scalar_select %p3355, %s71, 1
        %s3357 = smul.addr %s3356, 8
        %s3358 = scalar_lea.vmem %s59, %s3357
      $region148: #{avgpool_continuous_diffusion_forward.1} parent=143 // pred_fallthru
        _
    $region144: #{avgpool_continuous_diffusion_forward.1} parent=5 // pred_fallthru
      _
  $region6: #{avgpool_continuous_diffusion_forward.1} parent=0 // loop_footer
    %s69 = sadd.s32 1, %s65
  $region7: #{avgpool_continuous_diffusion_forward.1} parent=0 // loop_footer_branch
    %64 = sbr.rel target = $region3
  $region8: #{avgpool_continuous_diffusion_forward.1} parent=0 // loop_exit
    _

</llo_original>
